<compile_context>
chip_gen: v5e
topology: v5e:2x2
jax: 0.10.0
libtpu: 0.0.40
codegen_flags: <defaults>
</compile_context>

<pallas_src>
import functools

import jax
import jax.numpy as jnp
import numpy as np
from jax import lax
from jax.experimental import pallas as pl
from jax.experimental.pallas import tpu as pltpu


# 3x3 taps in (ky, kx) row-major order, excluding the center tap (index 4).
OFF_TAPS = (0, 1, 2, 3, 5, 6, 7, 8)
CIN = 6          # module in_channels
CIN_PAD = 8      # input channel-padded to 8 so im2col blocks are 8-sublane aligned
C0 = 16          # Conv_0 / branch out channels
CB = 64          # concatenated branch channels
COUT = 32        # Conv_1 out channels
K0 = 9 * CIN_PAD        # 72:  Conv_0 im2col contraction size
KB = C0 + 3 * 8 * C0    # 400: branch super-matmul contraction size


# ----------------------------- Fused kernel --------------------------------

def _aspp_fused_kernel(x_ref, w0_ref, b0_ref, wb_ref, bb_ref, w1_ref, b1_ref,
                       o_ref, col0_ref, colb_ref, *, H, W):
    """One batch element of the full ASPP graph, everything VMEM-resident.

    x_ref:  (CIN_PAD, H*W)   flat, lane-dense input slab (channels 6:8 zero)
    w0_ref: (C0, K0)         Conv_0 weight (im2col layout, channel-padded)
    b0_ref: (C0, 1)
    wb_ref: (CB, KB)         combined branch weight (1x1 + 3 dilated 3x3)
    bb_ref: (CB, 1)
    w1_ref: (COUT, CB)       final 1x1 weight
    b1_ref: (COUT, 1)
    o_ref:  (COUT, H*W)      lane-dense NCHW output slab
    col0_ref: VMEM (K0, H*W)  Conv_0 im2col matrix
    colb_ref: VMEM (KB, H*W)  branch im2col matrix
    """
    HW = H * W

    # Per-lane spatial (row, col) indices for the boundary masks.
    if (W & (W - 1)) == 0:                      # power-of-two W: pure bit math
        lw = W.bit_length() - 1
        def split_rc(lane):
            return lane >> lw, lane & (W - 1)
    else:
        def split_rc(lane):
            return lane // W, lane % W

    lane16 = lax.broadcasted_iota(jnp.int32, (C0, HW), 1)
    r16, c16 = split_rc(lane16)
    lane8 = lax.broadcasted_iota(jnp.int32, (CIN_PAD, HW), 1)
    r8, c8 = split_rc(lane8)

    def tap(src, r_idx, c_idx, dy, dx):
        """out[:, r*W+c] = src[:, (r+dy)*W + (c+dx)] if in-bounds else 0.

        Implemented as one XLU lane-roll + a VPU mask (no VMEM relayouts).
        In-bounds source positions never wrap, so the circular roll is exact.
        """
        if dy == 0 and dx == 0:
            return src
        off = dy * W + dx
        rolled = pltpu.roll(src, shift=(-off) % HW, axis=1)
        m = ((r_idx >= -dy) & (r_idx < H - dy) &
             (c_idx >= -dx) & (c_idx < W - dx))
        return jnp.where(m, rolled, 0.0)

    # ---- Conv_0 (3x3, d=1): build col0 (72, HW) via roll+mask taps --------
    x8 = x_ref[...]                                            # (8, HW)
    for t in range(9):
        ky, kx = t // 3, t % 3
        col0_ref[t * CIN_PAD:(t + 1) * CIN_PAD, :] = tap(
            x8, r8, c8, ky - 1, kx - 1)

    y0 = jnp.maximum(
        jnp.dot(w0_ref[...], col0_ref[...],
                preferred_element_type=jnp.float32) + b0_ref[...], 0.0)

    # ---- all four branches: build colb (400, HW), one wide matmul ---------
    # K rows 0:16 hold x0 (the whole 1x1 branch + the shared 3x3 center tap);
    # then 8 off-center taps per dilation d = 1, 2, 3 at 16-row offsets.
    colb_ref[0:C0, :] = y0
    for b_idx, d in enumerate((1, 2, 3)):
        for j, t in enumerate(OFF_TAPS):
            ky, kx = t // 3, t % 3
            r0 = C0 + b_idx * 8 * C0 + j * C0
            colb_ref[r0:r0 + C0, :] = tap(
                y0, r16, c16, (ky - 1) * d, (kx - 1) * d)

    x_all = jnp.maximum(
        jnp.dot(wb_ref[...], colb_ref[...],
                preferred_element_type=jnp.float32) + bb_ref[...], 0.0)

    # ---- final 1x1: 64 -> 32, then one lane-dense unmasked store ----------
    out = jnp.maximum(
        jnp.dot(w1_ref[...], x_all,
                preferred_element_type=jnp.float32) + b1_ref[...], 0.0)
    o_ref[...] = out.astype(o_ref.dtype)


# --------------------------- Weight packing ---------------------------------

def _pack_weights(params):
    """Repack stored params into the fused kernel's matmul layouts."""
    w0, b0 = params["Conv_0"]          # (9, 6, 16), (16,)
    wr0, br0 = params["Conv_r0"]       # (16, 16),   (16,)
    wr1, br1 = params["Conv_r1"]       # (9, 16, 16),(16,)
    wr3, br3 = params["Conv_r3"]
    wr5, br5 = params["Conv_r5"]
    w1, b1 = params["Conv_1"]          # (64, 32),   (32,)

    # Conv_0: (C0, 9*CIN_PAD); input channels zero-padded 6 -> 8.
    w0p = jnp.zeros((9, CIN_PAD, C0), jnp.float32).at[:, :CIN, :].set(w0)
    w0_k = jnp.transpose(w0p, (2, 0, 1)).reshape(C0, K0)

    # Combined branch weight (CB, KB):
    #   output rows   0:16 -> Conv_r0 (1x1), 16:32 -> Conv_r1 (d=1),
    #                 32:48 -> Conv_r3 (d=2), 48:64 -> Conv_r5 (d=3)
    #   K cols        0:16 -> x0 (1x1 branch + the shared center tap),
    #                 16 + b*128 + j*16 -> off-center tap j of branch b.
    wb = jnp.zeros((CB, KB), jnp.float32)
    wb = wb.at[0:C0, 0:C0].set(wr0.T)
    for b_idx, w9 in enumerate((wr1, wr3, wr5)):
        r0 = C0 * (b_idx + 1)
        wb = wb.at[r0:r0 + C0, 0:C0].set(w9[4].T)          # center tap
        for j, t in enumerate(OFF_TAPS):
            c0 = C0 + b_idx * 8 * C0 + j * C0
            wb = wb.at[r0:r0 + C0, c0:c0 + C0].set(w9[t].T)
    bb = jnp.concatenate([br0, br1, br3, br5]).reshape(CB, 1)

    w1_k = w1.T                                            # (32, 64)
    return (w0_k, b0.reshape(C0, 1), wb, bb, w1_k, b1.reshape(COUT, 1))


# ------------------------------ ASPP forward --------------------------------

def aspp_forward(x_nchw, params):
    """Matches ASPP.forward; input/output NCHW like PyTorch."""
    N, C, H, W = x_nchw.shape
    assert C == CIN, f"ASPP expects {CIN} input channels, got {C}"
    HW = H * W

    w0_k, b0_k, wb_k, bb_k, w1_k, b1_k = _pack_weights(params)
    kernel = functools.partial(_aspp_fused_kernel, H=H, W=W)

    # Layout plumbing in the wrapper: free contiguous reshape to (N, C, HW)
    # plus a tiny zero-pad of the channel axis 6 -> 8 so the kernel's input
    # block is 8-sublane aligned and the conv taps need no in-kernel padding.
    x_flat = jnp.pad(x_nchw.reshape(N, CIN, HW),
                     ((0, 0), (0, CIN_PAD - CIN), (0, 0)))

    flops = 2 * N * HW * (C0 * K0 + CB * KB + COUT * CB)
    bytes_accessed = (4 * N * HW * (CIN_PAD + COUT)
                      + 4 * (C0 * K0 + C0 + CB * KB + CB + COUT * CB + COUT))
    cost = pl.CostEstimate(flops=flops, transcendentals=0,
                           bytes_accessed=bytes_accessed)

    out2d = pl.pallas_call(
        kernel,
        out_shape=jax.ShapeDtypeStruct((N, COUT, HW), jnp.float32),
        grid=(N,),
        in_specs=[
            pl.BlockSpec((None, CIN_PAD, HW), lambda n: (n, 0, 0)),
            pl.BlockSpec((C0, K0), lambda n: (0, 0)),
            pl.BlockSpec((C0, 1), lambda n: (0, 0)),
            pl.BlockSpec((CB, KB), lambda n: (0, 0)),
            pl.BlockSpec((CB, 1), lambda n: (0, 0)),
            pl.BlockSpec((COUT, CB), lambda n: (0, 0)),
            pl.BlockSpec((COUT, 1), lambda n: (0, 0)),
        ],
        out_specs=pl.BlockSpec((None, COUT, HW), lambda n: (n, 0, 0)),
        scratch_shapes=[
            pltpu.VMEM((K0, HW), jnp.float32),   # Conv_0 im2col matrix
            pltpu.VMEM((KB, HW), jnp.float32),   # branch im2col matrix
        ],
        compiler_params=pltpu.CompilerParams(
            dimension_semantics=("parallel",)),
        cost_estimate=cost,
    )(x_flat, w0_k, b0_k, wb_k, bb_k, w1_k, b1_k)

    # (N, 32, H*W) -> (N, 32, H, W): contiguous reshape, no transpose needed.
    return out2d.reshape(N, COUT, H, W)


# ------------------------------ Parameters ----------------------------------

def init_params(key):
    """Deterministic synthetic params matching ASPP.__init__ shapes.

    3x3 weights stored as (9, Cin, Cout); 1x1 weights as (Cin, Cout);
    biases as (Cout,).
    """
    def conv3x3_p(k, cin, cout):
        k1, k2 = jax.random.split(k)
        scale = 1.0 / np.sqrt(cin * 9)
        w = jax.random.normal(k1, (9, cin, cout), jnp.float32) * scale
        b = jax.random.normal(k2, (cout,), jnp.float32) * scale
        return w, b

    def conv1x1_p(k, cin, cout):
        k1, k2 = jax.random.split(k)
        scale = 1.0 / np.sqrt(cin)
        w = jax.random.normal(k1, (cin, cout), jnp.float32) * scale
        b = jax.random.normal(k2, (cout,), jnp.float32) * scale
        return w, b

    ks = jax.random.split(key, 6)
    return {
        "Conv_0": conv3x3_p(ks[0], 6, 16),
        "Conv_r0": conv1x1_p(ks[1], 16, 16),
        "Conv_r1": conv3x3_p(ks[2], 16, 16),
        "Conv_r3": conv3x3_p(ks[3], 16, 16),
        "Conv_r5": conv3x3_p(ks[4], 16, 16),
        "Conv_1": conv1x1_p(ks[5], 64, 32),
    }


# --------------------------- Pure-JAX reference ------------------------------

def _ref_conv(x_nhwc, w_hwio, b, dilation, padding):
    y = lax.conv_general_dilated(
        x_nhwc, w_hwio,
        window_strides=(1, 1),
        padding=((padding, padding), (padding, padding)),
        rhs_dilation=(dilation, dilation),
        dimension_numbers=("NHWC", "HWIO", "NHWC"),
    )
    return jnp.maximum(y + b.reshape(1, 1, 1, -1), 0.0)


def aspp_reference(x_nchw, params):
    x = jnp.transpose(x_nchw, (0, 2, 3, 1))

    def w3(w9):  # (9, Cin, Cout) -> (3, 3, Cin, Cout)
        return w9.reshape(3, 3, w9.shape[1], w9.shape[2])

    def w1x1(w):  # (Cin, Cout) -> (1, 1, Cin, Cout)
        return w.reshape(1, 1, *w.shape)

    w0, b0 = params["Conv_0"]
    x = _ref_conv(x, w3(w0), b0, 1, 1)
    wr0, br0 = params["Conv_r0"]
    x1 = _ref_conv(x, w1x1(wr0), br0, 1, 0)
    wr1, br1 = params["Conv_r1"]
    x2 = _ref_conv(x, w3(wr1), br1, 1, 1)
    wr3, br3 = params["Conv_r3"]
    x3 = _ref_conv(x, w3(wr3), br3, 2, 2)
    wr5, br5 = params["Conv_r5"]
    x4 = _ref_conv(x, w3(wr5), br5, 3, 3)
    x_all = jnp.concatenate([x1, x2, x3, x4], axis=-1)
    w1, b1 = params["Conv_1"]
    x_out = _ref_conv(x_all, w1x1(w1), b1, 1, 0)
    return jnp.transpose(x_out, (0, 3, 1, 2))


# ---------------------------------- main -------------------------------------

if __name__ == "__main__":
    key = jax.random.PRNGKey(0)
    k_in, k_params = jax.random.split(key)

    # Input: NCHW like PyTorch, in_channels must be 6.
    x = jax.random.normal(k_in, (2, 6, 16, 16), jnp.float32)
    params = init_params(k_params)

    out = aspp_forward(x, params)
    out = jax.block_until_ready(out)

    assert out.shape == (2, 32, 16, 16), out.shape
    assert out.dtype == jnp.float32

    ref = jax.block_until_ready(aspp_reference(x, params))
    np.testing.assert_allclose(np.asarray(out), np.asarray(ref),
                               rtol=1e-4, atol=1e-4)

    print("KERNEL_OK")
</pallas_src>

<mosaic_0001>
module attributes {stable_mosaic.version = 11 : i64} {
  func.func @_aspp_fused_kernel(%arg0: i32, %arg1: memref<1x8x256xf32, #tpu.memory_space<vmem>>, %arg2: memref<16x72xf32, #tpu.memory_space<vmem>>, %arg3: memref<16x1xf32, #tpu.memory_space<vmem>>, %arg4: memref<64x400xf32, #tpu.memory_space<vmem>>, %arg5: memref<64x1xf32, #tpu.memory_space<vmem>>, %arg6: memref<32x64xf32, #tpu.memory_space<vmem>>, %arg7: memref<32x1xf32, #tpu.memory_space<vmem>>, %arg8: memref<1x32x256xf32, #tpu.memory_space<vmem>>, %arg9: memref<72x256xf32, #tpu.memory_space<vmem>>, %arg10: memref<400x256xf32, #tpu.memory_space<vmem>>) attributes {dimension_semantics = [#tpu.dimension_semantics<parallel>], iteration_bounds = array<i64: 2>, scalar_prefetch = 0 : i64, scratch_operands = 2 : i64, tpu.core_type = #tpu.core_type<tc>, window_params = [{transform_indices = @transform_0, window_bounds = array<i64: 1, 8, 256>}, {pipeline_mode = #tpu.pipeline_mode<synchronous>, transform_indices = @transform_1, window_bounds = array<i64: 16, 72>}, {pipeline_mode = #tpu.pipeline_mode<synchronous>, transform_indices = @transform_2, window_bounds = array<i64: 16, 1>}, {pipeline_mode = #tpu.pipeline_mode<synchronous>, transform_indices = @transform_3, window_bounds = array<i64: 64, 400>}, {pipeline_mode = #tpu.pipeline_mode<synchronous>, transform_indices = @transform_4, window_bounds = array<i64: 64, 1>}, {pipeline_mode = #tpu.pipeline_mode<synchronous>, transform_indices = @transform_5, window_bounds = array<i64: 32, 64>}, {pipeline_mode = #tpu.pipeline_mode<synchronous>, transform_indices = @transform_6, window_bounds = array<i64: 32, 1>}, {transform_indices = @transform_7, window_bounds = array<i64: 1, 32, 256>}]} {
    %0 = tpu.iota {dimensions = array<i32: 1>} : vector<16x256xi32>
    %c4_i32 = arith.constant 4 : i32
    %1 = vector.broadcast %c4_i32 : i32 to vector<16x256xi32>
    %2 = arith.shrsi %0, %1 : vector<16x256xi32>
    %c15_i32 = arith.constant 15 : i32
    %3 = vector.broadcast %c15_i32 : i32 to vector<16x256xi32>
    %4 = arith.andi %0, %3 : vector<16x256xi32>
    %5 = tpu.iota {dimensions = array<i32: 1>} : vector<8x256xi32>
    %c4_i32_0 = arith.constant 4 : i32
    %6 = vector.broadcast %c4_i32_0 : i32 to vector<8x256xi32>
    %7 = arith.shrsi %5, %6 : vector<8x256xi32>
    %c15_i32_1 = arith.constant 15 : i32
    %8 = vector.broadcast %c15_i32_1 : i32 to vector<8x256xi32>
    %9 = arith.andi %5, %8 : vector<8x256xi32>
    %c0 = arith.constant 0 : index
    %c0_2 = arith.constant 0 : index
    %c0_3 = arith.constant 0 : index
    %10 = vector.load %arg1[%c0, %c0_2, %c0_3] : memref<1x8x256xf32, #tpu.memory_space<vmem>>, vector<1x8x256xf32>
    %11 = vector.shape_cast %10 : vector<1x8x256xf32> to vector<8x256xf32>
    %c17_i32 = arith.constant 17 : i32
    %12 = tpu.dynamic_rotate %11 by %c17_i32 dim 1 : vector<8x256xf32>, i32 -> vector<8x256xf32>
    %c1_i32 = arith.constant 1 : i32
    %13 = vector.broadcast %c1_i32 : i32 to vector<8x256xi32>
    %14 = arith.cmpi sge, %7, %13 : vector<8x256xi32>
    %c17_i32_4 = arith.constant 17 : i32
    %15 = vector.broadcast %c17_i32_4 : i32 to vector<8x256xi32>
    %16 = arith.cmpi slt, %7, %15 : vector<8x256xi32>
    %17 = arith.andi %14, %16 : vector<8x256xi1>
    %c1_i32_5 = arith.constant 1 : i32
    %18 = vector.broadcast %c1_i32_5 : i32 to vector<8x256xi32>
    %19 = arith.cmpi sge, %9, %18 : vector<8x256xi32>
    %20 = arith.andi %17, %19 : vector<8x256xi1>
    %c17_i32_6 = arith.constant 17 : i32
    %21 = vector.broadcast %c17_i32_6 : i32 to vector<8x256xi32>
    %22 = arith.cmpi slt, %9, %21 : vector<8x256xi32>
    %23 = arith.andi %20, %22 : vector<8x256xi1>
    %cst = arith.constant 0.000000e+00 : f32
    %24 = vector.broadcast %cst : f32 to vector<8x256xf32>
    %25 = arith.select %23, %12, %24 : vector<8x256xi1>, vector<8x256xf32>
    %c0_7 = arith.constant 0 : index
    %c0_8 = arith.constant 0 : index
    %26 = vector.load %arg9[%c0_7, %c0_8] : memref<72x256xf32, #tpu.memory_space<vmem>>, vector<8x256xf32>
    tpu.vector_store %arg9[%c0_7, %c0_8], %25 {strides = array<i32>} : memref<72x256xf32, #tpu.memory_space<vmem>>, vector<8x256xf32>,
    %c16_i32 = arith.constant 16 : i32
    %27 = tpu.dynamic_rotate %11 by %c16_i32 dim 1 : vector<8x256xf32>, i32 -> vector<8x256xf32>
    %c1_i32_9 = arith.constant 1 : i32
    %28 = vector.broadcast %c1_i32_9 : i32 to vector<8x256xi32>
    %29 = arith.cmpi sge, %7, %28 : vector<8x256xi32>
    %c17_i32_10 = arith.constant 17 : i32
    %30 = vector.broadcast %c17_i32_10 : i32 to vector<8x256xi32>
    %31 = arith.cmpi slt, %7, %30 : vector<8x256xi32>
    %32 = arith.andi %29, %31 : vector<8x256xi1>
    %c0_i32 = arith.constant 0 : i32
    %33 = vector.broadcast %c0_i32 : i32 to vector<8x256xi32>
    %34 = arith.cmpi sge, %9, %33 : vector<8x256xi32>
    %35 = arith.andi %32, %34 : vector<8x256xi1>
    %c16_i32_11 = arith.constant 16 : i32
    %36 = vector.broadcast %c16_i32_11 : i32 to vector<8x256xi32>
    %37 = arith.cmpi slt, %9, %36 : vector<8x256xi32>
    %38 = arith.andi %35, %37 : vector<8x256xi1>
    %cst_12 = arith.constant 0.000000e+00 : f32
    %39 = vector.broadcast %cst_12 : f32 to vector<8x256xf32>
    %40 = arith.select %38, %27, %39 : vector<8x256xi1>, vector<8x256xf32>
    %c8 = arith.constant 8 : index
    %c0_13 = arith.constant 0 : index
    %41 = vector.load %arg9[%c8, %c0_13] : memref<72x256xf32, #tpu.memory_space<vmem>>, vector<8x256xf32>
    tpu.vector_store %arg9[%c8, %c0_13], %40 {strides = array<i32>} : memref<72x256xf32, #tpu.memory_space<vmem>>, vector<8x256xf32>,
    %c15_i32_14 = arith.constant 15 : i32
    %42 = tpu.dynamic_rotate %11 by %c15_i32_14 dim 1 : vector<8x256xf32>, i32 -> vector<8x256xf32>
    %c1_i32_15 = arith.constant 1 : i32
    %43 = vector.broadcast %c1_i32_15 : i32 to vector<8x256xi32>
    %44 = arith.cmpi sge, %7, %43 : vector<8x256xi32>
    %c17_i32_16 = arith.constant 17 : i32
    %45 = vector.broadcast %c17_i32_16 : i32 to vector<8x256xi32>
    %46 = arith.cmpi slt, %7, %45 : vector<8x256xi32>
    %47 = arith.andi %44, %46 : vector<8x256xi1>
    %c-1_i32 = arith.constant -1 : i32
    %48 = vector.broadcast %c-1_i32 : i32 to vector<8x256xi32>
    %49 = arith.cmpi sge, %9, %48 : vector<8x256xi32>
    %50 = arith.andi %47, %49 : vector<8x256xi1>
    %c15_i32_17 = arith.constant 15 : i32
    %51 = vector.broadcast %c15_i32_17 : i32 to vector<8x256xi32>
    %52 = arith.cmpi slt, %9, %51 : vector<8x256xi32>
    %53 = arith.andi %50, %52 : vector<8x256xi1>
    %cst_18 = arith.constant 0.000000e+00 : f32
    %54 = vector.broadcast %cst_18 : f32 to vector<8x256xf32>
    %55 = arith.select %53, %42, %54 : vector<8x256xi1>, vector<8x256xf32>
    %c16 = arith.constant 16 : index
    %c0_19 = arith.constant 0 : index
    %56 = vector.load %arg9[%c16, %c0_19] : memref<72x256xf32, #tpu.memory_space<vmem>>, vector<8x256xf32>
    tpu.vector_store %arg9[%c16, %c0_19], %55 {strides = array<i32>} : memref<72x256xf32, #tpu.memory_space<vmem>>, vector<8x256xf32>,
    %c1_i32_20 = arith.constant 1 : i32
    %57 = tpu.dynamic_rotate %11 by %c1_i32_20 dim 1 : vector<8x256xf32>, i32 -> vector<8x256xf32>
    %c0_i32_21 = arith.constant 0 : i32
    %58 = vector.broadcast %c0_i32_21 : i32 to vector<8x256xi32>
    %59 = arith.cmpi sge, %7, %58 : vector<8x256xi32>
    %c16_i32_22 = arith.constant 16 : i32
    %60 = vector.broadcast %c16_i32_22 : i32 to vector<8x256xi32>
    %61 = arith.cmpi slt, %7, %60 : vector<8x256xi32>
    %62 = arith.andi %59, %61 : vector<8x256xi1>
    %c1_i32_23 = arith.constant 1 : i32
    %63 = vector.broadcast %c1_i32_23 : i32 to vector<8x256xi32>
    %64 = arith.cmpi sge, %9, %63 : vector<8x256xi32>
    %65 = arith.andi %62, %64 : vector<8x256xi1>
    %c17_i32_24 = arith.constant 17 : i32
    %66 = vector.broadcast %c17_i32_24 : i32 to vector<8x256xi32>
    %67 = arith.cmpi slt, %9, %66 : vector<8x256xi32>
    %68 = arith.andi %65, %67 : vector<8x256xi1>
    %cst_25 = arith.constant 0.000000e+00 : f32
    %69 = vector.broadcast %cst_25 : f32 to vector<8x256xf32>
    %70 = arith.select %68, %57, %69 : vector<8x256xi1>, vector<8x256xf32>
    %c24 = arith.constant 24 : index
    %c0_26 = arith.constant 0 : index
    %71 = vector.load %arg9[%c24, %c0_26] : memref<72x256xf32, #tpu.memory_space<vmem>>, vector<8x256xf32>
    tpu.vector_store %arg9[%c24, %c0_26], %70 {strides = array<i32>} : memref<72x256xf32, #tpu.memory_space<vmem>>, vector<8x256xf32>,
    %c32 = arith.constant 32 : index
    %c0_27 = arith.constant 0 : index
    %72 = vector.load %arg9[%c32, %c0_27] : memref<72x256xf32, #tpu.memory_space<vmem>>, vector<8x256xf32>
    tpu.vector_store %arg9[%c32, %c0_27], %11 {strides = array<i32>} : memref<72x256xf32, #tpu.memory_space<vmem>>, vector<8x256xf32>,
    %c255_i32 = arith.constant 255 : i32
    %73 = tpu.dynamic_rotate %11 by %c255_i32 dim 1 : vector<8x256xf32>, i32 -> vector<8x256xf32>
    %c0_i32_28 = arith.constant 0 : i32
    %74 = vector.broadcast %c0_i32_28 : i32 to vector<8x256xi32>
    %75 = arith.cmpi sge, %7, %74 : vector<8x256xi32>
    %c16_i32_29 = arith.constant 16 : i32
    %76 = vector.broadcast %c16_i32_29 : i32 to vector<8x256xi32>
    %77 = arith.cmpi slt, %7, %76 : vector<8x256xi32>
    %78 = arith.andi %75, %77 : vector<8x256xi1>
    %c-1_i32_30 = arith.constant -1 : i32
    %79 = vector.broadcast %c-1_i32_30 : i32 to vector<8x256xi32>
    %80 = arith.cmpi sge, %9, %79 : vector<8x256xi32>
    %81 = arith.andi %78, %80 : vector<8x256xi1>
    %c15_i32_31 = arith.constant 15 : i32
    %82 = vector.broadcast %c15_i32_31 : i32 to vector<8x256xi32>
    %83 = arith.cmpi slt, %9, %82 : vector<8x256xi32>
    %84 = arith.andi %81, %83 : vector<8x256xi1>
    %cst_32 = arith.constant 0.000000e+00 : f32
    %85 = vector.broadcast %cst_32 : f32 to vector<8x256xf32>
    %86 = arith.select %84, %73, %85 : vector<8x256xi1>, vector<8x256xf32>
    %c40 = arith.constant 40 : index
    %c0_33 = arith.constant 0 : index
    %87 = vector.load %arg9[%c40, %c0_33] : memref<72x256xf32, #tpu.memory_space<vmem>>, vector<8x256xf32>
    tpu.vector_store %arg9[%c40, %c0_33], %86 {strides = array<i32>} : memref<72x256xf32, #tpu.memory_space<vmem>>, vector<8x256xf32>,
    %c241_i32 = arith.constant 241 : i32
    %88 = tpu.dynamic_rotate %11 by %c241_i32 dim 1 : vector<8x256xf32>, i32 -> vector<8x256xf32>
    %c-1_i32_34 = arith.constant -1 : i32
    %89 = vector.broadcast %c-1_i32_34 : i32 to vector<8x256xi32>
    %90 = arith.cmpi sge, %7, %89 : vector<8x256xi32>
    %c15_i32_35 = arith.constant 15 : i32
    %91 = vector.broadcast %c15_i32_35 : i32 to vector<8x256xi32>
    %92 = arith.cmpi slt, %7, %91 : vector<8x256xi32>
    %93 = arith.andi %90, %92 : vector<8x256xi1>
    %c1_i32_36 = arith.constant 1 : i32
    %94 = vector.broadcast %c1_i32_36 : i32 to vector<8x256xi32>
    %95 = arith.cmpi sge, %9, %94 : vector<8x256xi32>
    %96 = arith.andi %93, %95 : vector<8x256xi1>
    %c17_i32_37 = arith.constant 17 : i32
    %97 = vector.broadcast %c17_i32_37 : i32 to vector<8x256xi32>
    %98 = arith.cmpi slt, %9, %97 : vector<8x256xi32>
    %99 = arith.andi %96, %98 : vector<8x256xi1>
    %cst_38 = arith.constant 0.000000e+00 : f32
    %100 = vector.broadcast %cst_38 : f32 to vector<8x256xf32>
    %101 = arith.select %99, %88, %100 : vector<8x256xi1>, vector<8x256xf32>
    %c48 = arith.constant 48 : index
    %c0_39 = arith.constant 0 : index
    %102 = vector.load %arg9[%c48, %c0_39] : memref<72x256xf32, #tpu.memory_space<vmem>>, vector<8x256xf32>
    tpu.vector_store %arg9[%c48, %c0_39], %101 {strides = array<i32>} : memref<72x256xf32, #tpu.memory_space<vmem>>, vector<8x256xf32>,
    %c240_i32 = arith.constant 240 : i32
    %103 = tpu.dynamic_rotate %11 by %c240_i32 dim 1 : vector<8x256xf32>, i32 -> vector<8x256xf32>
    %c-1_i32_40 = arith.constant -1 : i32
    %104 = vector.broadcast %c-1_i32_40 : i32 to vector<8x256xi32>
    %105 = arith.cmpi sge, %7, %104 : vector<8x256xi32>
    %c15_i32_41 = arith.constant 15 : i32
    %106 = vector.broadcast %c15_i32_41 : i32 to vector<8x256xi32>
    %107 = arith.cmpi slt, %7, %106 : vector<8x256xi32>
    %108 = arith.andi %105, %107 : vector<8x256xi1>
    %c0_i32_42 = arith.constant 0 : i32
    %109 = vector.broadcast %c0_i32_42 : i32 to vector<8x256xi32>
    %110 = arith.cmpi sge, %9, %109 : vector<8x256xi32>
    %111 = arith.andi %108, %110 : vector<8x256xi1>
    %c16_i32_43 = arith.constant 16 : i32
    %112 = vector.broadcast %c16_i32_43 : i32 to vector<8x256xi32>
    %113 = arith.cmpi slt, %9, %112 : vector<8x256xi32>
    %114 = arith.andi %111, %113 : vector<8x256xi1>
    %cst_44 = arith.constant 0.000000e+00 : f32
    %115 = vector.broadcast %cst_44 : f32 to vector<8x256xf32>
    %116 = arith.select %114, %103, %115 : vector<8x256xi1>, vector<8x256xf32>
    %c56 = arith.constant 56 : index
    %c0_45 = arith.constant 0 : index
    %117 = vector.load %arg9[%c56, %c0_45] : memref<72x256xf32, #tpu.memory_space<vmem>>, vector<8x256xf32>
    tpu.vector_store %arg9[%c56, %c0_45], %116 {strides = array<i32>} : memref<72x256xf32, #tpu.memory_space<vmem>>, vector<8x256xf32>,
    %c239_i32 = arith.constant 239 : i32
    %118 = tpu.dynamic_rotate %11 by %c239_i32 dim 1 : vector<8x256xf32>, i32 -> vector<8x256xf32>
    %c-1_i32_46 = arith.constant -1 : i32
    %119 = vector.broadcast %c-1_i32_46 : i32 to vector<8x256xi32>
    %120 = arith.cmpi sge, %7, %119 : vector<8x256xi32>
    %c15_i32_47 = arith.constant 15 : i32
    %121 = vector.broadcast %c15_i32_47 : i32 to vector<8x256xi32>
    %122 = arith.cmpi slt, %7, %121 : vector<8x256xi32>
    %123 = arith.andi %120, %122 : vector<8x256xi1>
    %c-1_i32_48 = arith.constant -1 : i32
    %124 = vector.broadcast %c-1_i32_48 : i32 to vector<8x256xi32>
    %125 = arith.cmpi sge, %9, %124 : vector<8x256xi32>
    %126 = arith.andi %123, %125 : vector<8x256xi1>
    %c15_i32_49 = arith.constant 15 : i32
    %127 = vector.broadcast %c15_i32_49 : i32 to vector<8x256xi32>
    %128 = arith.cmpi slt, %9, %127 : vector<8x256xi32>
    %129 = arith.andi %126, %128 : vector<8x256xi1>
    %cst_50 = arith.constant 0.000000e+00 : f32
    %130 = vector.broadcast %cst_50 : f32 to vector<8x256xf32>
    %131 = arith.select %129, %118, %130 : vector<8x256xi1>, vector<8x256xf32>
    %c64 = arith.constant 64 : index
    %c0_51 = arith.constant 0 : index
    %132 = vector.load %arg9[%c64, %c0_51] : memref<72x256xf32, #tpu.memory_space<vmem>>, vector<8x256xf32>
    tpu.vector_store %arg9[%c64, %c0_51], %131 {strides = array<i32>} : memref<72x256xf32, #tpu.memory_space<vmem>>, vector<8x256xf32>,
    %c0_52 = arith.constant 0 : index
    %c0_53 = arith.constant 0 : index
    %133 = vector.load %arg2[%c0_52, %c0_53] : memref<16x72xf32, #tpu.memory_space<vmem>>, vector<16x72xf32>
    %c0_54 = arith.constant 0 : index
    %c0_55 = arith.constant 0 : index
    %134 = vector.load %arg9[%c0_54, %c0_55] : memref<72x256xf32, #tpu.memory_space<vmem>>, vector<72x256xf32>
    %cst_56 = arith.constant dense<0.000000e+00> : vector<16x256xf32>
    %135 = tpu.matmul %133, %134, %cst_56 {dimension_numbers = #tpu.dot_dimension_numbers<[1], [0], [0], [1], [0, 0, 1, 1], [], []>} : vector<16x72xf32>, vector<72x256xf32>, vector<16x256xf32> -> vector<16x256xf32>
    %c0_57 = arith.constant 0 : index
    %c0_58 = arith.constant 0 : index
    %136 = vector.load %arg3[%c0_57, %c0_58] : memref<16x1xf32, #tpu.memory_space<vmem>>, vector<16x1xf32>
    %137 = vector.broadcast %136 : vector<16x1xf32> to vector<16x256xf32>
    %138 = arith.addf %135, %137 : vector<16x256xf32>
    %cst_59 = arith.constant 0.000000e+00 : f32
    %139 = vector.broadcast %cst_59 : f32 to vector<16x256xf32>
    %140 = arith.maximumf %138, %139 : vector<16x256xf32>
    %c0_60 = arith.constant 0 : index
    %c0_61 = arith.constant 0 : index
    %141 = vector.load %arg10[%c0_60, %c0_61] : memref<400x256xf32, #tpu.memory_space<vmem>>, vector<16x256xf32>
    tpu.vector_store %arg10[%c0_60, %c0_61], %140 {strides = array<i32>} : memref<400x256xf32, #tpu.memory_space<vmem>>, vector<16x256xf32>,
    %c17_i32_62 = arith.constant 17 : i32
    %142 = tpu.dynamic_rotate %140 by %c17_i32_62 dim 1 : vector<16x256xf32>, i32 -> vector<16x256xf32>
    %c1_i32_63 = arith.constant 1 : i32
    %143 = vector.broadcast %c1_i32_63 : i32 to vector<16x256xi32>
    %144 = arith.cmpi sge, %2, %143 : vector<16x256xi32>
    %c17_i32_64 = arith.constant 17 : i32
    %145 = vector.broadcast %c17_i32_64 : i32 to vector<16x256xi32>
    %146 = arith.cmpi slt, %2, %145 : vector<16x256xi32>
    %147 = arith.andi %144, %146 : vector<16x256xi1>
    %c1_i32_65 = arith.constant 1 : i32
    %148 = vector.broadcast %c1_i32_65 : i32 to vector<16x256xi32>
    %149 = arith.cmpi sge, %4, %148 : vector<16x256xi32>
    %150 = arith.andi %147, %149 : vector<16x256xi1>
    %c17_i32_66 = arith.constant 17 : i32
    %151 = vector.broadcast %c17_i32_66 : i32 to vector<16x256xi32>
    %152 = arith.cmpi slt, %4, %151 : vector<16x256xi32>
    %153 = arith.andi %150, %152 : vector<16x256xi1>
    %cst_67 = arith.constant 0.000000e+00 : f32
    %154 = vector.broadcast %cst_67 : f32 to vector<16x256xf32>
    %155 = arith.select %153, %142, %154 : vector<16x256xi1>, vector<16x256xf32>
    %c16_68 = arith.constant 16 : index
    %c0_69 = arith.constant 0 : index
    %156 = vector.load %arg10[%c16_68, %c0_69] : memref<400x256xf32, #tpu.memory_space<vmem>>, vector<16x256xf32>
    tpu.vector_store %arg10[%c16_68, %c0_69], %155 {strides = array<i32>} : memref<400x256xf32, #tpu.memory_space<vmem>>, vector<16x256xf32>,
    %c16_i32_70 = arith.constant 16 : i32
    %157 = tpu.dynamic_rotate %140 by %c16_i32_70 dim 1 : vector<16x256xf32>, i32 -> vector<16x256xf32>
    %c1_i32_71 = arith.constant 1 : i32
    %158 = vector.broadcast %c1_i32_71 : i32 to vector<16x256xi32>
    %159 = arith.cmpi sge, %2, %158 : vector<16x256xi32>
    %c17_i32_72 = arith.constant 17 : i32
    %160 = vector.broadcast %c17_i32_72 : i32 to vector<16x256xi32>
    %161 = arith.cmpi slt, %2, %160 : vector<16x256xi32>
    %162 = arith.andi %159, %161 : vector<16x256xi1>
    %c0_i32_73 = arith.constant 0 : i32
    %163 = vector.broadcast %c0_i32_73 : i32 to vector<16x256xi32>
    %164 = arith.cmpi sge, %4, %163 : vector<16x256xi32>
    %165 = arith.andi %162, %164 : vector<16x256xi1>
    %c16_i32_74 = arith.constant 16 : i32
    %166 = vector.broadcast %c16_i32_74 : i32 to vector<16x256xi32>
    %167 = arith.cmpi slt, %4, %166 : vector<16x256xi32>
    %168 = arith.andi %165, %167 : vector<16x256xi1>
    %cst_75 = arith.constant 0.000000e+00 : f32
    %169 = vector.broadcast %cst_75 : f32 to vector<16x256xf32>
    %170 = arith.select %168, %157, %169 : vector<16x256xi1>, vector<16x256xf32>
    %c32_76 = arith.constant 32 : index
    %c0_77 = arith.constant 0 : index
    %171 = vector.load %arg10[%c32_76, %c0_77] : memref<400x256xf32, #tpu.memory_space<vmem>>, vector<16x256xf32>
    tpu.vector_store %arg10[%c32_76, %c0_77], %170 {strides = array<i32>} : memref<400x256xf32, #tpu.memory_space<vmem>>, vector<16x256xf32>,
    %c15_i32_78 = arith.constant 15 : i32
    %172 = tpu.dynamic_rotate %140 by %c15_i32_78 dim 1 : vector<16x256xf32>, i32 -> vector<16x256xf32>
    %c1_i32_79 = arith.constant 1 : i32
    %173 = vector.broadcast %c1_i32_79 : i32 to vector<16x256xi32>
    %174 = arith.cmpi sge, %2, %173 : vector<16x256xi32>
    %c17_i32_80 = arith.constant 17 : i32
    %175 = vector.broadcast %c17_i32_80 : i32 to vector<16x256xi32>
    %176 = arith.cmpi slt, %2, %175 : vector<16x256xi32>
    %177 = arith.andi %174, %176 : vector<16x256xi1>
    %c-1_i32_81 = arith.constant -1 : i32
    %178 = vector.broadcast %c-1_i32_81 : i32 to vector<16x256xi32>
    %179 = arith.cmpi sge, %4, %178 : vector<16x256xi32>
    %180 = arith.andi %177, %179 : vector<16x256xi1>
    %c15_i32_82 = arith.constant 15 : i32
    %181 = vector.broadcast %c15_i32_82 : i32 to vector<16x256xi32>
    %182 = arith.cmpi slt, %4, %181 : vector<16x256xi32>
    %183 = arith.andi %180, %182 : vector<16x256xi1>
    %cst_83 = arith.constant 0.000000e+00 : f32
    %184 = vector.broadcast %cst_83 : f32 to vector<16x256xf32>
    %185 = arith.select %183, %172, %184 : vector<16x256xi1>, vector<16x256xf32>
    %c48_84 = arith.constant 48 : index
    %c0_85 = arith.constant 0 : index
    %186 = vector.load %arg10[%c48_84, %c0_85] : memref<400x256xf32, #tpu.memory_space<vmem>>, vector<16x256xf32>
    tpu.vector_store %arg10[%c48_84, %c0_85], %185 {strides = array<i32>} : memref<400x256xf32, #tpu.memory_space<vmem>>, vector<16x256xf32>,
    %c1_i32_86 = arith.constant 1 : i32
    %187 = tpu.dynamic_rotate %140 by %c1_i32_86 dim 1 : vector<16x256xf32>, i32 -> vector<16x256xf32>
    %c0_i32_87 = arith.constant 0 : i32
    %188 = vector.broadcast %c0_i32_87 : i32 to vector<16x256xi32>
    %189 = arith.cmpi sge, %2, %188 : vector<16x256xi32>
    %c16_i32_88 = arith.constant 16 : i32
    %190 = vector.broadcast %c16_i32_88 : i32 to vector<16x256xi32>
    %191 = arith.cmpi slt, %2, %190 : vector<16x256xi32>
    %192 = arith.andi %189, %191 : vector<16x256xi1>
    %c1_i32_89 = arith.constant 1 : i32
    %193 = vector.broadcast %c1_i32_89 : i32 to vector<16x256xi32>
    %194 = arith.cmpi sge, %4, %193 : vector<16x256xi32>
    %195 = arith.andi %192, %194 : vector<16x256xi1>
    %c17_i32_90 = arith.constant 17 : i32
    %196 = vector.broadcast %c17_i32_90 : i32 to vector<16x256xi32>
    %197 = arith.cmpi slt, %4, %196 : vector<16x256xi32>
    %198 = arith.andi %195, %197 : vector<16x256xi1>
    %cst_91 = arith.constant 0.000000e+00 : f32
    %199 = vector.broadcast %cst_91 : f32 to vector<16x256xf32>
    %200 = arith.select %198, %187, %199 : vector<16x256xi1>, vector<16x256xf32>
    %c64_92 = arith.constant 64 : index
    %c0_93 = arith.constant 0 : index
    %201 = vector.load %arg10[%c64_92, %c0_93] : memref<400x256xf32, #tpu.memory_space<vmem>>, vector<16x256xf32>
    tpu.vector_store %arg10[%c64_92, %c0_93], %200 {strides = array<i32>} : memref<400x256xf32, #tpu.memory_space<vmem>>, vector<16x256xf32>,
    %c255_i32_94 = arith.constant 255 : i32
    %202 = tpu.dynamic_rotate %140 by %c255_i32_94 dim 1 : vector<16x256xf32>, i32 -> vector<16x256xf32>
    %c0_i32_95 = arith.constant 0 : i32
    %203 = vector.broadcast %c0_i32_95 : i32 to vector<16x256xi32>
    %204 = arith.cmpi sge, %2, %203 : vector<16x256xi32>
    %c16_i32_96 = arith.constant 16 : i32
    %205 = vector.broadcast %c16_i32_96 : i32 to vector<16x256xi32>
    %206 = arith.cmpi slt, %2, %205 : vector<16x256xi32>
    %207 = arith.andi %204, %206 : vector<16x256xi1>
    %c-1_i32_97 = arith.constant -1 : i32
    %208 = vector.broadcast %c-1_i32_97 : i32 to vector<16x256xi32>
    %209 = arith.cmpi sge, %4, %208 : vector<16x256xi32>
    %210 = arith.andi %207, %209 : vector<16x256xi1>
    %c15_i32_98 = arith.constant 15 : i32
    %211 = vector.broadcast %c15_i32_98 : i32 to vector<16x256xi32>
    %212 = arith.cmpi slt, %4, %211 : vector<16x256xi32>
    %213 = arith.andi %210, %212 : vector<16x256xi1>
    %cst_99 = arith.constant 0.000000e+00 : f32
    %214 = vector.broadcast %cst_99 : f32 to vector<16x256xf32>
    %215 = arith.select %213, %202, %214 : vector<16x256xi1>, vector<16x256xf32>
    %c80 = arith.constant 80 : index
    %c0_100 = arith.constant 0 : index
    %216 = vector.load %arg10[%c80, %c0_100] : memref<400x256xf32, #tpu.memory_space<vmem>>, vector<16x256xf32>
    tpu.vector_store %arg10[%c80, %c0_100], %215 {strides = array<i32>} : memref<400x256xf32, #tpu.memory_space<vmem>>, vector<16x256xf32>,
    %c241_i32_101 = arith.constant 241 : i32
    %217 = tpu.dynamic_rotate %140 by %c241_i32_101 dim 1 : vector<16x256xf32>, i32 -> vector<16x256xf32>
    %c-1_i32_102 = arith.constant -1 : i32
    %218 = vector.broadcast %c-1_i32_102 : i32 to vector<16x256xi32>
    %219 = arith.cmpi sge, %2, %218 : vector<16x256xi32>
    %c15_i32_103 = arith.constant 15 : i32
    %220 = vector.broadcast %c15_i32_103 : i32 to vector<16x256xi32>
    %221 = arith.cmpi slt, %2, %220 : vector<16x256xi32>
    %222 = arith.andi %219, %221 : vector<16x256xi1>
    %c1_i32_104 = arith.constant 1 : i32
    %223 = vector.broadcast %c1_i32_104 : i32 to vector<16x256xi32>
    %224 = arith.cmpi sge, %4, %223 : vector<16x256xi32>
    %225 = arith.andi %222, %224 : vector<16x256xi1>
    %c17_i32_105 = arith.constant 17 : i32
    %226 = vector.broadcast %c17_i32_105 : i32 to vector<16x256xi32>
    %227 = arith.cmpi slt, %4, %226 : vector<16x256xi32>
    %228 = arith.andi %225, %227 : vector<16x256xi1>
    %cst_106 = arith.constant 0.000000e+00 : f32
    %229 = vector.broadcast %cst_106 : f32 to vector<16x256xf32>
    %230 = arith.select %228, %217, %229 : vector<16x256xi1>, vector<16x256xf32>
    %c96 = arith.constant 96 : index
    %c0_107 = arith.constant 0 : index
    %231 = vector.load %arg10[%c96, %c0_107] : memref<400x256xf32, #tpu.memory_space<vmem>>, vector<16x256xf32>
    tpu.vector_store %arg10[%c96, %c0_107], %230 {strides = array<i32>} : memref<400x256xf32, #tpu.memory_space<vmem>>, vector<16x256xf32>,
    %c240_i32_108 = arith.constant 240 : i32
    %232 = tpu.dynamic_rotate %140 by %c240_i32_108 dim 1 : vector<16x256xf32>, i32 -> vector<16x256xf32>
    %c-1_i32_109 = arith.constant -1 : i32
    %233 = vector.broadcast %c-1_i32_109 : i32 to vector<16x256xi32>
    %234 = arith.cmpi sge, %2, %233 : vector<16x256xi32>
    %c15_i32_110 = arith.constant 15 : i32
    %235 = vector.broadcast %c15_i32_110 : i32 to vector<16x256xi32>
    %236 = arith.cmpi slt, %2, %235 : vector<16x256xi32>
    %237 = arith.andi %234, %236 : vector<16x256xi1>
    %c0_i32_111 = arith.constant 0 : i32
    %238 = vector.broadcast %c0_i32_111 : i32 to vector<16x256xi32>
    %239 = arith.cmpi sge, %4, %238 : vector<16x256xi32>
    %240 = arith.andi %237, %239 : vector<16x256xi1>
    %c16_i32_112 = arith.constant 16 : i32
    %241 = vector.broadcast %c16_i32_112 : i32 to vector<16x256xi32>
    %242 = arith.cmpi slt, %4, %241 : vector<16x256xi32>
    %243 = arith.andi %240, %242 : vector<16x256xi1>
    %cst_113 = arith.constant 0.000000e+00 : f32
    %244 = vector.broadcast %cst_113 : f32 to vector<16x256xf32>
    %245 = arith.select %243, %232, %244 : vector<16x256xi1>, vector<16x256xf32>
    %c112 = arith.constant 112 : index
    %c0_114 = arith.constant 0 : index
    %246 = vector.load %arg10[%c112, %c0_114] : memref<400x256xf32, #tpu.memory_space<vmem>>, vector<16x256xf32>
    tpu.vector_store %arg10[%c112, %c0_114], %245 {strides = array<i32>} : memref<400x256xf32, #tpu.memory_space<vmem>>, vector<16x256xf32>,
    %c239_i32_115 = arith.constant 239 : i32
    %247 = tpu.dynamic_rotate %140 by %c239_i32_115 dim 1 : vector<16x256xf32>, i32 -> vector<16x256xf32>
    %c-1_i32_116 = arith.constant -1 : i32
    %248 = vector.broadcast %c-1_i32_116 : i32 to vector<16x256xi32>
    %249 = arith.cmpi sge, %2, %248 : vector<16x256xi32>
    %c15_i32_117 = arith.constant 15 : i32
    %250 = vector.broadcast %c15_i32_117 : i32 to vector<16x256xi32>
    %251 = arith.cmpi slt, %2, %250 : vector<16x256xi32>
    %252 = arith.andi %249, %251 : vector<16x256xi1>
    %c-1_i32_118 = arith.constant -1 : i32
    %253 = vector.broadcast %c-1_i32_118 : i32 to vector<16x256xi32>
    %254 = arith.cmpi sge, %4, %253 : vector<16x256xi32>
    %255 = arith.andi %252, %254 : vector<16x256xi1>
    %c15_i32_119 = arith.constant 15 : i32
    %256 = vector.broadcast %c15_i32_119 : i32 to vector<16x256xi32>
    %257 = arith.cmpi slt, %4, %256 : vector<16x256xi32>
    %258 = arith.andi %255, %257 : vector<16x256xi1>
    %cst_120 = arith.constant 0.000000e+00 : f32
    %259 = vector.broadcast %cst_120 : f32 to vector<16x256xf32>
    %260 = arith.select %258, %247, %259 : vector<16x256xi1>, vector<16x256xf32>
    %c128 = arith.constant 128 : index
    %c0_121 = arith.constant 0 : index
    %261 = vector.load %arg10[%c128, %c0_121] : memref<400x256xf32, #tpu.memory_space<vmem>>, vector<16x256xf32>
    tpu.vector_store %arg10[%c128, %c0_121], %260 {strides = array<i32>} : memref<400x256xf32, #tpu.memory_space<vmem>>, vector<16x256xf32>,
    %c34_i32 = arith.constant 34 : i32
    %262 = tpu.dynamic_rotate %140 by %c34_i32 dim 1 : vector<16x256xf32>, i32 -> vector<16x256xf32>
    %c2_i32 = arith.constant 2 : i32
    %263 = vector.broadcast %c2_i32 : i32 to vector<16x256xi32>
    %264 = arith.cmpi sge, %2, %263 : vector<16x256xi32>
    %c18_i32 = arith.constant 18 : i32
    %265 = vector.broadcast %c18_i32 : i32 to vector<16x256xi32>
    %266 = arith.cmpi slt, %2, %265 : vector<16x256xi32>
    %267 = arith.andi %264, %266 : vector<16x256xi1>
    %c2_i32_122 = arith.constant 2 : i32
    %268 = vector.broadcast %c2_i32_122 : i32 to vector<16x256xi32>
    %269 = arith.cmpi sge, %4, %268 : vector<16x256xi32>
    %270 = arith.andi %267, %269 : vector<16x256xi1>
    %c18_i32_123 = arith.constant 18 : i32
    %271 = vector.broadcast %c18_i32_123 : i32 to vector<16x256xi32>
    %272 = arith.cmpi slt, %4, %271 : vector<16x256xi32>
    %273 = arith.andi %270, %272 : vector<16x256xi1>
    %cst_124 = arith.constant 0.000000e+00 : f32
    %274 = vector.broadcast %cst_124 : f32 to vector<16x256xf32>
    %275 = arith.select %273, %262, %274 : vector<16x256xi1>, vector<16x256xf32>
    %c144 = arith.constant 144 : index
    %c0_125 = arith.constant 0 : index
    %276 = vector.load %arg10[%c144, %c0_125] : memref<400x256xf32, #tpu.memory_space<vmem>>, vector<16x256xf32>
    tpu.vector_store %arg10[%c144, %c0_125], %275 {strides = array<i32>} : memref<400x256xf32, #tpu.memory_space<vmem>>, vector<16x256xf32>,
    %c32_i32 = arith.constant 32 : i32
    %277 = tpu.dynamic_rotate %140 by %c32_i32 dim 1 : vector<16x256xf32>, i32 -> vector<16x256xf32>
    %c2_i32_126 = arith.constant 2 : i32
    %278 = vector.broadcast %c2_i32_126 : i32 to vector<16x256xi32>
    %279 = arith.cmpi sge, %2, %278 : vector<16x256xi32>
    %c18_i32_127 = arith.constant 18 : i32
    %280 = vector.broadcast %c18_i32_127 : i32 to vector<16x256xi32>
    %281 = arith.cmpi slt, %2, %280 : vector<16x256xi32>
    %282 = arith.andi %279, %281 : vector<16x256xi1>
    %c0_i32_128 = arith.constant 0 : i32
    %283 = vector.broadcast %c0_i32_128 : i32 to vector<16x256xi32>
    %284 = arith.cmpi sge, %4, %283 : vector<16x256xi32>
    %285 = arith.andi %282, %284 : vector<16x256xi1>
    %c16_i32_129 = arith.constant 16 : i32
    %286 = vector.broadcast %c16_i32_129 : i32 to vector<16x256xi32>
    %287 = arith.cmpi slt, %4, %286 : vector<16x256xi32>
    %288 = arith.andi %285, %287 : vector<16x256xi1>
    %cst_130 = arith.constant 0.000000e+00 : f32
    %289 = vector.broadcast %cst_130 : f32 to vector<16x256xf32>
    %290 = arith.select %288, %277, %289 : vector<16x256xi1>, vector<16x256xf32>
    %c160 = arith.constant 160 : index
    %c0_131 = arith.constant 0 : index
    %291 = vector.load %arg10[%c160, %c0_131] : memref<400x256xf32, #tpu.memory_space<vmem>>, vector<16x256xf32>
    tpu.vector_store %arg10[%c160, %c0_131], %290 {strides = array<i32>} : memref<400x256xf32, #tpu.memory_space<vmem>>, vector<16x256xf32>,
    %c30_i32 = arith.constant 30 : i32
    %292 = tpu.dynamic_rotate %140 by %c30_i32 dim 1 : vector<16x256xf32>, i32 -> vector<16x256xf32>
    %c2_i32_132 = arith.constant 2 : i32
    %293 = vector.broadcast %c2_i32_132 : i32 to vector<16x256xi32>
    %294 = arith.cmpi sge, %2, %293 : vector<16x256xi32>
    %c18_i32_133 = arith.constant 18 : i32
    %295 = vector.broadcast %c18_i32_133 : i32 to vector<16x256xi32>
    %296 = arith.cmpi slt, %2, %295 : vector<16x256xi32>
    %297 = arith.andi %294, %296 : vector<16x256xi1>
    %c-2_i32 = arith.constant -2 : i32
    %298 = vector.broadcast %c-2_i32 : i32 to vector<16x256xi32>
    %299 = arith.cmpi sge, %4, %298 : vector<16x256xi32>
    %300 = arith.andi %297, %299 : vector<16x256xi1>
    %c14_i32 = arith.constant 14 : i32
    %301 = vector.broadcast %c14_i32 : i32 to vector<16x256xi32>
    %302 = arith.cmpi slt, %4, %301 : vector<16x256xi32>
    %303 = arith.andi %300, %302 : vector<16x256xi1>
    %cst_134 = arith.constant 0.000000e+00 : f32
    %304 = vector.broadcast %cst_134 : f32 to vector<16x256xf32>
    %305 = arith.select %303, %292, %304 : vector<16x256xi1>, vector<16x256xf32>
    %c176 = arith.constant 176 : index
    %c0_135 = arith.constant 0 : index
    %306 = vector.load %arg10[%c176, %c0_135] : memref<400x256xf32, #tpu.memory_space<vmem>>, vector<16x256xf32>
    tpu.vector_store %arg10[%c176, %c0_135], %305 {strides = array<i32>} : memref<400x256xf32, #tpu.memory_space<vmem>>, vector<16x256xf32>,
    %c2_i32_136 = arith.constant 2 : i32
    %307 = tpu.dynamic_rotate %140 by %c2_i32_136 dim 1 : vector<16x256xf32>, i32 -> vector<16x256xf32>
    %c0_i32_137 = arith.constant 0 : i32
    %308 = vector.broadcast %c0_i32_137 : i32 to vector<16x256xi32>
    %309 = arith.cmpi sge, %2, %308 : vector<16x256xi32>
    %c16_i32_138 = arith.constant 16 : i32
    %310 = vector.broadcast %c16_i32_138 : i32 to vector<16x256xi32>
    %311 = arith.cmpi slt, %2, %310 : vector<16x256xi32>
    %312 = arith.andi %309, %311 : vector<16x256xi1>
    %c2_i32_139 = arith.constant 2 : i32
    %313 = vector.broadcast %c2_i32_139 : i32 to vector<16x256xi32>
    %314 = arith.cmpi sge, %4, %313 : vector<16x256xi32>
    %315 = arith.andi %312, %314 : vector<16x256xi1>
    %c18_i32_140 = arith.constant 18 : i32
    %316 = vector.broadcast %c18_i32_140 : i32 to vector<16x256xi32>
    %317 = arith.cmpi slt, %4, %316 : vector<16x256xi32>
    %318 = arith.andi %315, %317 : vector<16x256xi1>
    %cst_141 = arith.constant 0.000000e+00 : f32
    %319 = vector.broadcast %cst_141 : f32 to vector<16x256xf32>
    %320 = arith.select %318, %307, %319 : vector<16x256xi1>, vector<16x256xf32>
    %c192 = arith.constant 192 : index
    %c0_142 = arith.constant 0 : index
    %321 = vector.load %arg10[%c192, %c0_142] : memref<400x256xf32, #tpu.memory_space<vmem>>, vector<16x256xf32>
    tpu.vector_store %arg10[%c192, %c0_142], %320 {strides = array<i32>} : memref<400x256xf32, #tpu.memory_space<vmem>>, vector<16x256xf32>,
    %c254_i32 = arith.constant 254 : i32
    %322 = tpu.dynamic_rotate %140 by %c254_i32 dim 1 : vector<16x256xf32>, i32 -> vector<16x256xf32>
    %c0_i32_143 = arith.constant 0 : i32
    %323 = vector.broadcast %c0_i32_143 : i32 to vector<16x256xi32>
    %324 = arith.cmpi sge, %2, %323 : vector<16x256xi32>
    %c16_i32_144 = arith.constant 16 : i32
    %325 = vector.broadcast %c16_i32_144 : i32 to vector<16x256xi32>
    %326 = arith.cmpi slt, %2, %325 : vector<16x256xi32>
    %327 = arith.andi %324, %326 : vector<16x256xi1>
    %c-2_i32_145 = arith.constant -2 : i32
    %328 = vector.broadcast %c-2_i32_145 : i32 to vector<16x256xi32>
    %329 = arith.cmpi sge, %4, %328 : vector<16x256xi32>
    %330 = arith.andi %327, %329 : vector<16x256xi1>
    %c14_i32_146 = arith.constant 14 : i32
    %331 = vector.broadcast %c14_i32_146 : i32 to vector<16x256xi32>
    %332 = arith.cmpi slt, %4, %331 : vector<16x256xi32>
    %333 = arith.andi %330, %332 : vector<16x256xi1>
    %cst_147 = arith.constant 0.000000e+00 : f32
    %334 = vector.broadcast %cst_147 : f32 to vector<16x256xf32>
    %335 = arith.select %333, %322, %334 : vector<16x256xi1>, vector<16x256xf32>
    %c208 = arith.constant 208 : index
    %c0_148 = arith.constant 0 : index
    %336 = vector.load %arg10[%c208, %c0_148] : memref<400x256xf32, #tpu.memory_space<vmem>>, vector<16x256xf32>
    tpu.vector_store %arg10[%c208, %c0_148], %335 {strides = array<i32>} : memref<400x256xf32, #tpu.memory_space<vmem>>, vector<16x256xf32>,
    %c226_i32 = arith.constant 226 : i32
    %337 = tpu.dynamic_rotate %140 by %c226_i32 dim 1 : vector<16x256xf32>, i32 -> vector<16x256xf32>
    %c-2_i32_149 = arith.constant -2 : i32
    %338 = vector.broadcast %c-2_i32_149 : i32 to vector<16x256xi32>
    %339 = arith.cmpi sge, %2, %338 : vector<16x256xi32>
    %c14_i32_150 = arith.constant 14 : i32
    %340 = vector.broadcast %c14_i32_150 : i32 to vector<16x256xi32>
    %341 = arith.cmpi slt, %2, %340 : vector<16x256xi32>
    %342 = arith.andi %339, %341 : vector<16x256xi1>
    %c2_i32_151 = arith.constant 2 : i32
    %343 = vector.broadcast %c2_i32_151 : i32 to vector<16x256xi32>
    %344 = arith.cmpi sge, %4, %343 : vector<16x256xi32>
    %345 = arith.andi %342, %344 : vector<16x256xi1>
    %c18_i32_152 = arith.constant 18 : i32
    %346 = vector.broadcast %c18_i32_152 : i32 to vector<16x256xi32>
    %347 = arith.cmpi slt, %4, %346 : vector<16x256xi32>
    %348 = arith.andi %345, %347 : vector<16x256xi1>
    %cst_153 = arith.constant 0.000000e+00 : f32
    %349 = vector.broadcast %cst_153 : f32 to vector<16x256xf32>
    %350 = arith.select %348, %337, %349 : vector<16x256xi1>, vector<16x256xf32>
    %c224 = arith.constant 224 : index
    %c0_154 = arith.constant 0 : index
    %351 = vector.load %arg10[%c224, %c0_154] : memref<400x256xf32, #tpu.memory_space<vmem>>, vector<16x256xf32>
    tpu.vector_store %arg10[%c224, %c0_154], %350 {strides = array<i32>} : memref<400x256xf32, #tpu.memory_space<vmem>>, vector<16x256xf32>,
    %c224_i32 = arith.constant 224 : i32
    %352 = tpu.dynamic_rotate %140 by %c224_i32 dim 1 : vector<16x256xf32>, i32 -> vector<16x256xf32>
    %c-2_i32_155 = arith.constant -2 : i32
    %353 = vector.broadcast %c-2_i32_155 : i32 to vector<16x256xi32>
    %354 = arith.cmpi sge, %2, %353 : vector<16x256xi32>
    %c14_i32_156 = arith.constant 14 : i32
    %355 = vector.broadcast %c14_i32_156 : i32 to vector<16x256xi32>
    %356 = arith.cmpi slt, %2, %355 : vector<16x256xi32>
    %357 = arith.andi %354, %356 : vector<16x256xi1>
    %c0_i32_157 = arith.constant 0 : i32
    %358 = vector.broadcast %c0_i32_157 : i32 to vector<16x256xi32>
    %359 = arith.cmpi sge, %4, %358 : vector<16x256xi32>
    %360 = arith.andi %357, %359 : vector<16x256xi1>
    %c16_i32_158 = arith.constant 16 : i32
    %361 = vector.broadcast %c16_i32_158 : i32 to vector<16x256xi32>
    %362 = arith.cmpi slt, %4, %361 : vector<16x256xi32>
    %363 = arith.andi %360, %362 : vector<16x256xi1>
    %cst_159 = arith.constant 0.000000e+00 : f32
    %364 = vector.broadcast %cst_159 : f32 to vector<16x256xf32>
    %365 = arith.select %363, %352, %364 : vector<16x256xi1>, vector<16x256xf32>
    %c240 = arith.constant 240 : index
    %c0_160 = arith.constant 0 : index
    %366 = vector.load %arg10[%c240, %c0_160] : memref<400x256xf32, #tpu.memory_space<vmem>>, vector<16x256xf32>
    tpu.vector_store %arg10[%c240, %c0_160], %365 {strides = array<i32>} : memref<400x256xf32, #tpu.memory_space<vmem>>, vector<16x256xf32>,
    %c222_i32 = arith.constant 222 : i32
    %367 = tpu.dynamic_rotate %140 by %c222_i32 dim 1 : vector<16x256xf32>, i32 -> vector<16x256xf32>
    %c-2_i32_161 = arith.constant -2 : i32
    %368 = vector.broadcast %c-2_i32_161 : i32 to vector<16x256xi32>
    %369 = arith.cmpi sge, %2, %368 : vector<16x256xi32>
    %c14_i32_162 = arith.constant 14 : i32
    %370 = vector.broadcast %c14_i32_162 : i32 to vector<16x256xi32>
    %371 = arith.cmpi slt, %2, %370 : vector<16x256xi32>
    %372 = arith.andi %369, %371 : vector<16x256xi1>
    %c-2_i32_163 = arith.constant -2 : i32
    %373 = vector.broadcast %c-2_i32_163 : i32 to vector<16x256xi32>
    %374 = arith.cmpi sge, %4, %373 : vector<16x256xi32>
    %375 = arith.andi %372, %374 : vector<16x256xi1>
    %c14_i32_164 = arith.constant 14 : i32
    %376 = vector.broadcast %c14_i32_164 : i32 to vector<16x256xi32>
    %377 = arith.cmpi slt, %4, %376 : vector<16x256xi32>
    %378 = arith.andi %375, %377 : vector<16x256xi1>
    %cst_165 = arith.constant 0.000000e+00 : f32
    %379 = vector.broadcast %cst_165 : f32 to vector<16x256xf32>
    %380 = arith.select %378, %367, %379 : vector<16x256xi1>, vector<16x256xf32>
    %c256 = arith.constant 256 : index
    %c0_166 = arith.constant 0 : index
    %381 = vector.load %arg10[%c256, %c0_166] : memref<400x256xf32, #tpu.memory_space<vmem>>, vector<16x256xf32>
    tpu.vector_store %arg10[%c256, %c0_166], %380 {strides = array<i32>} : memref<400x256xf32, #tpu.memory_space<vmem>>, vector<16x256xf32>,
    %c51_i32 = arith.constant 51 : i32
    %382 = tpu.dynamic_rotate %140 by %c51_i32 dim 1 : vector<16x256xf32>, i32 -> vector<16x256xf32>
    %c3_i32 = arith.constant 3 : i32
    %383 = vector.broadcast %c3_i32 : i32 to vector<16x256xi32>
    %384 = arith.cmpi sge, %2, %383 : vector<16x256xi32>
    %c19_i32 = arith.constant 19 : i32
    %385 = vector.broadcast %c19_i32 : i32 to vector<16x256xi32>
    %386 = arith.cmpi slt, %2, %385 : vector<16x256xi32>
    %387 = arith.andi %384, %386 : vector<16x256xi1>
    %c3_i32_167 = arith.constant 3 : i32
    %388 = vector.broadcast %c3_i32_167 : i32 to vector<16x256xi32>
    %389 = arith.cmpi sge, %4, %388 : vector<16x256xi32>
    %390 = arith.andi %387, %389 : vector<16x256xi1>
    %c19_i32_168 = arith.constant 19 : i32
    %391 = vector.broadcast %c19_i32_168 : i32 to vector<16x256xi32>
    %392 = arith.cmpi slt, %4, %391 : vector<16x256xi32>
    %393 = arith.andi %390, %392 : vector<16x256xi1>
    %cst_169 = arith.constant 0.000000e+00 : f32
    %394 = vector.broadcast %cst_169 : f32 to vector<16x256xf32>
    %395 = arith.select %393, %382, %394 : vector<16x256xi1>, vector<16x256xf32>
    %c272 = arith.constant 272 : index
    %c0_170 = arith.constant 0 : index
    %396 = vector.load %arg10[%c272, %c0_170] : memref<400x256xf32, #tpu.memory_space<vmem>>, vector<16x256xf32>
    tpu.vector_store %arg10[%c272, %c0_170], %395 {strides = array<i32>} : memref<400x256xf32, #tpu.memory_space<vmem>>, vector<16x256xf32>,
    %c48_i32 = arith.constant 48 : i32
    %397 = tpu.dynamic_rotate %140 by %c48_i32 dim 1 : vector<16x256xf32>, i32 -> vector<16x256xf32>
    %c3_i32_171 = arith.constant 3 : i32
    %398 = vector.broadcast %c3_i32_171 : i32 to vector<16x256xi32>
    %399 = arith.cmpi sge, %2, %398 : vector<16x256xi32>
    %c19_i32_172 = arith.constant 19 : i32
    %400 = vector.broadcast %c19_i32_172 : i32 to vector<16x256xi32>
    %401 = arith.cmpi slt, %2, %400 : vector<16x256xi32>
    %402 = arith.andi %399, %401 : vector<16x256xi1>
    %c0_i32_173 = arith.constant 0 : i32
    %403 = vector.broadcast %c0_i32_173 : i32 to vector<16x256xi32>
    %404 = arith.cmpi sge, %4, %403 : vector<16x256xi32>
    %405 = arith.andi %402, %404 : vector<16x256xi1>
    %c16_i32_174 = arith.constant 16 : i32
    %406 = vector.broadcast %c16_i32_174 : i32 to vector<16x256xi32>
    %407 = arith.cmpi slt, %4, %406 : vector<16x256xi32>
    %408 = arith.andi %405, %407 : vector<16x256xi1>
    %cst_175 = arith.constant 0.000000e+00 : f32
    %409 = vector.broadcast %cst_175 : f32 to vector<16x256xf32>
    %410 = arith.select %408, %397, %409 : vector<16x256xi1>, vector<16x256xf32>
    %c288 = arith.constant 288 : index
    %c0_176 = arith.constant 0 : index
    %411 = vector.load %arg10[%c288, %c0_176] : memref<400x256xf32, #tpu.memory_space<vmem>>, vector<16x256xf32>
    tpu.vector_store %arg10[%c288, %c0_176], %410 {strides = array<i32>} : memref<400x256xf32, #tpu.memory_space<vmem>>, vector<16x256xf32>,
    %c45_i32 = arith.constant 45 : i32
    %412 = tpu.dynamic_rotate %140 by %c45_i32 dim 1 : vector<16x256xf32>, i32 -> vector<16x256xf32>
    %c3_i32_177 = arith.constant 3 : i32
    %413 = vector.broadcast %c3_i32_177 : i32 to vector<16x256xi32>
    %414 = arith.cmpi sge, %2, %413 : vector<16x256xi32>
    %c19_i32_178 = arith.constant 19 : i32
    %415 = vector.broadcast %c19_i32_178 : i32 to vector<16x256xi32>
    %416 = arith.cmpi slt, %2, %415 : vector<16x256xi32>
    %417 = arith.andi %414, %416 : vector<16x256xi1>
    %c-3_i32 = arith.constant -3 : i32
    %418 = vector.broadcast %c-3_i32 : i32 to vector<16x256xi32>
    %419 = arith.cmpi sge, %4, %418 : vector<16x256xi32>
    %420 = arith.andi %417, %419 : vector<16x256xi1>
    %c13_i32 = arith.constant 13 : i32
    %421 = vector.broadcast %c13_i32 : i32 to vector<16x256xi32>
    %422 = arith.cmpi slt, %4, %421 : vector<16x256xi32>
    %423 = arith.andi %420, %422 : vector<16x256xi1>
    %cst_179 = arith.constant 0.000000e+00 : f32
    %424 = vector.broadcast %cst_179 : f32 to vector<16x256xf32>
    %425 = arith.select %423, %412, %424 : vector<16x256xi1>, vector<16x256xf32>
    %c304 = arith.constant 304 : index
    %c0_180 = arith.constant 0 : index
    %426 = vector.load %arg10[%c304, %c0_180] : memref<400x256xf32, #tpu.memory_space<vmem>>, vector<16x256xf32>
    tpu.vector_store %arg10[%c304, %c0_180], %425 {strides = array<i32>} : memref<400x256xf32, #tpu.memory_space<vmem>>, vector<16x256xf32>,
    %c3_i32_181 = arith.constant 3 : i32
    %427 = tpu.dynamic_rotate %140 by %c3_i32_181 dim 1 : vector<16x256xf32>, i32 -> vector<16x256xf32>
    %c0_i32_182 = arith.constant 0 : i32
    %428 = vector.broadcast %c0_i32_182 : i32 to vector<16x256xi32>
    %429 = arith.cmpi sge, %2, %428 : vector<16x256xi32>
    %c16_i32_183 = arith.constant 16 : i32
    %430 = vector.broadcast %c16_i32_183 : i32 to vector<16x256xi32>
    %431 = arith.cmpi slt, %2, %430 : vector<16x256xi32>
    %432 = arith.andi %429, %431 : vector<16x256xi1>
    %c3_i32_184 = arith.constant 3 : i32
    %433 = vector.broadcast %c3_i32_184 : i32 to vector<16x256xi32>
    %434 = arith.cmpi sge, %4, %433 : vector<16x256xi32>
    %435 = arith.andi %432, %434 : vector<16x256xi1>
    %c19_i32_185 = arith.constant 19 : i32
    %436 = vector.broadcast %c19_i32_185 : i32 to vector<16x256xi32>
    %437 = arith.cmpi slt, %4, %436 : vector<16x256xi32>
    %438 = arith.andi %435, %437 : vector<16x256xi1>
    %cst_186 = arith.constant 0.000000e+00 : f32
    %439 = vector.broadcast %cst_186 : f32 to vector<16x256xf32>
    %440 = arith.select %438, %427, %439 : vector<16x256xi1>, vector<16x256xf32>
    %c320 = arith.constant 320 : index
    %c0_187 = arith.constant 0 : index
    %441 = vector.load %arg10[%c320, %c0_187] : memref<400x256xf32, #tpu.memory_space<vmem>>, vector<16x256xf32>
    tpu.vector_store %arg10[%c320, %c0_187], %440 {strides = array<i32>} : memref<400x256xf32, #tpu.memory_space<vmem>>, vector<16x256xf32>,
    %c253_i32 = arith.constant 253 : i32
    %442 = tpu.dynamic_rotate %140 by %c253_i32 dim 1 : vector<16x256xf32>, i32 -> vector<16x256xf32>
    %c0_i32_188 = arith.constant 0 : i32
    %443 = vector.broadcast %c0_i32_188 : i32 to vector<16x256xi32>
    %444 = arith.cmpi sge, %2, %443 : vector<16x256xi32>
    %c16_i32_189 = arith.constant 16 : i32
    %445 = vector.broadcast %c16_i32_189 : i32 to vector<16x256xi32>
    %446 = arith.cmpi slt, %2, %445 : vector<16x256xi32>
    %447 = arith.andi %444, %446 : vector<16x256xi1>
    %c-3_i32_190 = arith.constant -3 : i32
    %448 = vector.broadcast %c-3_i32_190 : i32 to vector<16x256xi32>
    %449 = arith.cmpi sge, %4, %448 : vector<16x256xi32>
    %450 = arith.andi %447, %449 : vector<16x256xi1>
    %c13_i32_191 = arith.constant 13 : i32
    %451 = vector.broadcast %c13_i32_191 : i32 to vector<16x256xi32>
    %452 = arith.cmpi slt, %4, %451 : vector<16x256xi32>
    %453 = arith.andi %450, %452 : vector<16x256xi1>
    %cst_192 = arith.constant 0.000000e+00 : f32
    %454 = vector.broadcast %cst_192 : f32 to vector<16x256xf32>
    %455 = arith.select %453, %442, %454 : vector<16x256xi1>, vector<16x256xf32>
    %c336 = arith.constant 336 : index
    %c0_193 = arith.constant 0 : index
    %456 = vector.load %arg10[%c336, %c0_193] : memref<400x256xf32, #tpu.memory_space<vmem>>, vector<16x256xf32>
    tpu.vector_store %arg10[%c336, %c0_193], %455 {strides = array<i32>} : memref<400x256xf32, #tpu.memory_space<vmem>>, vector<16x256xf32>,
    %c211_i32 = arith.constant 211 : i32
    %457 = tpu.dynamic_rotate %140 by %c211_i32 dim 1 : vector<16x256xf32>, i32 -> vector<16x256xf32>
    %c-3_i32_194 = arith.constant -3 : i32
    %458 = vector.broadcast %c-3_i32_194 : i32 to vector<16x256xi32>
    %459 = arith.cmpi sge, %2, %458 : vector<16x256xi32>
    %c13_i32_195 = arith.constant 13 : i32
    %460 = vector.broadcast %c13_i32_195 : i32 to vector<16x256xi32>
    %461 = arith.cmpi slt, %2, %460 : vector<16x256xi32>
    %462 = arith.andi %459, %461 : vector<16x256xi1>
    %c3_i32_196 = arith.constant 3 : i32
    %463 = vector.broadcast %c3_i32_196 : i32 to vector<16x256xi32>
    %464 = arith.cmpi sge, %4, %463 : vector<16x256xi32>
    %465 = arith.andi %462, %464 : vector<16x256xi1>
    %c19_i32_197 = arith.constant 19 : i32
    %466 = vector.broadcast %c19_i32_197 : i32 to vector<16x256xi32>
    %467 = arith.cmpi slt, %4, %466 : vector<16x256xi32>
    %468 = arith.andi %465, %467 : vector<16x256xi1>
    %cst_198 = arith.constant 0.000000e+00 : f32
    %469 = vector.broadcast %cst_198 : f32 to vector<16x256xf32>
    %470 = arith.select %468, %457, %469 : vector<16x256xi1>, vector<16x256xf32>
    %c352 = arith.constant 352 : index
    %c0_199 = arith.constant 0 : index
    %471 = vector.load %arg10[%c352, %c0_199] : memref<400x256xf32, #tpu.memory_space<vmem>>, vector<16x256xf32>
    tpu.vector_store %arg10[%c352, %c0_199], %470 {strides = array<i32>} : memref<400x256xf32, #tpu.memory_space<vmem>>, vector<16x256xf32>,
    %c208_i32 = arith.constant 208 : i32
    %472 = tpu.dynamic_rotate %140 by %c208_i32 dim 1 : vector<16x256xf32>, i32 -> vector<16x256xf32>
    %c-3_i32_200 = arith.constant -3 : i32
    %473 = vector.broadcast %c-3_i32_200 : i32 to vector<16x256xi32>
    %474 = arith.cmpi sge, %2, %473 : vector<16x256xi32>
    %c13_i32_201 = arith.constant 13 : i32
    %475 = vector.broadcast %c13_i32_201 : i32 to vector<16x256xi32>
    %476 = arith.cmpi slt, %2, %475 : vector<16x256xi32>
    %477 = arith.andi %474, %476 : vector<16x256xi1>
    %c0_i32_202 = arith.constant 0 : i32
    %478 = vector.broadcast %c0_i32_202 : i32 to vector<16x256xi32>
    %479 = arith.cmpi sge, %4, %478 : vector<16x256xi32>
    %480 = arith.andi %477, %479 : vector<16x256xi1>
    %c16_i32_203 = arith.constant 16 : i32
    %481 = vector.broadcast %c16_i32_203 : i32 to vector<16x256xi32>
    %482 = arith.cmpi slt, %4, %481 : vector<16x256xi32>
    %483 = arith.andi %480, %482 : vector<16x256xi1>
    %cst_204 = arith.constant 0.000000e+00 : f32
    %484 = vector.broadcast %cst_204 : f32 to vector<16x256xf32>
    %485 = arith.select %483, %472, %484 : vector<16x256xi1>, vector<16x256xf32>
    %c368 = arith.constant 368 : index
    %c0_205 = arith.constant 0 : index
    %486 = vector.load %arg10[%c368, %c0_205] : memref<400x256xf32, #tpu.memory_space<vmem>>, vector<16x256xf32>
    tpu.vector_store %arg10[%c368, %c0_205], %485 {strides = array<i32>} : memref<400x256xf32, #tpu.memory_space<vmem>>, vector<16x256xf32>,
    %c205_i32 = arith.constant 205 : i32
    %487 = tpu.dynamic_rotate %140 by %c205_i32 dim 1 : vector<16x256xf32>, i32 -> vector<16x256xf32>
    %c-3_i32_206 = arith.constant -3 : i32
    %488 = vector.broadcast %c-3_i32_206 : i32 to vector<16x256xi32>
    %489 = arith.cmpi sge, %2, %488 : vector<16x256xi32>
    %c13_i32_207 = arith.constant 13 : i32
    %490 = vector.broadcast %c13_i32_207 : i32 to vector<16x256xi32>
    %491 = arith.cmpi slt, %2, %490 : vector<16x256xi32>
    %492 = arith.andi %489, %491 : vector<16x256xi1>
    %c-3_i32_208 = arith.constant -3 : i32
    %493 = vector.broadcast %c-3_i32_208 : i32 to vector<16x256xi32>
    %494 = arith.cmpi sge, %4, %493 : vector<16x256xi32>
    %495 = arith.andi %492, %494 : vector<16x256xi1>
    %c13_i32_209 = arith.constant 13 : i32
    %496 = vector.broadcast %c13_i32_209 : i32 to vector<16x256xi32>
    %497 = arith.cmpi slt, %4, %496 : vector<16x256xi32>
    %498 = arith.andi %495, %497 : vector<16x256xi1>
    %cst_210 = arith.constant 0.000000e+00 : f32
    %499 = vector.broadcast %cst_210 : f32 to vector<16x256xf32>
    %500 = arith.select %498, %487, %499 : vector<16x256xi1>, vector<16x256xf32>
    %c384 = arith.constant 384 : index
    %c0_211 = arith.constant 0 : index
    %501 = vector.load %arg10[%c384, %c0_211] : memref<400x256xf32, #tpu.memory_space<vmem>>, vector<16x256xf32>
    tpu.vector_store %arg10[%c384, %c0_211], %500 {strides = array<i32>} : memref<400x256xf32, #tpu.memory_space<vmem>>, vector<16x256xf32>,
    %c0_212 = arith.constant 0 : index
    %c0_213 = arith.constant 0 : index
    %502 = vector.load %arg4[%c0_212, %c0_213] : memref<64x400xf32, #tpu.memory_space<vmem>>, vector<64x400xf32>
    %c0_214 = arith.constant 0 : index
    %c0_215 = arith.constant 0 : index
    %503 = vector.load %arg10[%c0_214, %c0_215] : memref<400x256xf32, #tpu.memory_space<vmem>>, vector<400x256xf32>
    %cst_216 = arith.constant dense<0.000000e+00> : vector<64x256xf32>
    %504 = tpu.matmul %502, %503, %cst_216 {dimension_numbers = #tpu.dot_dimension_numbers<[1], [0], [0], [1], [0, 0, 1, 1], [], []>} : vector<64x400xf32>, vector<400x256xf32>, vector<64x256xf32> -> vector<64x256xf32>
    %c0_217 = arith.constant 0 : index
    %c0_218 = arith.constant 0 : index
    %505 = vector.load %arg5[%c0_217, %c0_218] : memref<64x1xf32, #tpu.memory_space<vmem>>, vector<64x1xf32>
    %506 = vector.broadcast %505 : vector<64x1xf32> to vector<64x256xf32>
    %507 = arith.addf %504, %506 : vector<64x256xf32>
    %cst_219 = arith.constant 0.000000e+00 : f32
    %508 = vector.broadcast %cst_219 : f32 to vector<64x256xf32>
    %509 = arith.maximumf %507, %508 : vector<64x256xf32>
    %c0_220 = arith.constant 0 : index
    %c0_221 = arith.constant 0 : index
    %510 = vector.load %arg6[%c0_220, %c0_221] : memref<32x64xf32, #tpu.memory_space<vmem>>, vector<32x64xf32>
    %cst_222 = arith.constant dense<0.000000e+00> : vector<32x256xf32>
    %511 = tpu.matmul %510, %509, %cst_222 {dimension_numbers = #tpu.dot_dimension_numbers<[1], [0], [0], [1], [0, 0, 1, 1], [], []>} : vector<32x64xf32>, vector<64x256xf32>, vector<32x256xf32> -> vector<32x256xf32>
    %c0_223 = arith.constant 0 : index
    %c0_224 = arith.constant 0 : index
    %512 = vector.load %arg7[%c0_223, %c0_224] : memref<32x1xf32, #tpu.memory_space<vmem>>, vector<32x1xf32>
    %513 = vector.broadcast %512 : vector<32x1xf32> to vector<32x256xf32>
    %514 = arith.addf %511, %513 : vector<32x256xf32>
    %cst_225 = arith.constant 0.000000e+00 : f32
    %515 = vector.broadcast %cst_225 : f32 to vector<32x256xf32>
    %516 = arith.maximumf %514, %515 : vector<32x256xf32>
    %c0_226 = arith.constant 0 : index
    %c0_227 = arith.constant 0 : index
    %c0_228 = arith.constant 0 : index
    %517 = vector.load %arg8[%c0_226, %c0_227, %c0_228] : memref<1x32x256xf32, #tpu.memory_space<vmem>>, vector<1x32x256xf32>
    %518 = vector.shape_cast %517 : vector<1x32x256xf32> to vector<32x256xf32>
    %519 = vector.shape_cast %516 : vector<32x256xf32> to vector<1x32x256xf32>
    tpu.vector_store %arg8[%c0_226, %c0_227, %c0_228], %519 {strides = array<i32>} : memref<1x32x256xf32, #tpu.memory_space<vmem>>, vector<1x32x256xf32>,
    return
  }
  func.func @transform_0(%arg0: i32) -> (i32, i32, i32) {
    %c0_i32 = arith.constant 0 : i32
    %c0_i32_0 = arith.constant 0 : i32
    %c0_i32_1 = arith.constant 0 : i32
    return %arg0, %c0_i32, %c0_i32_0 : i32, i32, i32
  }
  func.func @transform_1(%arg0: i32) -> (i32, i32) {
    %c0_i32 = arith.constant 0 : i32
    %c0_i32_0 = arith.constant 0 : i32
    %c0_i32_1 = arith.constant 0 : i32
    return %c0_i32, %c0_i32_0 : i32, i32
  }
  func.func @transform_2(%arg0: i32) -> (i32, i32) {
    %c0_i32 = arith.constant 0 : i32
    %c0_i32_0 = arith.constant 0 : i32
    %c0_i32_1 = arith.constant 0 : i32
    return %c0_i32, %c0_i32_0 : i32, i32
  }
  func.func @transform_3(%arg0: i32) -> (i32, i32) {
    %c0_i32 = arith.constant 0 : i32
    %c0_i32_0 = arith.constant 0 : i32
    %c0_i32_1 = arith.constant 0 : i32
    return %c0_i32, %c0_i32_0 : i32, i32
  }
  func.func @transform_4(%arg0: i32) -> (i32, i32) {
    %c0_i32 = arith.constant 0 : i32
    %c0_i32_0 = arith.constant 0 : i32
    %c0_i32_1 = arith.constant 0 : i32
    return %c0_i32, %c0_i32_0 : i32, i32
  }
  func.func @transform_5(%arg0: i32) -> (i32, i32) {
    %c0_i32 = arith.constant 0 : i32
    %c0_i32_0 = arith.constant 0 : i32
    %c0_i32_1 = arith.constant 0 : i32
    return %c0_i32, %c0_i32_0 : i32, i32
  }
  func.func @transform_6(%arg0: i32) -> (i32, i32) {
    %c0_i32 = arith.constant 0 : i32
    %c0_i32_0 = arith.constant 0 : i32
    %c0_i32_1 = arith.constant 0 : i32
    return %c0_i32, %c0_i32_0 : i32, i32
  }
  func.func @transform_7(%arg0: i32) -> (i32, i32, i32) {
    %c0_i32 = arith.constant 0 : i32
    %c0_i32_0 = arith.constant 0 : i32
    %c0_i32_1 = arith.constant 0 : i32
    return %arg0, %c0_i32, %c0_i32_0 : i32, i32, i32
  }
}

</mosaic_0001>

<llo_original>
// kernel: tpu_custom_call.1
$region0: #{tpu_custom_call.1}
  #allocation0 [shape = 'u32[]', space=smem, size = 0x4, offset = 0x4, fixed_abs, tag = 'smem constant byte address 0x4 - core index']
  #allocation1 [shape = 'u32[72,128]{1,0:T(1,128)}', space=vmem, size = 0x9000, scoped, tag = 'internal scratch']
  #allocation2 [shape = 'f32[72,256]{1,0:T(8,128)}', space=vmem, size = 0x12000, scoped, tag = 'scratch operand']
  #allocation3 [shape = 'f32[400,256]{1,0:T(8,128)}', space=vmem, size = 0x64000, scoped, tag = 'scratch operand']
  %s0 = inlined_call_operand.vmem [shape: f32[2,8,256], index: 0, kind: input, shape index: {}]
  %s1 = inlined_call_operand.vmem [shape: f32[16,72], index: 1, kind: input, shape index: {}]
  %s2 = inlined_call_operand.vmem [shape: f32[16,1], index: 2, kind: input, shape index: {}]
  %s3 = inlined_call_operand.hbm [shape: f32[64,400], index: 3, kind: input, shape index: {}]
  %s4 = inlined_call_operand.vmem [shape: f32[64,1], index: 4, kind: input, shape index: {}]
  %s5 = inlined_call_operand.vmem [shape: f32[32,64], index: 5, kind: input, shape index: {}]
  %s6 = inlined_call_operand.vmem [shape: f32[32,1], index: 6, kind: input, shape index: {}]
  %s7 = inlined_call_operand.hbm [shape: f32[2,32,256], index: 7, kind: output, shape index: {}]
  %s8 = sld [smem:[#allocation0]]
  $region65: #{tpu_custom_call.1} parent=0
    _
  %s10 = ssub.s32 1, %s8
  %s11 = scalar_select 0, %s10, %s8
  $region1: #{tpu_custom_call.1} parent=0
    #allocation4 [shape = 'u8[131072]{0}', space=vmem, size = 0x20000, scoped, tag = 'input window, operand 3, single buffered']
    #allocation5 [shape = 's32[2]{0}', space=sflag, size = 0x8, scoped, tag = 'scoped memory for tpu_custom_call.1']
    #allocation6 [shape = 's32[2]{0}', space=sflag, size = 0x8, scoped, tag = 'scoped memory for tpu_custom_call.1']
    #allocation7 [shape = 'u8[65536]{0}', space=vmem, size = 0x10000, scoped, tag = 'output window, operand 0']
    %12 = vsyncpa [#allocation5], 0
    %13 = vsyncpa [#allocation6], 0
    %s14 = scalar_lea.sflag [#allocation6], 1
    %15 = vsyncpa %s14, 0
    loop: start=0, step=1, limit=4
    $region2: #{tpu_custom_call.1} parent=1 // loop_pre_header
      _
    $region3: #{tpu_custom_call.1} parent=1 // loop_header
      %s17 = sphi 0, %s21
      %p18 = scmp.ge.s32.totalorder %s17, 4
      %s27 = sphi 0, %s29
      %s30 = sphi 0, %s27
      %s31 = sphi 0, %s30
      %s47 = sphi 0, %s31
      %s51 = sphi 0, %s51
      %s53 = sphi 0, %s51
      %s54 = sphi 0, %s53
      %s68 = sphi 0, %s54
      %s72 = sphi 0, %s72
      %s74 = sphi 0, %s72
      %s75 = sphi 0, %s74
      %s89 = sphi 0, %s75
      %s93 = sphi 0, %s93
      %s95 = sphi 0, %s93
      %s96 = sphi 0, %s95
      %s110 = sphi 0, %s96
      %s114 = sphi 0, %s114
      %s116 = sphi 0, %s114
      %s117 = sphi 0, %s116
      %s131 = sphi 0, %s117
      %s135 = sphi 0, %s135
      %s137 = sphi 0, %s135
      %s138 = sphi 0, %s137
      %s152 = sphi 0, %s138
      %s156 = sphi 0, %s156
      %s158 = sphi 0, %s156
      %s159 = sphi 0, %s158
      %s173 = sphi 0, %s159
      %s179 = sphi 0, %s181
      %s182 = sphi 0, %s179
      %s183 = sphi 0, %s182
      %s199 = sphi 0, %s183
    $region4: #{tpu_custom_call.1} parent=1 // loop_header_branch
      %20 = sbr.rel (%p18) target = $region8
    $region5: #{tpu_custom_call.1} parent=1 // loop_body
      %s22 = ssub.s32 %s17, 1
      %s23 = ssub.s32 %s17, 2
      %s24 = sadd.s32 %s17, 1
      %s25 = ssub.s32 %s17, %s24
      %p26 = scmp.eq.s32.totalorder %s25, 0
      %s28 = sadd.s32 %s27, 1
      %s29 = scalar_select %p26, %s27, %s28
      %p32 = pneg %p26
      %p33 = scmp.eq.s32.totalorder %s17, 1
      %p34 = por %p32, %p33
      %p35 = scmp.ne.s32.totalorder %s27, %s30
      %p36 = scmp.eq.s32.totalorder %s17, 0
      %p37 = por %p35, %p36
      %p38 = scmp.ne.s32.totalorder %s27, %s30
      %p39 = scmp.eq.s32.totalorder %s22, 1
      %p40 = por %p38, %p39
      %p41 = scmp.ne.s32.totalorder %s30, %s31
      %p42 = scmp.eq.s32.totalorder %s22, 0
      %p43 = por %p41, %p42
      %p44 = scmp.ne.s32.totalorder %s30, %s31
      %p45 = scmp.eq.s32.totalorder %s23, 1
      %p46 = por %p44, %p45
      %p48 = scmp.ne.s32.totalorder %s31, %s47
      %p49 = scmp.eq.s32.totalorder %s23, 0
      %p50 = por %p48, %p49
      %s52 = sadd.s32 %s51, 1
      %p55 = scmp.eq.s32.totalorder %s17, 1
      %p56 = scmp.ne.s32.totalorder %s51, %s53
      %p57 = scmp.eq.s32.totalorder %s17, 0
      %p58 = por %p56, %p57
      %p59 = scmp.ne.s32.totalorder %s51, %s53
      %p60 = scmp.eq.s32.totalorder %s22, 1
      %p61 = por %p59, %p60
      %p62 = scmp.ne.s32.totalorder %s53, %s54
      %p63 = scmp.eq.s32.totalorder %s22, 0
      %p64 = por %p62, %p63
      %p65 = scmp.ne.s32.totalorder %s53, %s54
      %p66 = scmp.eq.s32.totalorder %s23, 1
      %p67 = por %p65, %p66
      %p69 = scmp.ne.s32.totalorder %s54, %s68
      %p70 = scmp.eq.s32.totalorder %s23, 0
      %p71 = por %p69, %p70
      %s73 = sadd.s32 %s72, 1
      %p76 = scmp.eq.s32.totalorder %s17, 1
      %p77 = scmp.ne.s32.totalorder %s72, %s74
      %p78 = scmp.eq.s32.totalorder %s17, 0
      %p79 = por %p77, %p78
      %p80 = scmp.ne.s32.totalorder %s72, %s74
      %p81 = scmp.eq.s32.totalorder %s22, 1
      %p82 = por %p80, %p81
      %p83 = scmp.ne.s32.totalorder %s74, %s75
      %p84 = scmp.eq.s32.totalorder %s22, 0
      %p85 = por %p83, %p84
      %p86 = scmp.ne.s32.totalorder %s74, %s75
      %p87 = scmp.eq.s32.totalorder %s23, 1
      %p88 = por %p86, %p87
      %p90 = scmp.ne.s32.totalorder %s75, %s89
      %p91 = scmp.eq.s32.totalorder %s23, 0
      %p92 = por %p90, %p91
      %s94 = sadd.s32 %s93, 1
      %p97 = scmp.eq.s32.totalorder %s17, 1
      %p98 = scmp.ne.s32.totalorder %s93, %s95
      %p99 = scmp.eq.s32.totalorder %s17, 0
      %p100 = por %p98, %p99
      %p101 = scmp.ne.s32.totalorder %s93, %s95
      %p102 = scmp.eq.s32.totalorder %s22, 1
      %p103 = por %p101, %p102
      %p104 = scmp.ne.s32.totalorder %s95, %s96
      %p105 = scmp.eq.s32.totalorder %s22, 0
      %p106 = por %p104, %p105
      %p107 = scmp.ne.s32.totalorder %s95, %s96
      %p108 = scmp.eq.s32.totalorder %s23, 1
      %p109 = por %p107, %p108
      %p111 = scmp.ne.s32.totalorder %s96, %s110
      %p112 = scmp.eq.s32.totalorder %s23, 0
      %p113 = por %p111, %p112
      %s115 = sadd.s32 %s114, 1
      %p118 = scmp.eq.s32.totalorder %s17, 1
      %p119 = scmp.ne.s32.totalorder %s114, %s116
      %p120 = scmp.eq.s32.totalorder %s17, 0
      %p121 = por %p119, %p120
      %p122 = scmp.ne.s32.totalorder %s114, %s116
      %p123 = scmp.eq.s32.totalorder %s22, 1
      %p124 = por %p122, %p123
      %p125 = scmp.ne.s32.totalorder %s116, %s117
      %p126 = scmp.eq.s32.totalorder %s22, 0
      %p127 = por %p125, %p126
      %p128 = scmp.ne.s32.totalorder %s116, %s117
      %p129 = scmp.eq.s32.totalorder %s23, 1
      %p130 = por %p128, %p129
      %p132 = scmp.ne.s32.totalorder %s117, %s131
      %p133 = scmp.eq.s32.totalorder %s23, 0
      %p134 = por %p132, %p133
      %s136 = sadd.s32 %s135, 1
      %p139 = scmp.eq.s32.totalorder %s17, 1
      %p140 = scmp.ne.s32.totalorder %s135, %s137
      %p141 = scmp.eq.s32.totalorder %s17, 0
      %p142 = por %p140, %p141
      %p143 = scmp.ne.s32.totalorder %s135, %s137
      %p144 = scmp.eq.s32.totalorder %s22, 1
      %p145 = por %p143, %p144
      %p146 = scmp.ne.s32.totalorder %s137, %s138
      %p147 = scmp.eq.s32.totalorder %s22, 0
      %p148 = por %p146, %p147
      %p149 = scmp.ne.s32.totalorder %s137, %s138
      %p150 = scmp.eq.s32.totalorder %s23, 1
      %p151 = por %p149, %p150
      %p153 = scmp.ne.s32.totalorder %s138, %s152
      %p154 = scmp.eq.s32.totalorder %s23, 0
      %p155 = por %p153, %p154
      %s157 = sadd.s32 %s156, 1
      %p160 = scmp.eq.s32.totalorder %s17, 1
      %p161 = scmp.ne.s32.totalorder %s156, %s158
      %p162 = scmp.eq.s32.totalorder %s17, 0
      %p163 = por %p161, %p162
      %p164 = scmp.ne.s32.totalorder %s156, %s158
      %p165 = scmp.eq.s32.totalorder %s22, 1
      %p166 = por %p164, %p165
      %p167 = scmp.ne.s32.totalorder %s158, %s159
      %p168 = scmp.eq.s32.totalorder %s22, 0
      %p169 = por %p167, %p168
      %p170 = scmp.ne.s32.totalorder %s158, %s159
      %p171 = scmp.eq.s32.totalorder %s23, 1
      %p172 = por %p170, %p171
      %p174 = scmp.ne.s32.totalorder %s159, %s173
      %p175 = scmp.eq.s32.totalorder %s23, 0
      %p176 = por %p174, %p175
      %s177 = ssub.s32 %s17, %s24
      %p178 = scmp.eq.s32.totalorder %s177, 0
      %s180 = sadd.s32 %s179, 1
      %s181 = scalar_select %p178, %s179, %s180
      %p184 = pneg %p178
      %p185 = scmp.eq.s32.totalorder %s17, 1
      %p186 = por %p184, %p185
      %p187 = scmp.ne.s32.totalorder %s179, %s182
      %p188 = scmp.eq.s32.totalorder %s17, 0
      %p189 = por %p187, %p188
      %p190 = scmp.ne.s32.totalorder %s179, %s182
      %p191 = scmp.eq.s32.totalorder %s22, 1
      %p192 = por %p190, %p191
      %p193 = scmp.ne.s32.totalorder %s182, %s183
      %p194 = scmp.eq.s32.totalorder %s22, 0
      %p195 = por %p193, %p194
      %p196 = scmp.ne.s32.totalorder %s182, %s183
      %p197 = scmp.eq.s32.totalorder %s23, 1
      %p198 = por %p196, %p197
      %p200 = scmp.ne.s32.totalorder %s183, %s199
      %p201 = scmp.eq.s32.totalorder %s23, 0
      %p202 = por %p200, %p201
      %p203 = scmp.le.s32.totalorder 1, %s17
      %p204 = scmp.lt.s32.totalorder %s17, 3
      %p205 = pnand %p203, %p204
      %p206 = pneg %p205
      // Predicated region
      $region9: #{tpu_custom_call.1} parent=5 // pred_check
        _
      $region10: #{tpu_custom_call.1} parent=5 // pred_check_branch
        %208 = sbr.rel (%p205) target = $region12
      $region11: #{tpu_custom_call.1} parent=5 // pred_region
        %s209 = ssub.s32 %s17, 1
        // Predicated region
        $region13: #{tpu_custom_call.1} parent=11 // pred_check
          %p210 = pneg %p64
        $region14: #{tpu_custom_call.1} parent=11 // pred_check_branch
          %212 = sbr.rel (%p210) target = $region16
        $region15: #{tpu_custom_call.1} parent=11 // pred_region
          _
        $region16: #{tpu_custom_call.1} parent=11 // pred_fallthru
          _
        // Predicated region
        $region17: #{tpu_custom_call.1} parent=11 // pred_check
          %p213 = pneg %p85
        $region18: #{tpu_custom_call.1} parent=11 // pred_check_branch
          %215 = sbr.rel (%p213) target = $region20
        $region19: #{tpu_custom_call.1} parent=11 // pred_region
          _
        $region20: #{tpu_custom_call.1} parent=11 // pred_fallthru
          _
        // Predicated region
        $region21: #{tpu_custom_call.1} parent=11 // pred_check
          %p216 = pneg %p106
        $region22: #{tpu_custom_call.1} parent=11 // pred_check_branch
          %218 = sbr.rel (%p216) target = $region24
        $region23: #{tpu_custom_call.1} parent=11 // pred_region
          %220 = vsyncadd [#allocation5], 0
          %s221 = sshll.u32 %s3, 4
          %s222 = int_to_ptr.hbm [resolvable:$true] %s221
          %s223 = sshll.u32 [#allocation4], 4
          %s224 = int_to_ptr.vmem [resolvable:$true] %s223
          %229 = dma.hbm_to_vmem [thread:$0]  %s222, 4096, %s224, [#allocation5], 512, 512, 32
        $region24: #{tpu_custom_call.1} parent=11 // pred_fallthru
          _
        // Predicated region
        $region25: #{tpu_custom_call.1} parent=11 // pred_check
          %p230 = pneg %p127
        $region26: #{tpu_custom_call.1} parent=11 // pred_check_branch
          %232 = sbr.rel (%p230) target = $region28
        $region27: #{tpu_custom_call.1} parent=11 // pred_region
          _
        $region28: #{tpu_custom_call.1} parent=11 // pred_fallthru
          _
        // Predicated region
        $region29: #{tpu_custom_call.1} parent=11 // pred_check
          %p233 = pneg %p148
        $region30: #{tpu_custom_call.1} parent=11 // pred_check_branch
          %235 = sbr.rel (%p233) target = $region32
        $region31: #{tpu_custom_call.1} parent=11 // pred_region
          _
        $region32: #{tpu_custom_call.1} parent=11 // pred_fallthru
          _
        // Predicated region
        $region33: #{tpu_custom_call.1} parent=11 // pred_check
          %p236 = pneg %p169
        $region34: #{tpu_custom_call.1} parent=11 // pred_check_branch
          %238 = sbr.rel (%p236) target = $region36
        $region35: #{tpu_custom_call.1} parent=11 // pred_region
          _
        $region36: #{tpu_custom_call.1} parent=11 // pred_fallthru
          _
      $region12: #{tpu_custom_call.1} parent=5 // pred_fallthru
        _
      %p239 = scmp.lt.s32.totalorder %s17, 2
      // Predicated region
      $region37: #{tpu_custom_call.1} parent=5 // pred_check
        %p240 = pneg %p239
      $region38: #{tpu_custom_call.1} parent=5 // pred_check_branch
        %242 = sbr.rel (%p240) target = $region40
      $region39: #{tpu_custom_call.1} parent=5 // pred_region
        // Predicated region
        $region41: #{tpu_custom_call.1} parent=39 // pred_check
          %p243 = pneg %p37
        $region42: #{tpu_custom_call.1} parent=39 // pred_check_branch
          %245 = sbr.rel (%p243) target = $region44
        $region43: #{tpu_custom_call.1} parent=39 // pred_region
          %p246 = scmp.lt.s32.totalorder %s17, 1
          %s247 = scalar_select %p246, %s17, 1
          %s248 = smul.addr %s247, 2
          %s249 = smul.addr %s248, 8
          %s250 = scalar_lea.vmem %s0, %s249
        $region44: #{tpu_custom_call.1} parent=39 // pred_fallthru
          _
      $region40: #{tpu_custom_call.1} parent=5 // pred_fallthru
        _
      %p251 = scmp.le.s32.totalorder 1, %s17
      %p252 = scmp.lt.s32.totalorder %s17, 3
      %p253 = pnand %p251, %p252
      %p254 = pneg %p253
      // Predicated region
      $region45: #{tpu_custom_call.1} parent=5 // pred_check
        _
      $region46: #{tpu_custom_call.1} parent=5 // pred_check_branch
        %256 = sbr.rel (%p253) target = $region48
      $region47: #{tpu_custom_call.1} parent=5 // pred_region
        %s257 = ssub.s32 %s17, 1
        // Predicated region
        $region49: #{tpu_custom_call.1} parent=47 // pred_check
          %p258 = pneg %p106
        $region50: #{tpu_custom_call.1} parent=47 // pred_check_branch
          %260 = sbr.rel (%p258) target = $region52
        $region51: #{tpu_custom_call.1} parent=47 // pred_region
          %262 = dma.done [#allocation5], 4096
        $region52: #{tpu_custom_call.1} parent=47 // pred_fallthru
          _
        %p263 = scmp.lt.s32.totalorder %s22, 1
        %s264 = scalar_select %p263, %s22, 1
        %s265 = smul.addr %s264, 2
        %s266 = smul.addr %s265, 8
        %s267 = scalar_lea.vmem %s0, %s266
        %p268 = pneg %p43
        %p269 = pneg %p40
        %p270 = pneg %p64
        %p271 = pneg %p61
        %p272 = pneg %p85
        %p273 = pneg %p82
        %p274 = pneg %p106
        %p275 = pneg %p103
        %p276 = pneg %p127
        %p277 = pneg %p124
        %p278 = pneg %p148
        %p279 = pneg %p145
        %p280 = pneg %p169
        %p281 = pneg %p166
        %p282 = pneg %p195
        %p283 = pneg %p192
        %s284 = sand.u32 %s182, 1
        %s285 = scalar_lea.sflag [#allocation6], %s284
        %s286 = sand.u32 %s182, 1
        %s287 = smul.addr %s286, 64
        %s288 = scalar_lea.vmem [#allocation7], %s287
        %p289 = scmp.lt.s32.totalorder %s22, 1
        %s290 = scalar_select %p289, %s22, 1
        %s291 = smul.addr %s290, 2
        %s292 = smul.addr %s291, 8
        %s293 = scalar_lea.vmem %s0, %s292
        %v294 = vlaneseq
        %v295 = vand.u32 %v294, 127
        %v296 = vadd.s32 %v295, 128
        %v297 = vshra.s32 %v295, 4
        %v298 = vshra.s32 %v296, 4
        %v299 = vand.u32 %v295, 15
        %v300 = vand.u32 %v296, 15
        %v301 = vld [vmem:[%s293] sm:$0xff]
        %v302 = vld [vmem:[%s293 + $0x8] sm:$0xff]
        %303 = vrot.lane.b32.xlu0 %v301, 17
        %v304 = vpop.permute.xlu0 %303
        %305 = vrot.lane.b32.xlu0 %v302, 17
        %v306 = vpop.permute.xlu0 %305
        %vm307 = vcmp.lt.s32.totalorder %v295, 17
        %v308 = vsel %vm307, %v304, %v306
        %v309 = vsel %vm307, %v306, %v304
        %vm310 = vcmp.ge.s32.totalorder %v297, 1
        %vm311 = vcmp.ge.s32.totalorder %v298, 1
        %vm312 = vcmp.lt.s32.totalorder %v297, 17
        %vm313 = vcmp.lt.s32.totalorder %v298, 17
        %vm314 = vmand %vm310, %vm312
        %vm315 = vmand %vm311, %vm313
        %vm316 = vcmp.ge.s32.totalorder %v299, 1
        %vm317 = vcmp.ge.s32.totalorder %v300, 1
        %vm318 = vmand %vm314, %vm316
        %vm319 = vmand %vm315, %vm317
        %vm320 = vcmp.lt.s32.totalorder %v299, 17
        %vm321 = vcmp.lt.s32.totalorder %v300, 17
        %vm322 = vmand %vm318, %vm320
        %vm323 = vmand %vm319, %vm321
        %v324 = vsel %vm322, %v309, 0.0
        %v325 = vsel %vm323, %v308, 0.0
        %326 = vst [vmem:[#allocation2] sm:$0xff] %v324
        %327 = vst [vmem:[#allocation2 + $0x8] sm:$0xff] %v325
        %328 = vrot.lane.b32.xlu0 %v301, 16
        %v329 = vpop.permute.xlu0 %328
        %330 = vrot.lane.b32.xlu0 %v302, 16
        %v331 = vpop.permute.xlu0 %330
        %vm332 = vcmp.lt.s32.totalorder %v295, 16
        %v333 = vsel %vm332, %v329, %v331
        %v334 = vsel %vm332, %v331, %v329
        %vm335 = vcmp.ge.s32.totalorder %v299, 0
        %vm336 = vcmp.ge.s32.totalorder %v300, 0
        %vm337 = vmand %vm314, %vm335
        %vm338 = vmand %vm315, %vm336
        %vm339 = vcmp.lt.s32.totalorder %v299, 16
        %vm340 = vcmp.lt.s32.totalorder %v300, 16
        %vm341 = vmand %vm337, %vm339
        %vm342 = vmand %vm338, %vm340
        %v343 = vsel %vm341, %v334, 0.0
        %v344 = vsel %vm342, %v333, 0.0
        %345 = vst [vmem:[#allocation2 + $0x10] sm:$0xff] %v343
        %346 = vst [vmem:[#allocation2 + $0x18] sm:$0xff] %v344
        %347 = vrot.lane.b32.xlu0 %v301, 15
        %v348 = vpop.permute.xlu0 %347
        %349 = vrot.lane.b32.xlu0 %v302, 15
        %v350 = vpop.permute.xlu0 %349
        %vm351 = vcmp.lt.s32.totalorder %v295, 15
        %v352 = vsel %vm351, %v348, %v350
        %v353 = vsel %vm351, %v350, %v348
        %vm354 = vcmp.ge.s32.totalorder %v299, 4294967295
        %vm355 = vcmp.ge.s32.totalorder %v300, 4294967295
        %vm356 = vmand %vm314, %vm354
        %vm357 = vmand %vm315, %vm355
        %vm358 = vcmp.lt.s32.totalorder %v299, 15
        %vm359 = vcmp.lt.s32.totalorder %v300, 15
        %vm360 = vmand %vm356, %vm358
        %vm361 = vmand %vm357, %vm359
        %v362 = vsel %vm360, %v353, 0.0
        %v363 = vsel %vm361, %v352, 0.0
        %364 = vst [vmem:[#allocation2 + $0x20] sm:$0xff] %v362
        %365 = vst [vmem:[#allocation2 + $0x28] sm:$0xff] %v363
        %366 = vrot.lane.b32.xlu0 %v301, 1
        %v367 = vpop.permute.xlu0 %366
        %368 = vrot.lane.b32.xlu0 %v302, 1
        %v369 = vpop.permute.xlu0 %368
        %vm370 = vcmp.lt.s32.totalorder %v295, 1
        %v371 = vsel %vm370, %v367, %v369
        %v372 = vsel %vm370, %v369, %v367
        %vm373 = vcmp.ge.s32.totalorder %v297, 0
        %vm374 = vcmp.ge.s32.totalorder %v298, 0
        %vm375 = vcmp.lt.s32.totalorder %v297, 16
        %vm376 = vcmp.lt.s32.totalorder %v298, 16
        %vm377 = vmand %vm373, %vm375
        %vm378 = vmand %vm374, %vm376
        %vm379 = vmand %vm377, %vm316
        %vm380 = vmand %vm378, %vm317
        %vm381 = vmand %vm379, %vm320
        %vm382 = vmand %vm380, %vm321
        %v383 = vsel %vm381, %v372, 0.0
        %v384 = vsel %vm382, %v371, 0.0
        %385 = vst [vmem:[#allocation2 + $0x30] sm:$0xff] %v383
        %386 = vst [vmem:[#allocation2 + $0x38] sm:$0xff] %v384
        %387 = vst [vmem:[#allocation2 + $0x40] sm:$0xff] %v301
        %388 = vst [vmem:[#allocation2 + $0x48] sm:$0xff] %v302
        %389 = vrot.lane.b32.xlu0 %v301, 127
        %v390 = vpop.permute.xlu0 %389
        %391 = vrot.lane.b32.xlu0 %v302, 127
        %v392 = vpop.permute.xlu0 %391
        %vm393 = vcmp.lt.s32.totalorder %v295, 127
        %v394 = vsel %vm393, %v390, %v392
        %v395 = vsel %vm393, %v392, %v390
        %vm396 = vmand %vm377, %vm354
        %vm397 = vmand %vm378, %vm355
        %vm398 = vmand %vm396, %vm358
        %vm399 = vmand %vm397, %vm359
        %v400 = vsel %vm398, %v394, 0.0
        %v401 = vsel %vm399, %v395, 0.0
        %402 = vst [vmem:[#allocation2 + $0x50] sm:$0xff] %v400
        %403 = vst [vmem:[#allocation2 + $0x58] sm:$0xff] %v401
        %404 = vrot.lane.b32.xlu0 %v301, 113
        %v405 = vpop.permute.xlu0 %404
        %406 = vrot.lane.b32.xlu0 %v302, 113
        %v407 = vpop.permute.xlu0 %406
        %vm408 = vcmp.lt.s32.totalorder %v295, 113
        %v409 = vsel %vm408, %v405, %v407
        %v410 = vsel %vm408, %v407, %v405
        %vm411 = vcmp.ge.s32.totalorder %v297, 4294967295
        %vm412 = vcmp.ge.s32.totalorder %v298, 4294967295
        %vm413 = vcmp.lt.s32.totalorder %v297, 15
        %vm414 = vcmp.lt.s32.totalorder %v298, 15
        %vm415 = vmand %vm411, %vm413
        %vm416 = vmand %vm412, %vm414
        %vm417 = vmand %vm415, %vm316
        %vm418 = vmand %vm416, %vm317
        %vm419 = vmand %vm417, %vm320
        %vm420 = vmand %vm418, %vm321
        %v421 = vsel %vm419, %v409, 0.0
        %v422 = vsel %vm420, %v410, 0.0
        %423 = vst [vmem:[#allocation2 + $0x60] sm:$0xff] %v421
        %424 = vst [vmem:[#allocation2 + $0x68] sm:$0xff] %v422
        %425 = vrot.lane.b32.xlu0 %v301, 112
        %v426 = vpop.permute.xlu0 %425
        %427 = vrot.lane.b32.xlu0 %v302, 112
        %v428 = vpop.permute.xlu0 %427
        %vm429 = vcmp.lt.s32.totalorder %v295, 112
        %v430 = vsel %vm429, %v426, %v428
        %v431 = vsel %vm429, %v428, %v426
        %vm432 = vmand %vm415, %vm335
        %vm433 = vmand %vm416, %vm336
        %vm434 = vmand %vm432, %vm339
        %vm435 = vmand %vm433, %vm340
        %v436 = vsel %vm434, %v430, 0.0
        %v437 = vsel %vm435, %v431, 0.0
        %438 = vst [vmem:[#allocation2 + $0x70] sm:$0xff] %v436
        %439 = vst [vmem:[#allocation2 + $0x78] sm:$0xff] %v437
        %440 = vrot.lane.b32.xlu0 %v301, 111
        %v441 = vpop.permute.xlu0 %440
        %442 = vrot.lane.b32.xlu0 %v302, 111
        %v443 = vpop.permute.xlu0 %442
        %vm444 = vcmp.lt.s32.totalorder %v295, 111
        %v445 = vsel %vm444, %v441, %v443
        %v446 = vsel %vm444, %v443, %v441
        %vm447 = vmand %vm415, %vm354
        %vm448 = vmand %vm416, %vm355
        %vm449 = vmand %vm447, %vm358
        %vm450 = vmand %vm448, %vm359
        %v451 = vsel %vm449, %v445, 0.0
        %v452 = vsel %vm450, %v446, 0.0
        %453 = vst [vmem:[#allocation2 + $0x80] sm:$0xff] %v451
        %454 = vst [vmem:[#allocation2 + $0x88] sm:$0xff] %v452
        %v455 = vld [vmem:[%s1] sm:$0xff]
        %v456 = vld [vmem:[%s1 + $0x8] sm:$0xff]
        %v457 = vld [vmem:[#allocation2] sm:$0xff]
        %v458 = vld [vmem:[#allocation2 + $0x8] sm:$0xff]
        %v459 = vld [vmem:[#allocation2 + $0x10] sm:$0xff]
        %v460 = vld [vmem:[#allocation2 + $0x18] sm:$0xff]
        %v461 = vld [vmem:[#allocation2 + $0x20] sm:$0xff]
        %v462 = vld [vmem:[#allocation2 + $0x28] sm:$0xff]
        %v463 = vld [vmem:[#allocation2 + $0x30] sm:$0xff]
        %v464 = vld [vmem:[#allocation2 + $0x38] sm:$0xff]
        %v465 = vld [vmem:[#allocation2 + $0x40] sm:$0xff]
        %v466 = vld [vmem:[#allocation2 + $0x48] sm:$0xff]
        %v467 = vld [vmem:[#allocation2 + $0x50] sm:$0xff]
        %v468 = vld [vmem:[#allocation2 + $0x58] sm:$0xff]
        %v469 = vld [vmem:[#allocation2 + $0x60] sm:$0xff]
        %v470 = vld [vmem:[#allocation2 + $0x68] sm:$0xff]
        %v471 = vld [vmem:[#allocation2 + $0x70] sm:$0xff]
        %v472 = vld [vmem:[#allocation2 + $0x78] sm:$0xff]
        %v473 = vld [vmem:[#allocation2 + $0x80] sm:$0xff]
        %v474 = vld [vmem:[#allocation2 + $0x88] sm:$0xff]
        %v475 = vld [vmem:[%s2] sm:$0xff]
        %v476 = vld [vmem:[%s2 + $0x8] sm:$0xff]
        %478 = vset.pattern.permute.xlu0 0
        %479 = vperm.xlu0 %478, %v475
        %v480 = vpop.permute.xlu0 %479
        %483 = vset.pattern.permute.xlu0 0
        %484 = vperm.xlu0 %483, %v476
        %v485 = vpop.permute.xlu0 %484
        %vm487 = vcmask 588800
        %v489 = vsel %vm487, %v455, 0
        %v492 = vsel %vm487, %v456, 0
        %494 = vmatpush.msra.mxu0 0.0
        %495 = vmatpush.msra.mxu0 0.0
        %496 = vmatpush.msra.mxu0 0.0
        %497 = vmatpush.msra.mxu0 0.0
        %498 = vmatpush.msra.mxu0 0.0
        %499 = vmatpush.msra.mxu0 0.0
        %500 = vmatpush.msra.mxu0 0.0
        %501 = vmatpush.msra.mxu0 %v473
        %502 = vmatpush.msra.mxu0 %v471
        %503 = vmatpush.msra.mxu0 %v469
        %504 = vmatpush.msra.mxu0 %v467
        %505 = vmatpush.msra.mxu0 %v465
        %506 = vmatpush.msra.mxu0 %v463
        %507 = vmatpush.msra.mxu0 %v461
        %508 = vmatpush.msra.mxu0 %v459
        %509 = vmatpush.msra.mxu0 %v457
        %510 = vmatmul.f32.gmra.mxu0 %v489
        %v511 = vpop.f32.mrf.mxu0
        %v512 = vadd.f32 %v480, %v511
        %513 = vmatmul.f32.gmra.mxu0 %v492
        %v514 = vpop.f32.mrf.mxu0
        %v515 = vadd.f32 %v485, %v514
        %516 = vdwg.mxu0
        %517 = vmatpush.msra.mxu0 0.0
        %518 = vmatpush.msra.mxu0 0.0
        %519 = vmatpush.msra.mxu0 0.0
        %520 = vmatpush.msra.mxu0 0.0
        %521 = vmatpush.msra.mxu0 0.0
        %522 = vmatpush.msra.mxu0 0.0
        %523 = vmatpush.msra.mxu0 0.0
        %524 = vmatpush.msra.mxu0 %v474
        %525 = vmatpush.msra.mxu0 %v472
        %526 = vmatpush.msra.mxu0 %v470
        %527 = vmatpush.msra.mxu0 %v468
        %528 = vmatpush.msra.mxu0 %v466
        %529 = vmatpush.msra.mxu0 %v464
        %530 = vmatpush.msra.mxu0 %v462
        %531 = vmatpush.msra.mxu0 %v460
        %532 = vmatpush.msra.mxu0 %v458
        %533 = vmatmul.f32.gmra.mxu0 %v489
        %v534 = vpop.f32.mrf.mxu0
        %v535 = vadd.f32 %v480, %v534
        %536 = vmatmul.f32.gmra.mxu0 %v492
        %v537 = vpop.f32.mrf.mxu0
        %v538 = vadd.f32 %v485, %v537
        %539 = vdwg.mxu0
        %v540 = vmax.f32 %v512, 0.0
        %v541 = vmax.f32 %v535, 0.0
        %v542 = vmax.f32 %v515, 0.0
        %v543 = vmax.f32 %v538, 0.0
        %544 = vst [vmem:[#allocation3] sm:$0xff] %v540
        %545 = vst [vmem:[#allocation3 + $0x8] sm:$0xff] %v541
        %546 = vst [vmem:[#allocation3 + $0x10] sm:$0xff] %v542
        %547 = vst [vmem:[#allocation3 + $0x18] sm:$0xff] %v543
        %548 = vrot.lane.b32.xlu0 %v540, 17
        %v549 = vpop.permute.xlu0 %548
        %550 = vrot.lane.b32.xlu0 %v542, 17
        %v551 = vpop.permute.xlu0 %550
        %552 = vrot.lane.b32.xlu0 %v541, 17
        %v553 = vpop.permute.xlu0 %552
        %554 = vrot.lane.b32.xlu0 %v543, 17
        %v555 = vpop.permute.xlu0 %554
        %v556 = vsel %vm307, %v549, %v553
        %v557 = vsel %vm307, %v551, %v555
        %v558 = vsel %vm307, %v553, %v549
        %v559 = vsel %vm307, %v555, %v551
        %v560 = vsel %vm322, %v558, 0.0
        %v561 = vsel %vm323, %v556, 0.0
        %v562 = vsel %vm322, %v559, 0.0
        %v563 = vsel %vm323, %v557, 0.0
        %564 = vst [vmem:[#allocation3 + $0x20] sm:$0xff] %v560
        %565 = vst [vmem:[#allocation3 + $0x28] sm:$0xff] %v561
        %566 = vst [vmem:[#allocation3 + $0x30] sm:$0xff] %v562
        %567 = vst [vmem:[#allocation3 + $0x38] sm:$0xff] %v563
        %568 = vrot.lane.b32.xlu0 %v540, 16
        %v569 = vpop.permute.xlu0 %568
        %570 = vrot.lane.b32.xlu0 %v542, 16
        %v571 = vpop.permute.xlu0 %570
        %572 = vrot.lane.b32.xlu0 %v541, 16
        %v573 = vpop.permute.xlu0 %572
        %574 = vrot.lane.b32.xlu0 %v543, 16
        %v575 = vpop.permute.xlu0 %574
        %v576 = vsel %vm332, %v569, %v573
        %v577 = vsel %vm332, %v571, %v575
        %v578 = vsel %vm332, %v573, %v569
        %v579 = vsel %vm332, %v575, %v571
        %v580 = vsel %vm341, %v578, 0.0
        %v581 = vsel %vm342, %v576, 0.0
        %v582 = vsel %vm341, %v579, 0.0
        %v583 = vsel %vm342, %v577, 0.0
        %584 = vst [vmem:[#allocation3 + $0x40] sm:$0xff] %v580
        %585 = vst [vmem:[#allocation3 + $0x48] sm:$0xff] %v581
        %586 = vst [vmem:[#allocation3 + $0x50] sm:$0xff] %v582
        %587 = vst [vmem:[#allocation3 + $0x58] sm:$0xff] %v583
        %588 = vrot.lane.b32.xlu0 %v540, 15
        %v589 = vpop.permute.xlu0 %588
        %590 = vrot.lane.b32.xlu0 %v542, 15
        %v591 = vpop.permute.xlu0 %590
        %592 = vrot.lane.b32.xlu0 %v541, 15
        %v593 = vpop.permute.xlu0 %592
        %594 = vrot.lane.b32.xlu0 %v543, 15
        %v595 = vpop.permute.xlu0 %594
        %v596 = vsel %vm351, %v589, %v593
        %v597 = vsel %vm351, %v591, %v595
        %v598 = vsel %vm351, %v593, %v589
        %v599 = vsel %vm351, %v595, %v591
        %v600 = vsel %vm360, %v598, 0.0
        %v601 = vsel %vm361, %v596, 0.0
        %v602 = vsel %vm360, %v599, 0.0
        %v603 = vsel %vm361, %v597, 0.0
        %604 = vst [vmem:[#allocation3 + $0x60] sm:$0xff] %v600
        %605 = vst [vmem:[#allocation3 + $0x68] sm:$0xff] %v601
        %606 = vst [vmem:[#allocation3 + $0x70] sm:$0xff] %v602
        %607 = vst [vmem:[#allocation3 + $0x78] sm:$0xff] %v603
        %608 = vrot.lane.b32.xlu0 %v540, 1
        %v609 = vpop.permute.xlu0 %608
        %610 = vrot.lane.b32.xlu0 %v542, 1
        %v611 = vpop.permute.xlu0 %610
        %612 = vrot.lane.b32.xlu0 %v541, 1
        %v613 = vpop.permute.xlu0 %612
        %614 = vrot.lane.b32.xlu0 %v543, 1
        %v615 = vpop.permute.xlu0 %614
        %v616 = vsel %vm370, %v609, %v613
        %v617 = vsel %vm370, %v611, %v615
        %v618 = vsel %vm370, %v613, %v609
        %v619 = vsel %vm370, %v615, %v611
        %v620 = vsel %vm381, %v618, 0.0
        %v621 = vsel %vm382, %v616, 0.0
        %v622 = vsel %vm381, %v619, 0.0
        %v623 = vsel %vm382, %v617, 0.0
        %624 = vst [vmem:[#allocation3 + $0x80] sm:$0xff] %v620
        %625 = vst [vmem:[#allocation3 + $0x88] sm:$0xff] %v621
        %626 = vst [vmem:[#allocation3 + $0x90] sm:$0xff] %v622
        %627 = vst [vmem:[#allocation3 + $0x98] sm:$0xff] %v623
        %628 = vrot.lane.b32.xlu0 %v540, 127
        %v629 = vpop.permute.xlu0 %628
        %630 = vrot.lane.b32.xlu0 %v542, 127
        %v631 = vpop.permute.xlu0 %630
        %632 = vrot.lane.b32.xlu0 %v541, 127
        %v633 = vpop.permute.xlu0 %632
        %634 = vrot.lane.b32.xlu0 %v543, 127
        %v635 = vpop.permute.xlu0 %634
        %v636 = vsel %vm393, %v629, %v633
        %v637 = vsel %vm393, %v631, %v635
        %v638 = vsel %vm393, %v633, %v629
        %v639 = vsel %vm393, %v635, %v631
        %v640 = vsel %vm398, %v636, 0.0
        %v641 = vsel %vm399, %v638, 0.0
        %v642 = vsel %vm398, %v637, 0.0
        %v643 = vsel %vm399, %v639, 0.0
        %644 = vst [vmem:[#allocation3 + $0xa0] sm:$0xff] %v640
        %645 = vst [vmem:[#allocation3 + $0xa8] sm:$0xff] %v641
        %646 = vst [vmem:[#allocation3 + $0xb0] sm:$0xff] %v642
        %647 = vst [vmem:[#allocation3 + $0xb8] sm:$0xff] %v643
        %648 = vrot.lane.b32.xlu0 %v540, 113
        %v649 = vpop.permute.xlu0 %648
        %650 = vrot.lane.b32.xlu0 %v542, 113
        %v651 = vpop.permute.xlu0 %650
        %652 = vrot.lane.b32.xlu0 %v541, 113
        %v653 = vpop.permute.xlu0 %652
        %654 = vrot.lane.b32.xlu0 %v543, 113
        %v655 = vpop.permute.xlu0 %654
        %v656 = vsel %vm408, %v649, %v653
        %v657 = vsel %vm408, %v651, %v655
        %v658 = vsel %vm408, %v653, %v649
        %v659 = vsel %vm408, %v655, %v651
        %v660 = vsel %vm419, %v656, 0.0
        %v661 = vsel %vm420, %v658, 0.0
        %v662 = vsel %vm419, %v657, 0.0
        %v663 = vsel %vm420, %v659, 0.0
        %664 = vst [vmem:[#allocation3 + $0xc0] sm:$0xff] %v660
        %665 = vst [vmem:[#allocation3 + $0xc8] sm:$0xff] %v661
        %666 = vst [vmem:[#allocation3 + $0xd0] sm:$0xff] %v662
        %667 = vst [vmem:[#allocation3 + $0xd8] sm:$0xff] %v663
        %668 = vrot.lane.b32.xlu0 %v540, 112
        %v669 = vpop.permute.xlu0 %668
        %670 = vrot.lane.b32.xlu0 %v542, 112
        %v671 = vpop.permute.xlu0 %670
        %672 = vrot.lane.b32.xlu0 %v541, 112
        %v673 = vpop.permute.xlu0 %672
        %674 = vrot.lane.b32.xlu0 %v543, 112
        %v675 = vpop.permute.xlu0 %674
        %v676 = vsel %vm429, %v669, %v673
        %v677 = vsel %vm429, %v671, %v675
        %v678 = vsel %vm429, %v673, %v669
        %v679 = vsel %vm429, %v675, %v671
        %v680 = vsel %vm434, %v676, 0.0
        %v681 = vsel %vm435, %v678, 0.0
        %v682 = vsel %vm434, %v677, 0.0
        %v683 = vsel %vm435, %v679, 0.0
        %684 = vst [vmem:[#allocation3 + $0xe0] sm:$0xff] %v680
        %685 = vst [vmem:[#allocation3 + $0xe8] sm:$0xff] %v681
        %686 = vst [vmem:[#allocation3 + $0xf0] sm:$0xff] %v682
        %687 = vst [vmem:[#allocation3 + $0xf8] sm:$0xff] %v683
        %688 = vrot.lane.b32.xlu0 %v540, 111
        %v689 = vpop.permute.xlu0 %688
        %690 = vrot.lane.b32.xlu0 %v542, 111
        %v691 = vpop.permute.xlu0 %690
        %692 = vrot.lane.b32.xlu0 %v541, 111
        %v693 = vpop.permute.xlu0 %692
        %694 = vrot.lane.b32.xlu0 %v543, 111
        %v695 = vpop.permute.xlu0 %694
        %v696 = vsel %vm444, %v689, %v693
        %v697 = vsel %vm444, %v691, %v695
        %v698 = vsel %vm444, %v693, %v689
        %v699 = vsel %vm444, %v695, %v691
        %v700 = vsel %vm449, %v696, 0.0
        %v701 = vsel %vm450, %v698, 0.0
        %v702 = vsel %vm449, %v697, 0.0
        %v703 = vsel %vm450, %v699, 0.0
        %704 = vst [vmem:[#allocation3 + $0x100] sm:$0xff] %v700
        %705 = vst [vmem:[#allocation3 + $0x108] sm:$0xff] %v701
        %706 = vst [vmem:[#allocation3 + $0x110] sm:$0xff] %v702
        %707 = vst [vmem:[#allocation3 + $0x118] sm:$0xff] %v703
        %708 = vrot.lane.b32.xlu0 %v540, 34
        %v709 = vpop.permute.xlu0 %708
        %710 = vrot.lane.b32.xlu0 %v542, 34
        %v711 = vpop.permute.xlu0 %710
        %712 = vrot.lane.b32.xlu0 %v541, 34
        %v713 = vpop.permute.xlu0 %712
        %714 = vrot.lane.b32.xlu0 %v543, 34
        %v715 = vpop.permute.xlu0 %714
        %vm716 = vcmp.lt.s32.totalorder %v295, 34
        %v717 = vsel %vm716, %v709, %v713
        %v718 = vsel %vm716, %v711, %v715
        %v719 = vsel %vm716, %v713, %v709
        %v720 = vsel %vm716, %v715, %v711
        %vm721 = vcmp.ge.s32.totalorder %v297, 2
        %vm722 = vcmp.ge.s32.totalorder %v298, 2
        %vm723 = vcmp.lt.s32.totalorder %v297, 18
        %vm724 = vcmp.lt.s32.totalorder %v298, 18
        %vm725 = vmand %vm721, %vm723
        %vm726 = vmand %vm722, %vm724
        %vm727 = vcmp.ge.s32.totalorder %v299, 2
        %vm728 = vcmp.ge.s32.totalorder %v300, 2
        %vm729 = vmand %vm725, %vm727
        %vm730 = vmand %vm726, %vm728
        %vm731 = vcmp.lt.s32.totalorder %v299, 18
        %vm732 = vcmp.lt.s32.totalorder %v300, 18
        %vm733 = vmand %vm729, %vm731
        %vm734 = vmand %vm730, %vm732
        %v735 = vsel %vm733, %v719, 0.0
        %v736 = vsel %vm734, %v717, 0.0
        %v737 = vsel %vm733, %v720, 0.0
        %v738 = vsel %vm734, %v718, 0.0
        %739 = vst [vmem:[#allocation3 + $0x120] sm:$0xff] %v735
        %740 = vst [vmem:[#allocation3 + $0x128] sm:$0xff] %v736
        %741 = vst [vmem:[#allocation3 + $0x130] sm:$0xff] %v737
        %742 = vst [vmem:[#allocation3 + $0x138] sm:$0xff] %v738
        %743 = vrot.lane.b32.xlu0 %v540, 32
        %v744 = vpop.permute.xlu0 %743
        %745 = vrot.lane.b32.xlu0 %v542, 32
        %v746 = vpop.permute.xlu0 %745
        %747 = vrot.lane.b32.xlu0 %v541, 32
        %v748 = vpop.permute.xlu0 %747
        %749 = vrot.lane.b32.xlu0 %v543, 32
        %v750 = vpop.permute.xlu0 %749
        %vm751 = vcmp.lt.s32.totalorder %v295, 32
        %v752 = vsel %vm751, %v744, %v748
        %v753 = vsel %vm751, %v746, %v750
        %v754 = vsel %vm751, %v748, %v744
        %v755 = vsel %vm751, %v750, %v746
        %vm756 = vmand %vm725, %vm335
        %vm757 = vmand %vm726, %vm336
        %vm758 = vmand %vm756, %vm339
        %vm759 = vmand %vm757, %vm340
        %v760 = vsel %vm758, %v754, 0.0
        %v761 = vsel %vm759, %v752, 0.0
        %v762 = vsel %vm758, %v755, 0.0
        %v763 = vsel %vm759, %v753, 0.0
        %764 = vst [vmem:[#allocation3 + $0x140] sm:$0xff] %v760
        %765 = vst [vmem:[#allocation3 + $0x148] sm:$0xff] %v761
        %766 = vst [vmem:[#allocation3 + $0x150] sm:$0xff] %v762
        %767 = vst [vmem:[#allocation3 + $0x158] sm:$0xff] %v763
        %768 = vrot.lane.b32.xlu0 %v540, 30
        %v769 = vpop.permute.xlu0 %768
        %770 = vrot.lane.b32.xlu0 %v542, 30
        %v771 = vpop.permute.xlu0 %770
        %772 = vrot.lane.b32.xlu0 %v541, 30
        %v773 = vpop.permute.xlu0 %772
        %774 = vrot.lane.b32.xlu0 %v543, 30
        %v775 = vpop.permute.xlu0 %774
        %vm776 = vcmp.lt.s32.totalorder %v295, 30
        %v777 = vsel %vm776, %v769, %v773
        %v778 = vsel %vm776, %v771, %v775
        %v779 = vsel %vm776, %v773, %v769
        %v780 = vsel %vm776, %v775, %v771
        %vm781 = vcmp.ge.s32.totalorder %v299, 4294967294
        %vm782 = vcmp.ge.s32.totalorder %v300, 4294967294
        %vm783 = vmand %vm725, %vm781
        %vm784 = vmand %vm726, %vm782
        %vm785 = vcmp.lt.s32.totalorder %v299, 14
        %vm786 = vcmp.lt.s32.totalorder %v300, 14
        %vm787 = vmand %vm783, %vm785
        %vm788 = vmand %vm784, %vm786
        %v789 = vsel %vm787, %v779, 0.0
        %v790 = vsel %vm788, %v777, 0.0
        %v791 = vsel %vm787, %v780, 0.0
        %v792 = vsel %vm788, %v778, 0.0
        %793 = vst [vmem:[#allocation3 + $0x160] sm:$0xff] %v789
        %794 = vst [vmem:[#allocation3 + $0x168] sm:$0xff] %v790
        %795 = vst [vmem:[#allocation3 + $0x170] sm:$0xff] %v791
        %796 = vst [vmem:[#allocation3 + $0x178] sm:$0xff] %v792
        %797 = vrot.lane.b32.xlu0 %v540, 2
        %v798 = vpop.permute.xlu0 %797
        %799 = vrot.lane.b32.xlu0 %v542, 2
        %v800 = vpop.permute.xlu0 %799
        %801 = vrot.lane.b32.xlu0 %v541, 2
        %v802 = vpop.permute.xlu0 %801
        %803 = vrot.lane.b32.xlu0 %v543, 2
        %v804 = vpop.permute.xlu0 %803
        %vm805 = vcmp.lt.s32.totalorder %v295, 2
        %v806 = vsel %vm805, %v798, %v802
        %v807 = vsel %vm805, %v800, %v804
        %v808 = vsel %vm805, %v802, %v798
        %v809 = vsel %vm805, %v804, %v800
        %vm810 = vmand %vm377, %vm727
        %vm811 = vmand %vm378, %vm728
        %vm812 = vmand %vm810, %vm731
        %vm813 = vmand %vm811, %vm732
        %v814 = vsel %vm812, %v808, 0.0
        %v815 = vsel %vm813, %v806, 0.0
        %v816 = vsel %vm812, %v809, 0.0
        %v817 = vsel %vm813, %v807, 0.0
        %818 = vst [vmem:[#allocation3 + $0x180] sm:$0xff] %v814
        %819 = vst [vmem:[#allocation3 + $0x188] sm:$0xff] %v815
        %820 = vst [vmem:[#allocation3 + $0x190] sm:$0xff] %v816
        %821 = vst [vmem:[#allocation3 + $0x198] sm:$0xff] %v817
        %822 = vrot.lane.b32.xlu0 %v540, 126
        %v823 = vpop.permute.xlu0 %822
        %824 = vrot.lane.b32.xlu0 %v542, 126
        %v825 = vpop.permute.xlu0 %824
        %826 = vrot.lane.b32.xlu0 %v541, 126
        %v827 = vpop.permute.xlu0 %826
        %828 = vrot.lane.b32.xlu0 %v543, 126
        %v829 = vpop.permute.xlu0 %828
        %vm830 = vcmp.lt.s32.totalorder %v295, 126
        %v831 = vsel %vm830, %v823, %v827
        %v832 = vsel %vm830, %v825, %v829
        %v833 = vsel %vm830, %v827, %v823
        %v834 = vsel %vm830, %v829, %v825
        %vm835 = vmand %vm377, %vm781
        %vm836 = vmand %vm378, %vm782
        %vm837 = vmand %vm835, %vm785
        %vm838 = vmand %vm836, %vm786
        %v839 = vsel %vm837, %v831, 0.0
        %v840 = vsel %vm838, %v833, 0.0
        %v841 = vsel %vm837, %v832, 0.0
        %v842 = vsel %vm838, %v834, 0.0
        %843 = vst [vmem:[#allocation3 + $0x1a0] sm:$0xff] %v839
        %844 = vst [vmem:[#allocation3 + $0x1a8] sm:$0xff] %v840
        %845 = vst [vmem:[#allocation3 + $0x1b0] sm:$0xff] %v841
        %846 = vst [vmem:[#allocation3 + $0x1b8] sm:$0xff] %v842
        %847 = vrot.lane.b32.xlu0 %v540, 98
        %v848 = vpop.permute.xlu0 %847
        %849 = vrot.lane.b32.xlu0 %v542, 98
        %v850 = vpop.permute.xlu0 %849
        %851 = vrot.lane.b32.xlu0 %v541, 98
        %v852 = vpop.permute.xlu0 %851
        %853 = vrot.lane.b32.xlu0 %v543, 98
        %v854 = vpop.permute.xlu0 %853
        %vm855 = vcmp.lt.s32.totalorder %v295, 98
        %v856 = vsel %vm855, %v848, %v852
        %v857 = vsel %vm855, %v850, %v854
        %v858 = vsel %vm855, %v852, %v848
        %v859 = vsel %vm855, %v854, %v850
        %vm860 = vcmp.ge.s32.totalorder %v297, 4294967294
        %vm861 = vcmp.ge.s32.totalorder %v298, 4294967294
        %vm862 = vcmp.lt.s32.totalorder %v297, 14
        %vm863 = vcmp.lt.s32.totalorder %v298, 14
        %vm864 = vmand %vm860, %vm862
        %vm865 = vmand %vm861, %vm863
        %vm866 = vmand %vm864, %vm727
        %vm867 = vmand %vm865, %vm728
        %vm868 = vmand %vm866, %vm731
        %vm869 = vmand %vm867, %vm732
        %v870 = vsel %vm868, %v856, 0.0
        %v871 = vsel %vm869, %v858, 0.0
        %v872 = vsel %vm868, %v857, 0.0
        %v873 = vsel %vm869, %v859, 0.0
        %874 = vst [vmem:[#allocation3 + $0x1c0] sm:$0xff] %v870
        %875 = vst [vmem:[#allocation3 + $0x1c8] sm:$0xff] %v871
        %876 = vst [vmem:[#allocation3 + $0x1d0] sm:$0xff] %v872
        %877 = vst [vmem:[#allocation3 + $0x1d8] sm:$0xff] %v873
        %878 = vrot.lane.b32.xlu0 %v540, 96
        %v879 = vpop.permute.xlu0 %878
        %880 = vrot.lane.b32.xlu0 %v542, 96
        %v881 = vpop.permute.xlu0 %880
        %882 = vrot.lane.b32.xlu0 %v541, 96
        %v883 = vpop.permute.xlu0 %882
        %884 = vrot.lane.b32.xlu0 %v543, 96
        %v885 = vpop.permute.xlu0 %884
        %vm886 = vcmp.lt.s32.totalorder %v295, 96
        %v887 = vsel %vm886, %v879, %v883
        %v888 = vsel %vm886, %v881, %v885
        %v889 = vsel %vm886, %v883, %v879
        %v890 = vsel %vm886, %v885, %v881
        %vm891 = vmand %vm864, %vm335
        %vm892 = vmand %vm865, %vm336
        %vm893 = vmand %vm891, %vm339
        %vm894 = vmand %vm892, %vm340
        %v895 = vsel %vm893, %v887, 0.0
        %v896 = vsel %vm894, %v889, 0.0
        %v897 = vsel %vm893, %v888, 0.0
        %v898 = vsel %vm894, %v890, 0.0
        %899 = vst [vmem:[#allocation3 + $0x1e0] sm:$0xff] %v895
        %900 = vst [vmem:[#allocation3 + $0x1e8] sm:$0xff] %v896
        %901 = vst [vmem:[#allocation3 + $0x1f0] sm:$0xff] %v897
        %902 = vst [vmem:[#allocation3 + $0x1f8] sm:$0xff] %v898
        %903 = vrot.lane.b32.xlu0 %v540, 94
        %v904 = vpop.permute.xlu0 %903
        %905 = vrot.lane.b32.xlu0 %v542, 94
        %v906 = vpop.permute.xlu0 %905
        %907 = vrot.lane.b32.xlu0 %v541, 94
        %v908 = vpop.permute.xlu0 %907
        %909 = vrot.lane.b32.xlu0 %v543, 94
        %v910 = vpop.permute.xlu0 %909
        %vm911 = vcmp.lt.s32.totalorder %v295, 94
        %v912 = vsel %vm911, %v904, %v908
        %v913 = vsel %vm911, %v906, %v910
        %v914 = vsel %vm911, %v908, %v904
        %v915 = vsel %vm911, %v910, %v906
        %vm916 = vmand %vm864, %vm781
        %vm917 = vmand %vm865, %vm782
        %vm918 = vmand %vm916, %vm785
        %vm919 = vmand %vm917, %vm786
        %v920 = vsel %vm918, %v912, 0.0
        %v921 = vsel %vm919, %v914, 0.0
        %v922 = vsel %vm918, %v913, 0.0
        %v923 = vsel %vm919, %v915, 0.0
        %924 = vst [vmem:[#allocation3 + $0x200] sm:$0xff] %v920
        %925 = vst [vmem:[#allocation3 + $0x208] sm:$0xff] %v921
        %926 = vst [vmem:[#allocation3 + $0x210] sm:$0xff] %v922
        %927 = vst [vmem:[#allocation3 + $0x218] sm:$0xff] %v923
        %928 = vrot.lane.b32.xlu0 %v540, 51
        %v929 = vpop.permute.xlu0 %928
        %930 = vrot.lane.b32.xlu0 %v542, 51
        %v931 = vpop.permute.xlu0 %930
        %932 = vrot.lane.b32.xlu0 %v541, 51
        %v933 = vpop.permute.xlu0 %932
        %934 = vrot.lane.b32.xlu0 %v543, 51
        %v935 = vpop.permute.xlu0 %934
        %vm936 = vcmp.lt.s32.totalorder %v295, 51
        %v937 = vsel %vm936, %v929, %v933
        %v938 = vsel %vm936, %v931, %v935
        %v939 = vsel %vm936, %v933, %v929
        %v940 = vsel %vm936, %v935, %v931
        %vm941 = vcmp.ge.s32.totalorder %v297, 3
        %vm942 = vcmp.ge.s32.totalorder %v298, 3
        %vm943 = vcmp.lt.s32.totalorder %v297, 19
        %vm944 = vcmp.lt.s32.totalorder %v298, 19
        %vm945 = vmand %vm941, %vm943
        %vm946 = vmand %vm942, %vm944
        %vm947 = vcmp.ge.s32.totalorder %v299, 3
        %vm948 = vcmp.ge.s32.totalorder %v300, 3
        %vm949 = vmand %vm945, %vm947
        %vm950 = vmand %vm946, %vm948
        %vm951 = vcmp.lt.s32.totalorder %v299, 19
        %vm952 = vcmp.lt.s32.totalorder %v300, 19
        %vm953 = vmand %vm949, %vm951
        %vm954 = vmand %vm950, %vm952
        %v955 = vsel %vm953, %v939, 0.0
        %v956 = vsel %vm954, %v937, 0.0
        %v957 = vsel %vm953, %v940, 0.0
        %v958 = vsel %vm954, %v938, 0.0
        %959 = vst [vmem:[#allocation3 + $0x220] sm:$0xff] %v955
        %960 = vst [vmem:[#allocation3 + $0x228] sm:$0xff] %v956
        %961 = vst [vmem:[#allocation3 + $0x230] sm:$0xff] %v957
        %962 = vst [vmem:[#allocation3 + $0x238] sm:$0xff] %v958
        %963 = vrot.lane.b32.xlu0 %v540, 48
        %v964 = vpop.permute.xlu0 %963
        %965 = vrot.lane.b32.xlu0 %v542, 48
        %v966 = vpop.permute.xlu0 %965
        %967 = vrot.lane.b32.xlu0 %v541, 48
        %v968 = vpop.permute.xlu0 %967
        %969 = vrot.lane.b32.xlu0 %v543, 48
        %v970 = vpop.permute.xlu0 %969
        %vm971 = vcmp.lt.s32.totalorder %v295, 48
        %v972 = vsel %vm971, %v964, %v968
        %v973 = vsel %vm971, %v966, %v970
        %v974 = vsel %vm971, %v968, %v964
        %v975 = vsel %vm971, %v970, %v966
        %vm976 = vmand %vm945, %vm335
        %vm977 = vmand %vm946, %vm336
        %vm978 = vmand %vm976, %vm339
        %vm979 = vmand %vm977, %vm340
        %v980 = vsel %vm978, %v974, 0.0
        %v981 = vsel %vm979, %v972, 0.0
        %v982 = vsel %vm978, %v975, 0.0
        %v983 = vsel %vm979, %v973, 0.0
        %984 = vst [vmem:[#allocation3 + $0x240] sm:$0xff] %v980
        %985 = vst [vmem:[#allocation3 + $0x248] sm:$0xff] %v981
        %986 = vst [vmem:[#allocation3 + $0x250] sm:$0xff] %v982
        %987 = vst [vmem:[#allocation3 + $0x258] sm:$0xff] %v983
        %988 = vrot.lane.b32.xlu0 %v540, 45
        %v989 = vpop.permute.xlu0 %988
        %990 = vrot.lane.b32.xlu0 %v542, 45
        %v991 = vpop.permute.xlu0 %990
        %992 = vrot.lane.b32.xlu0 %v541, 45
        %v993 = vpop.permute.xlu0 %992
        %994 = vrot.lane.b32.xlu0 %v543, 45
        %v995 = vpop.permute.xlu0 %994
        %vm996 = vcmp.lt.s32.totalorder %v295, 45
        %v997 = vsel %vm996, %v989, %v993
        %v998 = vsel %vm996, %v991, %v995
        %v999 = vsel %vm996, %v993, %v989
        %v1000 = vsel %vm996, %v995, %v991
        %vm1001 = vcmp.ge.s32.totalorder %v299, 4294967293
        %vm1002 = vcmp.ge.s32.totalorder %v300, 4294967293
        %vm1003 = vmand %vm945, %vm1001
        %vm1004 = vmand %vm946, %vm1002
        %vm1005 = vcmp.lt.s32.totalorder %v299, 13
        %vm1006 = vcmp.lt.s32.totalorder %v300, 13
        %vm1007 = vmand %vm1003, %vm1005
        %vm1008 = vmand %vm1004, %vm1006
        %v1009 = vsel %vm1007, %v999, 0.0
        %v1010 = vsel %vm1008, %v997, 0.0
        %v1011 = vsel %vm1007, %v1000, 0.0
        %v1012 = vsel %vm1008, %v998, 0.0
        %1013 = vst [vmem:[#allocation3 + $0x260] sm:$0xff] %v1009
        %1014 = vst [vmem:[#allocation3 + $0x268] sm:$0xff] %v1010
        %1015 = vst [vmem:[#allocation3 + $0x270] sm:$0xff] %v1011
        %1016 = vst [vmem:[#allocation3 + $0x278] sm:$0xff] %v1012
        %1017 = vrot.lane.b32.xlu0 %v540, 3
        %v1018 = vpop.permute.xlu0 %1017
        %1019 = vrot.lane.b32.xlu0 %v542, 3
        %v1020 = vpop.permute.xlu0 %1019
        %1021 = vrot.lane.b32.xlu0 %v541, 3
        %v1022 = vpop.permute.xlu0 %1021
        %1023 = vrot.lane.b32.xlu0 %v543, 3
        %v1024 = vpop.permute.xlu0 %1023
        %vm1025 = vcmp.lt.s32.totalorder %v295, 3
        %v1026 = vsel %vm1025, %v1018, %v1022
        %v1027 = vsel %vm1025, %v1020, %v1024
        %v1028 = vsel %vm1025, %v1022, %v1018
        %v1029 = vsel %vm1025, %v1024, %v1020
        %vm1030 = vmand %vm377, %vm947
        %vm1031 = vmand %vm378, %vm948
        %vm1032 = vmand %vm1030, %vm951
        %vm1033 = vmand %vm1031, %vm952
        %v1034 = vsel %vm1032, %v1028, 0.0
        %v1035 = vsel %vm1033, %v1026, 0.0
        %v1036 = vsel %vm1032, %v1029, 0.0
        %v1037 = vsel %vm1033, %v1027, 0.0
        %1038 = vst [vmem:[#allocation3 + $0x280] sm:$0xff] %v1034
        %1039 = vst [vmem:[#allocation3 + $0x288] sm:$0xff] %v1035
        %1040 = vst [vmem:[#allocation3 + $0x290] sm:$0xff] %v1036
        %1041 = vst [vmem:[#allocation3 + $0x298] sm:$0xff] %v1037
        %1042 = vrot.lane.b32.xlu0 %v540, 125
        %v1043 = vpop.permute.xlu0 %1042
        %1044 = vrot.lane.b32.xlu0 %v542, 125
        %v1045 = vpop.permute.xlu0 %1044
        %1046 = vrot.lane.b32.xlu0 %v541, 125
        %v1047 = vpop.permute.xlu0 %1046
        %1048 = vrot.lane.b32.xlu0 %v543, 125
        %v1049 = vpop.permute.xlu0 %1048
        %vm1050 = vcmp.lt.s32.totalorder %v295, 125
        %v1051 = vsel %vm1050, %v1043, %v1047
        %v1052 = vsel %vm1050, %v1045, %v1049
        %v1053 = vsel %vm1050, %v1047, %v1043
        %v1054 = vsel %vm1050, %v1049, %v1045
        %vm1055 = vmand %vm377, %vm1001
        %vm1056 = vmand %vm378, %vm1002
        %vm1057 = vmand %vm1055, %vm1005
        %vm1058 = vmand %vm1056, %vm1006
        %v1059 = vsel %vm1057, %v1051, 0.0
        %v1060 = vsel %vm1058, %v1053, 0.0
        %v1061 = vsel %vm1057, %v1052, 0.0
        %v1062 = vsel %vm1058, %v1054, 0.0
        %1063 = vst [vmem:[#allocation3 + $0x2a0] sm:$0xff] %v1059
        %1064 = vst [vmem:[#allocation3 + $0x2a8] sm:$0xff] %v1060
        %1065 = vst [vmem:[#allocation3 + $0x2b0] sm:$0xff] %v1061
        %1066 = vst [vmem:[#allocation3 + $0x2b8] sm:$0xff] %v1062
        %1067 = vrot.lane.b32.xlu0 %v540, 83
        %v1068 = vpop.permute.xlu0 %1067
        %1069 = vrot.lane.b32.xlu0 %v542, 83
        %v1070 = vpop.permute.xlu0 %1069
        %1071 = vrot.lane.b32.xlu0 %v541, 83
        %v1072 = vpop.permute.xlu0 %1071
        %1073 = vrot.lane.b32.xlu0 %v543, 83
        %v1074 = vpop.permute.xlu0 %1073
        %vm1075 = vcmp.lt.s32.totalorder %v295, 83
        %v1076 = vsel %vm1075, %v1068, %v1072
        %v1077 = vsel %vm1075, %v1070, %v1074
        %v1078 = vsel %vm1075, %v1072, %v1068
        %v1079 = vsel %vm1075, %v1074, %v1070
        %vm1080 = vcmp.ge.s32.totalorder %v297, 4294967293
        %vm1081 = vcmp.ge.s32.totalorder %v298, 4294967293
        %vm1082 = vcmp.lt.s32.totalorder %v297, 13
        %vm1083 = vcmp.lt.s32.totalorder %v298, 13
        %vm1084 = vmand %vm1080, %vm1082
        %vm1085 = vmand %vm1081, %vm1083
        %vm1086 = vmand %vm1084, %vm947
        %vm1087 = vmand %vm1085, %vm948
        %vm1088 = vmand %vm1086, %vm951
        %vm1089 = vmand %vm1087, %vm952
        %v1090 = vsel %vm1088, %v1076, 0.0
        %v1091 = vsel %vm1089, %v1078, 0.0
        %v1092 = vsel %vm1088, %v1077, 0.0
        %v1093 = vsel %vm1089, %v1079, 0.0
        %1094 = vst [vmem:[#allocation3 + $0x2c0] sm:$0xff] %v1090
        %1095 = vst [vmem:[#allocation3 + $0x2c8] sm:$0xff] %v1091
        %1096 = vst [vmem:[#allocation3 + $0x2d0] sm:$0xff] %v1092
        %1097 = vst [vmem:[#allocation3 + $0x2d8] sm:$0xff] %v1093
        %1098 = vrot.lane.b32.xlu0 %v540, 80
        %v1099 = vpop.permute.xlu0 %1098
        %1100 = vrot.lane.b32.xlu0 %v542, 80
        %v1101 = vpop.permute.xlu0 %1100
        %1102 = vrot.lane.b32.xlu0 %v541, 80
        %v1103 = vpop.permute.xlu0 %1102
        %1104 = vrot.lane.b32.xlu0 %v543, 80
        %v1105 = vpop.permute.xlu0 %1104
        %vm1106 = vcmp.lt.s32.totalorder %v295, 80
        %v1107 = vsel %vm1106, %v1099, %v1103
        %v1108 = vsel %vm1106, %v1101, %v1105
        %v1109 = vsel %vm1106, %v1103, %v1099
        %v1110 = vsel %vm1106, %v1105, %v1101
        %vm1111 = vmand %vm1084, %vm335
        %vm1112 = vmand %vm1085, %vm336
        %vm1113 = vmand %vm1111, %vm339
        %vm1114 = vmand %vm1112, %vm340
        %v1115 = vsel %vm1113, %v1107, 0.0
        %v1116 = vsel %vm1114, %v1109, 0.0
        %v1117 = vsel %vm1113, %v1108, 0.0
        %v1118 = vsel %vm1114, %v1110, 0.0
        %1119 = vst [vmem:[#allocation3 + $0x2e0] sm:$0xff] %v1115
        %1120 = vst [vmem:[#allocation3 + $0x2e8] sm:$0xff] %v1116
        %1121 = vst [vmem:[#allocation3 + $0x2f0] sm:$0xff] %v1117
        %1122 = vst [vmem:[#allocation3 + $0x2f8] sm:$0xff] %v1118
        %1123 = vrot.lane.b32.xlu0 %v540, 77
        %v1124 = vpop.permute.xlu0 %1123
        %1125 = vrot.lane.b32.xlu0 %v542, 77
        %v1126 = vpop.permute.xlu0 %1125
        %1127 = vrot.lane.b32.xlu0 %v541, 77
        %v1128 = vpop.permute.xlu0 %1127
        %1129 = vrot.lane.b32.xlu0 %v543, 77
        %v1130 = vpop.permute.xlu0 %1129
        %vm1131 = vcmp.lt.s32.totalorder %v295, 77
        %v1132 = vsel %vm1131, %v1124, %v1128
        %v1133 = vsel %vm1131, %v1126, %v1130
        %v1134 = vsel %vm1131, %v1128, %v1124
        %v1135 = vsel %vm1131, %v1130, %v1126
        %vm1136 = vmand %vm1084, %vm1001
        %vm1137 = vmand %vm1085, %vm1002
        %vm1138 = vmand %vm1136, %vm1005
        %vm1139 = vmand %vm1137, %vm1006
        %v1140 = vsel %vm1138, %v1132, 0.0
        %v1141 = vsel %vm1139, %v1134, 0.0
        %v1142 = vsel %vm1138, %v1133, 0.0
        %v1143 = vsel %vm1139, %v1135, 0.0
        %1144 = vst [vmem:[#allocation3 + $0x300] sm:$0xff] %v1140
        %1145 = vst [vmem:[#allocation3 + $0x308] sm:$0xff] %v1141
        %1146 = vst [vmem:[#allocation3 + $0x310] sm:$0xff] %v1142
        %1147 = vst [vmem:[#allocation3 + $0x318] sm:$0xff] %v1143
        %v1148 = vld [vmem:[#allocation4] sm:$0xff]
        %v1149 = vld [vmem:[#allocation4 + $0x8] sm:$0xff]
        %v1150 = vld [vmem:[#allocation4 + $0x10] sm:$0xff]
        %v1151 = vld [vmem:[#allocation4 + $0x18] sm:$0xff]
        %v1152 = vld [vmem:[#allocation4 + $0x20] sm:$0xff]
        %v1153 = vld [vmem:[#allocation4 + $0x28] sm:$0xff]
        %v1154 = vld [vmem:[#allocation4 + $0x30] sm:$0xff]
        %v1155 = vld [vmem:[#allocation4 + $0x38] sm:$0xff]
        %v1156 = vld [vmem:[#allocation4 + $0x40] sm:$0xff]
        %v1157 = vld [vmem:[#allocation4 + $0x48] sm:$0xff]
        %v1158 = vld [vmem:[#allocation4 + $0x50] sm:$0xff]
        %v1159 = vld [vmem:[#allocation4 + $0x58] sm:$0xff]
        %v1160 = vld [vmem:[#allocation4 + $0x60] sm:$0xff]
        %v1161 = vld [vmem:[#allocation4 + $0x68] sm:$0xff]
        %v1162 = vld [vmem:[#allocation4 + $0x70] sm:$0xff]
        %v1163 = vld [vmem:[#allocation4 + $0x78] sm:$0xff]
        %v1164 = vld [vmem:[#allocation4 + $0x80] sm:$0xff]
        %v1165 = vld [vmem:[#allocation4 + $0x88] sm:$0xff]
        %v1166 = vld [vmem:[#allocation4 + $0x90] sm:$0xff]
        %v1167 = vld [vmem:[#allocation4 + $0x98] sm:$0xff]
        %v1168 = vld [vmem:[#allocation4 + $0xa0] sm:$0xff]
        %v1169 = vld [vmem:[#allocation4 + $0xa8] sm:$0xff]
        %v1170 = vld [vmem:[#allocation4 + $0xb0] sm:$0xff]
        %v1171 = vld [vmem:[#allocation4 + $0xb8] sm:$0xff]
        %v1172 = vld [vmem:[#allocation4 + $0xc0] sm:$0xff]
        %v1173 = vld [vmem:[#allocation4 + $0xc8] sm:$0xff]
        %v1174 = vld [vmem:[#allocation4 + $0xd0] sm:$0xff]
        %v1175 = vld [vmem:[#allocation4 + $0xd8] sm:$0xff]
        %v1176 = vld [vmem:[#allocation4 + $0xe0] sm:$0xff]
        %v1177 = vld [vmem:[#allocation4 + $0xe8] sm:$0xff]
        %v1178 = vld [vmem:[#allocation4 + $0xf0] sm:$0xff]
        %v1179 = vld [vmem:[#allocation4 + $0xf8] sm:$0xff]
        %v1180 = vld [vmem:[#allocation3] sm:$0xff]
        %v1181 = vld [vmem:[#allocation3 + $0x8] sm:$0xff]
        %v1182 = vld [vmem:[#allocation3 + $0x10] sm:$0xff]
        %v1183 = vld [vmem:[#allocation3 + $0x18] sm:$0xff]
        %v1184 = vld [vmem:[#allocation3 + $0x20] sm:$0xff]
        %v1185 = vld [vmem:[#allocation3 + $0x28] sm:$0xff]
        %v1186 = vld [vmem:[#allocation3 + $0x30] sm:$0xff]
        %v1187 = vld [vmem:[#allocation3 + $0x38] sm:$0xff]
        %v1188 = vld [vmem:[#allocation3 + $0x40] sm:$0xff]
        %v1189 = vld [vmem:[#allocation3 + $0x48] sm:$0xff]
        %v1190 = vld [vmem:[#allocation3 + $0x50] sm:$0xff]
        %v1191 = vld [vmem:[#allocation3 + $0x58] sm:$0xff]
        %v1192 = vld [vmem:[#allocation3 + $0x60] sm:$0xff]
        %v1193 = vld [vmem:[#allocation3 + $0x68] sm:$0xff]
        %v1194 = vld [vmem:[#allocation3 + $0x70] sm:$0xff]
        %v1195 = vld [vmem:[#allocation3 + $0x78] sm:$0xff]
        %v1196 = vld [vmem:[#allocation3 + $0x80] sm:$0xff]
        %v1197 = vld [vmem:[#allocation3 + $0x88] sm:$0xff]
        %v1198 = vld [vmem:[#allocation3 + $0x90] sm:$0xff]
        %v1199 = vld [vmem:[#allocation3 + $0x98] sm:$0xff]
        %v1200 = vld [vmem:[#allocation3 + $0xa0] sm:$0xff]
        %v1201 = vld [vmem:[#allocation3 + $0xa8] sm:$0xff]
        %v1202 = vld [vmem:[#allocation3 + $0xb0] sm:$0xff]
        %v1203 = vld [vmem:[#allocation3 + $0xb8] sm:$0xff]
        %v1204 = vld [vmem:[#allocation3 + $0xc0] sm:$0xff]
        %v1205 = vld [vmem:[#allocation3 + $0xc8] sm:$0xff]
        %v1206 = vld [vmem:[#allocation3 + $0xd0] sm:$0xff]
        %v1207 = vld [vmem:[#allocation3 + $0xd8] sm:$0xff]
        %v1208 = vld [vmem:[#allocation3 + $0xe0] sm:$0xff]
        %v1209 = vld [vmem:[#allocation3 + $0xe8] sm:$0xff]
        %v1210 = vld [vmem:[#allocation3 + $0xf0] sm:$0xff]
        %v1211 = vld [vmem:[#allocation3 + $0xf8] sm:$0xff]
        %v1212 = vld [vmem:[#allocation3 + $0x100] sm:$0xff]
        %v1213 = vld [vmem:[#allocation3 + $0x108] sm:$0xff]
        %v1214 = vld [vmem:[#allocation3 + $0x110] sm:$0xff]
        %v1215 = vld [vmem:[#allocation3 + $0x118] sm:$0xff]
        %v1216 = vld [vmem:[#allocation3 + $0x120] sm:$0xff]
        %v1217 = vld [vmem:[#allocation3 + $0x128] sm:$0xff]
        %v1218 = vld [vmem:[#allocation3 + $0x130] sm:$0xff]
        %v1219 = vld [vmem:[#allocation3 + $0x138] sm:$0xff]
        %v1220 = vld [vmem:[#allocation3 + $0x140] sm:$0xff]
        %v1221 = vld [vmem:[#allocation3 + $0x148] sm:$0xff]
        %v1222 = vld [vmem:[#allocation3 + $0x150] sm:$0xff]
        %v1223 = vld [vmem:[#allocation3 + $0x158] sm:$0xff]
        %v1224 = vld [vmem:[#allocation3 + $0x160] sm:$0xff]
        %v1225 = vld [vmem:[#allocation3 + $0x168] sm:$0xff]
        %v1226 = vld [vmem:[#allocation3 + $0x170] sm:$0xff]
        %v1227 = vld [vmem:[#allocation3 + $0x178] sm:$0xff]
        %v1228 = vld [vmem:[#allocation3 + $0x180] sm:$0xff]
        %v1229 = vld [vmem:[#allocation3 + $0x188] sm:$0xff]
        %v1230 = vld [vmem:[#allocation3 + $0x190] sm:$0xff]
        %v1231 = vld [vmem:[#allocation3 + $0x198] sm:$0xff]
        %v1232 = vld [vmem:[#allocation3 + $0x1a0] sm:$0xff]
        %v1233 = vld [vmem:[#allocation3 + $0x1a8] sm:$0xff]
        %v1234 = vld [vmem:[#allocation3 + $0x1b0] sm:$0xff]
        %v1235 = vld [vmem:[#allocation3 + $0x1b8] sm:$0xff]
        %v1236 = vld [vmem:[#allocation3 + $0x1c0] sm:$0xff]
        %v1237 = vld [vmem:[#allocation3 + $0x1c8] sm:$0xff]
        %v1238 = vld [vmem:[#allocation3 + $0x1d0] sm:$0xff]
        %v1239 = vld [vmem:[#allocation3 + $0x1d8] sm:$0xff]
        %v1240 = vld [vmem:[#allocation3 + $0x1e0] sm:$0xff]
        %v1241 = vld [vmem:[#allocation3 + $0x1e8] sm:$0xff]
        %v1242 = vld [vmem:[#allocation3 + $0x1f0] sm:$0xff]
        %v1243 = vld [vmem:[#allocation3 + $0x1f8] sm:$0xff]
        %v1244 = vld [vmem:[#allocation3 + $0x200] sm:$0xff]
        %v1245 = vld [vmem:[#allocation3 + $0x208] sm:$0xff]
        %v1246 = vld [vmem:[#allocation3 + $0x210] sm:$0xff]
        %v1247 = vld [vmem:[#allocation3 + $0x218] sm:$0xff]
        %v1248 = vld [vmem:[#allocation3 + $0x220] sm:$0xff]
        %v1249 = vld [vmem:[#allocation3 + $0x228] sm:$0xff]
        %v1250 = vld [vmem:[#allocation3 + $0x230] sm:$0xff]
        %v1251 = vld [vmem:[#allocation3 + $0x238] sm:$0xff]
        %v1252 = vld [vmem:[#allocation3 + $0x240] sm:$0xff]
        %v1253 = vld [vmem:[#allocation3 + $0x248] sm:$0xff]
        %v1254 = vld [vmem:[#allocation3 + $0x250] sm:$0xff]
        %v1255 = vld [vmem:[#allocation3 + $0x258] sm:$0xff]
        %v1256 = vld [vmem:[#allocation3 + $0x260] sm:$0xff]
        %v1257 = vld [vmem:[#allocation3 + $0x268] sm:$0xff]
        %v1258 = vld [vmem:[#allocation3 + $0x270] sm:$0xff]
        %v1259 = vld [vmem:[#allocation3 + $0x278] sm:$0xff]
        %v1260 = vld [vmem:[#allocation3 + $0x280] sm:$0xff]
        %v1261 = vld [vmem:[#allocation3 + $0x288] sm:$0xff]
        %v1262 = vld [vmem:[#allocation3 + $0x290] sm:$0xff]
        %v1263 = vld [vmem:[#allocation3 + $0x298] sm:$0xff]
        %v1264 = vld [vmem:[#allocation3 + $0x2a0] sm:$0xff]
        %v1265 = vld [vmem:[#allocation3 + $0x2a8] sm:$0xff]
        %v1266 = vld [vmem:[#allocation3 + $0x2b0] sm:$0xff]
        %v1267 = vld [vmem:[#allocation3 + $0x2b8] sm:$0xff]
        %v1268 = vld [vmem:[#allocation3 + $0x2c0] sm:$0xff]
        %v1269 = vld [vmem:[#allocation3 + $0x2c8] sm:$0xff]
        %v1270 = vld [vmem:[#allocation3 + $0x2d0] sm:$0xff]
        %v1271 = vld [vmem:[#allocation3 + $0x2d8] sm:$0xff]
        %v1272 = vld [vmem:[#allocation3 + $0x2e0] sm:$0xff]
        %v1273 = vld [vmem:[#allocation3 + $0x2e8] sm:$0xff]
        %v1274 = vld [vmem:[#allocation3 + $0x2f0] sm:$0xff]
        %v1275 = vld [vmem:[#allocation3 + $0x2f8] sm:$0xff]
        %v1276 = vld [vmem:[#allocation3 + $0x300] sm:$0xff]
        %v1277 = vld [vmem:[#allocation3 + $0x308] sm:$0xff]
        %v1278 = vld [vmem:[#allocation3 + $0x310] sm:$0xff]
        %v1279 = vld [vmem:[#allocation3 + $0x318] sm:$0xff]
        %v1280 = vld [vmem:[%s4] sm:$0xff]
        %v1281 = vld [vmem:[%s4 + $0x8] sm:$0xff]
        %v1282 = vld [vmem:[%s4 + $0x10] sm:$0xff]
        %v1283 = vld [vmem:[%s4 + $0x18] sm:$0xff]
        %v1284 = vld [vmem:[%s4 + $0x20] sm:$0xff]
        %v1285 = vld [vmem:[%s4 + $0x28] sm:$0xff]
        %v1286 = vld [vmem:[%s4 + $0x30] sm:$0xff]
        %v1287 = vld [vmem:[%s4 + $0x38] sm:$0xff]
        %1289 = vset.pattern.permute.xlu0 0
        %1290 = vperm.xlu0 %1289, %v1280
        %v1291 = vpop.permute.xlu0 %1290
        %1294 = vset.pattern.permute.xlu0 0
        %1295 = vperm.xlu0 %1294, %v1281
        %v1296 = vpop.permute.xlu0 %1295
        %1299 = vset.pattern.permute.xlu0 0
        %1300 = vperm.xlu0 %1299, %v1282
        %v1301 = vpop.permute.xlu0 %1300
        %1304 = vset.pattern.permute.xlu0 0
        %1305 = vperm.xlu0 %1304, %v1283
        %v1306 = vpop.permute.xlu0 %1305
        %1309 = vset.pattern.permute.xlu0 0
        %1310 = vperm.xlu0 %1309, %v1284
        %v1311 = vpop.permute.xlu0 %1310
        %1314 = vset.pattern.permute.xlu0 0
        %1315 = vperm.xlu0 %1314, %v1285
        %v1316 = vpop.permute.xlu0 %1315
        %1319 = vset.pattern.permute.xlu0 0
        %1320 = vperm.xlu0 %1319, %v1286
        %v1321 = vpop.permute.xlu0 %1320
        %1324 = vset.pattern.permute.xlu0 0
        %1325 = vperm.xlu0 %1324, %v1287
        %v1326 = vpop.permute.xlu0 %1325
        %vm1328 = vcmask 130048
        %v1330 = vsel %vm1328, %v1151, 0
        %v1333 = vsel %vm1328, %v1155, 0
        %v1336 = vsel %vm1328, %v1159, 0
        %v1339 = vsel %vm1328, %v1163, 0
        %v1342 = vsel %vm1328, %v1167, 0
        %v1345 = vsel %vm1328, %v1171, 0
        %v1348 = vsel %vm1328, %v1175, 0
        %v1351 = vsel %vm1328, %v1179, 0
        %1353 = vmatpush.msra.mxu0 %v1210
        %1354 = vmatpush.msra.mxu0 %v1208
        %1355 = vmatpush.msra.mxu0 %v1206
        %1356 = vmatpush.msra.mxu0 %v1204
        %1357 = vmatpush.msra.mxu0 %v1202
        %1358 = vmatpush.msra.mxu0 %v1200
        %1359 = vmatpush.msra.mxu0 %v1198
        %1360 = vmatpush.msra.mxu0 %v1196
        %1361 = vmatpush.msra.mxu0 %v1194
        %1362 = vmatpush.msra.mxu0 %v1192
        %1363 = vmatpush.msra.mxu0 %v1190
        %1364 = vmatpush.msra.mxu0 %v1188
        %1365 = vmatpush.msra.mxu0 %v1186
        %1366 = vmatpush.msra.mxu0 %v1184
        %1367 = vmatpush.msra.mxu0 %v1182
        %1368 = vmatpush.msra.mxu0 %v1180
        %1369 = vmatmul.f32.gmra.mxu0 %v1148
        %v1370 = vpop.f32.mrf.mxu0
        %v1371 = vadd.f32 %v1291, %v1370
        %1372 = vmatmul.f32.gmra.mxu0 %v1152
        %v1373 = vpop.f32.mrf.mxu0
        %v1374 = vadd.f32 %v1296, %v1373
        %1375 = vmatmul.f32.gmra.mxu0 %v1156
        %v1376 = vpop.f32.mrf.mxu0
        %v1377 = vadd.f32 %v1301, %v1376
        %1378 = vmatmul.f32.gmra.mxu0 %v1160
        %v1379 = vpop.f32.mrf.mxu0
        %v1380 = vadd.f32 %v1306, %v1379
        %1381 = vmatmul.f32.gmra.mxu0 %v1164
        %v1382 = vpop.f32.mrf.mxu0
        %v1383 = vadd.f32 %v1311, %v1382
        %1384 = vmatmul.f32.gmra.mxu0 %v1168
        %v1385 = vpop.f32.mrf.mxu0
        %v1386 = vadd.f32 %v1316, %v1385
        %1387 = vmatmul.f32.gmra.mxu0 %v1172
        %v1388 = vpop.f32.mrf.mxu0
        %v1389 = vadd.f32 %v1321, %v1388
        %1390 = vmatmul.f32.gmra.mxu0 %v1176
        %v1391 = vpop.f32.mrf.mxu0
        %v1392 = vadd.f32 %v1326, %v1391
        %1393 = vdwg.mxu0
        %1394 = vmatpush.msra.mxu0 %v1242
        %1395 = vmatpush.msra.mxu0 %v1240
        %1396 = vmatpush.msra.mxu0 %v1238
        %1397 = vmatpush.msra.mxu0 %v1236
        %1398 = vmatpush.msra.mxu0 %v1234
        %1399 = vmatpush.msra.mxu0 %v1232
        %1400 = vmatpush.msra.mxu0 %v1230
        %1401 = vmatpush.msra.mxu0 %v1228
        %1402 = vmatpush.msra.mxu0 %v1226
        %1403 = vmatpush.msra.mxu0 %v1224
        %1404 = vmatpush.msra.mxu0 %v1222
        %1405 = vmatpush.msra.mxu0 %v1220
        %1406 = vmatpush.msra.mxu0 %v1218
        %1407 = vmatpush.msra.mxu0 %v1216
        %1408 = vmatpush.msra.mxu0 %v1214
        %1409 = vmatpush.msra.mxu0 %v1212
        %1410 = vmatmul.f32.gmra.mxu0 %v1149
        %v1411 = vpop.f32.mrf.mxu0
        %v1412 = vadd.f32 %v1371, %v1411
        %1413 = vmatmul.f32.gmra.mxu0 %v1153
        %v1414 = vpop.f32.mrf.mxu0
        %v1415 = vadd.f32 %v1374, %v1414
        %1416 = vmatmul.f32.gmra.mxu0 %v1157
        %v1417 = vpop.f32.mrf.mxu0
        %v1418 = vadd.f32 %v1377, %v1417
        %1419 = vmatmul.f32.gmra.mxu0 %v1161
        %v1420 = vpop.f32.mrf.mxu0
        %v1421 = vadd.f32 %v1380, %v1420
        %1422 = vmatmul.f32.gmra.mxu0 %v1165
        %v1423 = vpop.f32.mrf.mxu0
        %v1424 = vadd.f32 %v1383, %v1423
        %1425 = vmatmul.f32.gmra.mxu0 %v1169
        %v1426 = vpop.f32.mrf.mxu0
        %v1427 = vadd.f32 %v1386, %v1426
        %1428 = vmatmul.f32.gmra.mxu0 %v1173
        %v1429 = vpop.f32.mrf.mxu0
        %v1430 = vadd.f32 %v1389, %v1429
        %1431 = vmatmul.f32.gmra.mxu0 %v1177
        %v1432 = vpop.f32.mrf.mxu0
        %v1433 = vadd.f32 %v1392, %v1432
        %1434 = vdwg.mxu0
        %1435 = vmatpush.msra.mxu0 %v1274
        %1436 = vmatpush.msra.mxu0 %v1272
        %1437 = vmatpush.msra.mxu0 %v1270
        %1438 = vmatpush.msra.mxu0 %v1268
        %1439 = vmatpush.msra.mxu0 %v1266
        %1440 = vmatpush.msra.mxu0 %v1264
        %1441 = vmatpush.msra.mxu0 %v1262
        %1442 = vmatpush.msra.mxu0 %v1260
        %1443 = vmatpush.msra.mxu0 %v1258
        %1444 = vmatpush.msra.mxu0 %v1256
        %1445 = vmatpush.msra.mxu0 %v1254
        %1446 = vmatpush.msra.mxu0 %v1252
        %1447 = vmatpush.msra.mxu0 %v1250
        %1448 = vmatpush.msra.mxu0 %v1248
        %1449 = vmatpush.msra.mxu0 %v1246
        %1450 = vmatpush.msra.mxu0 %v1244
        %1451 = vmatmul.f32.gmra.mxu0 %v1150
        %v1452 = vpop.f32.mrf.mxu0
        %v1453 = vadd.f32 %v1412, %v1452
        %1454 = vmatmul.f32.gmra.mxu0 %v1154
        %v1455 = vpop.f32.mrf.mxu0
        %v1456 = vadd.f32 %v1415, %v1455
        %1457 = vmatmul.f32.gmra.mxu0 %v1158
        %v1458 = vpop.f32.mrf.mxu0
        %v1459 = vadd.f32 %v1418, %v1458
        %1460 = vmatmul.f32.gmra.mxu0 %v1162
        %v1461 = vpop.f32.mrf.mxu0
        %v1462 = vadd.f32 %v1421, %v1461
        %1463 = vmatmul.f32.gmra.mxu0 %v1166
        %v1464 = vpop.f32.mrf.mxu0
        %v1465 = vadd.f32 %v1424, %v1464
        %1466 = vmatmul.f32.gmra.mxu0 %v1170
        %v1467 = vpop.f32.mrf.mxu0
        %v1468 = vadd.f32 %v1427, %v1467
        %1469 = vmatmul.f32.gmra.mxu0 %v1174
        %v1470 = vpop.f32.mrf.mxu0
        %v1471 = vadd.f32 %v1430, %v1470
        %1472 = vmatmul.f32.gmra.mxu0 %v1178
        %v1473 = vpop.f32.mrf.mxu0
        %v1474 = vadd.f32 %v1433, %v1473
        %1475 = vdwg.mxu0
        %1476 = vmatpush.msra.mxu0 0.0
        %1477 = vmatpush.msra.mxu0 0.0
        %1478 = vmatpush.msra.mxu0 0.0
        %1479 = vmatpush.msra.mxu0 0.0
        %1480 = vmatpush.msra.mxu0 0.0
        %1481 = vmatpush.msra.mxu0 0.0
        %1482 = vmatpush.msra.mxu0 0.0
        %1483 = vmatpush.msra.mxu0 0.0
        %1484 = vmatpush.msra.mxu0 0.0
        %1485 = vmatpush.msra.mxu0 0.0
        %1486 = vmatpush.msra.mxu0 0.0
        %1487 = vmatpush.msra.mxu0 0.0
        %1488 = vmatpush.msra.mxu0 0.0
        %1489 = vmatpush.msra.mxu0 0.0
        %1490 = vmatpush.msra.mxu0 %v1278
        %1491 = vmatpush.msra.mxu0 %v1276
        %1492 = vmatmul.f32.gmra.mxu0 %v1330
        %v1493 = vpop.f32.mrf.mxu0
        %v1494 = vadd.f32 %v1453, %v1493
        %1495 = vmatmul.f32.gmra.mxu0 %v1333
        %v1496 = vpop.f32.mrf.mxu0
        %v1497 = vadd.f32 %v1456, %v1496
        %1498 = vmatmul.f32.gmra.mxu0 %v1336
        %v1499 = vpop.f32.mrf.mxu0
        %v1500 = vadd.f32 %v1459, %v1499
        %1501 = vmatmul.f32.gmra.mxu0 %v1339
        %v1502 = vpop.f32.mrf.mxu0
        %v1503 = vadd.f32 %v1462, %v1502
        %1504 = vmatmul.f32.gmra.mxu0 %v1342
        %v1505 = vpop.f32.mrf.mxu0
        %v1506 = vadd.f32 %v1465, %v1505
        %1507 = vmatmul.f32.gmra.mxu0 %v1345
        %v1508 = vpop.f32.mrf.mxu0
        %v1509 = vadd.f32 %v1468, %v1508
        %1510 = vmatmul.f32.gmra.mxu0 %v1348
        %v1511 = vpop.f32.mrf.mxu0
        %v1512 = vadd.f32 %v1471, %v1511
        %1513 = vmatmul.f32.gmra.mxu0 %v1351
        %v1514 = vpop.f32.mrf.mxu0
        %v1515 = vadd.f32 %v1474, %v1514
        %1516 = vdwg.mxu0
        %1517 = vmatpush.msra.mxu0 %v1211
        %1518 = vmatpush.msra.mxu0 %v1209
        %1519 = vmatpush.msra.mxu0 %v1207
        %1520 = vmatpush.msra.mxu0 %v1205
        %1521 = vmatpush.msra.mxu0 %v1203
        %1522 = vmatpush.msra.mxu0 %v1201
        %1523 = vmatpush.msra.mxu0 %v1199
        %1524 = vmatpush.msra.mxu0 %v1197
        %1525 = vmatpush.msra.mxu0 %v1195
        %1526 = vmatpush.msra.mxu0 %v1193
        %1527 = vmatpush.msra.mxu0 %v1191
        %1528 = vmatpush.msra.mxu0 %v1189
        %1529 = vmatpush.msra.mxu0 %v1187
        %1530 = vmatpush.msra.mxu0 %v1185
        %1531 = vmatpush.msra.mxu0 %v1183
        %1532 = vmatpush.msra.mxu0 %v1181
        %1533 = vmatmul.f32.gmra.mxu0 %v1148
        %v1534 = vpop.f32.mrf.mxu0
        %v1535 = vadd.f32 %v1291, %v1534
        %1536 = vmatmul.f32.gmra.mxu0 %v1152
        %v1537 = vpop.f32.mrf.mxu0
        %v1538 = vadd.f32 %v1296, %v1537
        %1539 = vmatmul.f32.gmra.mxu0 %v1156
        %v1540 = vpop.f32.mrf.mxu0
        %v1541 = vadd.f32 %v1301, %v1540
        %1542 = vmatmul.f32.gmra.mxu0 %v1160
        %v1543 = vpop.f32.mrf.mxu0
        %v1544 = vadd.f32 %v1306, %v1543
        %1545 = vmatmul.f32.gmra.mxu0 %v1164
        %v1546 = vpop.f32.mrf.mxu0
        %v1547 = vadd.f32 %v1311, %v1546
        %1548 = vmatmul.f32.gmra.mxu0 %v1168
        %v1549 = vpop.f32.mrf.mxu0
        %v1550 = vadd.f32 %v1316, %v1549
        %1551 = vmatmul.f32.gmra.mxu0 %v1172
        %v1552 = vpop.f32.mrf.mxu0
        %v1553 = vadd.f32 %v1321, %v1552
        %1554 = vmatmul.f32.gmra.mxu0 %v1176
        %v1555 = vpop.f32.mrf.mxu0
        %v1556 = vadd.f32 %v1326, %v1555
        %1557 = vdwg.mxu0
        %1558 = vmatpush.msra.mxu0 %v1243
        %1559 = vmatpush.msra.mxu0 %v1241
        %1560 = vmatpush.msra.mxu0 %v1239
        %1561 = vmatpush.msra.mxu0 %v1237
        %1562 = vmatpush.msra.mxu0 %v1235
        %1563 = vmatpush.msra.mxu0 %v1233
        %1564 = vmatpush.msra.mxu0 %v1231
        %1565 = vmatpush.msra.mxu0 %v1229
        %1566 = vmatpush.msra.mxu0 %v1227
        %1567 = vmatpush.msra.mxu0 %v1225
        %1568 = vmatpush.msra.mxu0 %v1223
        %1569 = vmatpush.msra.mxu0 %v1221
        %1570 = vmatpush.msra.mxu0 %v1219
        %1571 = vmatpush.msra.mxu0 %v1217
        %1572 = vmatpush.msra.mxu0 %v1215
        %1573 = vmatpush.msra.mxu0 %v1213
        %1574 = vmatmul.f32.gmra.mxu0 %v1149
        %v1575 = vpop.f32.mrf.mxu0
        %v1576 = vadd.f32 %v1535, %v1575
        %1577 = vmatmul.f32.gmra.mxu0 %v1153
        %v1578 = vpop.f32.mrf.mxu0
        %v1579 = vadd.f32 %v1538, %v1578
        %1580 = vmatmul.f32.gmra.mxu0 %v1157
        %v1581 = vpop.f32.mrf.mxu0
        %v1582 = vadd.f32 %v1541, %v1581
        %1583 = vmatmul.f32.gmra.mxu0 %v1161
        %v1584 = vpop.f32.mrf.mxu0
        %v1585 = vadd.f32 %v1544, %v1584
        %1586 = vmatmul.f32.gmra.mxu0 %v1165
        %v1587 = vpop.f32.mrf.mxu0
        %v1588 = vadd.f32 %v1547, %v1587
        %1589 = vmatmul.f32.gmra.mxu0 %v1169
        %v1590 = vpop.f32.mrf.mxu0
        %v1591 = vadd.f32 %v1550, %v1590
        %1592 = vmatmul.f32.gmra.mxu0 %v1173
        %v1593 = vpop.f32.mrf.mxu0
        %v1594 = vadd.f32 %v1553, %v1593
        %1595 = vmatmul.f32.gmra.mxu0 %v1177
        %v1596 = vpop.f32.mrf.mxu0
        %v1597 = vadd.f32 %v1556, %v1596
        %1598 = vdwg.mxu0
        %1599 = vmatpush.msra.mxu0 %v1275
        %1600 = vmatpush.msra.mxu0 %v1273
        %1601 = vmatpush.msra.mxu0 %v1271
        %1602 = vmatpush.msra.mxu0 %v1269
        %1603 = vmatpush.msra.mxu0 %v1267
        %1604 = vmatpush.msra.mxu0 %v1265
        %1605 = vmatpush.msra.mxu0 %v1263
        %1606 = vmatpush.msra.mxu0 %v1261
        %1607 = vmatpush.msra.mxu0 %v1259
        %1608 = vmatpush.msra.mxu0 %v1257
        %1609 = vmatpush.msra.mxu0 %v1255
        %1610 = vmatpush.msra.mxu0 %v1253
        %1611 = vmatpush.msra.mxu0 %v1251
        %1612 = vmatpush.msra.mxu0 %v1249
        %1613 = vmatpush.msra.mxu0 %v1247
        %1614 = vmatpush.msra.mxu0 %v1245
        %1615 = vmatmul.f32.gmra.mxu0 %v1150
        %v1616 = vpop.f32.mrf.mxu0
        %v1617 = vadd.f32 %v1576, %v1616
        %1618 = vmatmul.f32.gmra.mxu0 %v1154
        %v1619 = vpop.f32.mrf.mxu0
        %v1620 = vadd.f32 %v1579, %v1619
        %1621 = vmatmul.f32.gmra.mxu0 %v1158
        %v1622 = vpop.f32.mrf.mxu0
        %v1623 = vadd.f32 %v1582, %v1622
        %1624 = vmatmul.f32.gmra.mxu0 %v1162
        %v1625 = vpop.f32.mrf.mxu0
        %v1626 = vadd.f32 %v1585, %v1625
        %1627 = vmatmul.f32.gmra.mxu0 %v1166
        %v1628 = vpop.f32.mrf.mxu0
        %v1629 = vadd.f32 %v1588, %v1628
        %1630 = vmatmul.f32.gmra.mxu0 %v1170
        %v1631 = vpop.f32.mrf.mxu0
        %v1632 = vadd.f32 %v1591, %v1631
        %1633 = vmatmul.f32.gmra.mxu0 %v1174
        %v1634 = vpop.f32.mrf.mxu0
        %v1635 = vadd.f32 %v1594, %v1634
        %1636 = vmatmul.f32.gmra.mxu0 %v1178
        %v1637 = vpop.f32.mrf.mxu0
        %v1638 = vadd.f32 %v1597, %v1637
        %1639 = vdwg.mxu0
        %1640 = vmatpush.msra.mxu0 0.0
        %1641 = vmatpush.msra.mxu0 0.0
        %1642 = vmatpush.msra.mxu0 0.0
        %1643 = vmatpush.msra.mxu0 0.0
        %1644 = vmatpush.msra.mxu0 0.0
        %1645 = vmatpush.msra.mxu0 0.0
        %1646 = vmatpush.msra.mxu0 0.0
        %1647 = vmatpush.msra.mxu0 0.0
        %1648 = vmatpush.msra.mxu0 0.0
        %1649 = vmatpush.msra.mxu0 0.0
        %1650 = vmatpush.msra.mxu0 0.0
        %1651 = vmatpush.msra.mxu0 0.0
        %1652 = vmatpush.msra.mxu0 0.0
        %1653 = vmatpush.msra.mxu0 0.0
        %1654 = vmatpush.msra.mxu0 %v1279
        %1655 = vmatpush.msra.mxu0 %v1277
        %1656 = vmatmul.f32.gmra.mxu0 %v1330
        %v1657 = vpop.f32.mrf.mxu0
        %v1658 = vadd.f32 %v1617, %v1657
        %1659 = vmatmul.f32.gmra.mxu0 %v1333
        %v1660 = vpop.f32.mrf.mxu0
        %v1661 = vadd.f32 %v1620, %v1660
        %1662 = vmatmul.f32.gmra.mxu0 %v1336
        %v1663 = vpop.f32.mrf.mxu0
        %v1664 = vadd.f32 %v1623, %v1663
        %1665 = vmatmul.f32.gmra.mxu0 %v1339
        %v1666 = vpop.f32.mrf.mxu0
        %v1667 = vadd.f32 %v1626, %v1666
        %1668 = vmatmul.f32.gmra.mxu0 %v1342
        %v1669 = vpop.f32.mrf.mxu0
        %v1670 = vadd.f32 %v1629, %v1669
        %1671 = vmatmul.f32.gmra.mxu0 %v1345
        %v1672 = vpop.f32.mrf.mxu0
        %v1673 = vadd.f32 %v1632, %v1672
        %1674 = vmatmul.f32.gmra.mxu0 %v1348
        %v1675 = vpop.f32.mrf.mxu0
        %v1676 = vadd.f32 %v1635, %v1675
        %1677 = vmatmul.f32.gmra.mxu0 %v1351
        %v1678 = vpop.f32.mrf.mxu0
        %v1679 = vadd.f32 %v1638, %v1678
        %1680 = vdwg.mxu0
        %v1681 = vmax.f32 %v1494, 0.0
        %v1682 = vmax.f32 %v1658, 0.0
        %v1683 = vmax.f32 %v1497, 0.0
        %v1684 = vmax.f32 %v1661, 0.0
        %v1685 = vmax.f32 %v1500, 0.0
        %v1686 = vmax.f32 %v1664, 0.0
        %v1687 = vmax.f32 %v1503, 0.0
        %v1688 = vmax.f32 %v1667, 0.0
        %v1689 = vmax.f32 %v1506, 0.0
        %v1690 = vmax.f32 %v1670, 0.0
        %v1691 = vmax.f32 %v1509, 0.0
        %v1692 = vmax.f32 %v1673, 0.0
        %v1693 = vmax.f32 %v1512, 0.0
        %v1694 = vmax.f32 %v1676, 0.0
        %v1695 = vmax.f32 %v1515, 0.0
        %v1696 = vmax.f32 %v1679, 0.0
        %v1697 = vld [vmem:[%s5] sm:$0xff]
        %v1698 = vld [vmem:[%s5 + $0x8] sm:$0xff]
        %v1699 = vld [vmem:[%s5 + $0x10] sm:$0xff]
        %v1700 = vld [vmem:[%s5 + $0x18] sm:$0xff]
        %v1701 = vld [vmem:[%s6] sm:$0xff]
        %v1702 = vld [vmem:[%s6 + $0x8] sm:$0xff]
        %v1703 = vld [vmem:[%s6 + $0x10] sm:$0xff]
        %v1704 = vld [vmem:[%s6 + $0x18] sm:$0xff]
        %1706 = vset.pattern.permute.xlu0 0
        %1707 = vperm.xlu0 %1706, %v1701
        %v1708 = vpop.permute.xlu0 %1707
        %1711 = vset.pattern.permute.xlu0 0
        %1712 = vperm.xlu0 %1711, %v1702
        %v1713 = vpop.permute.xlu0 %1712
        %1716 = vset.pattern.permute.xlu0 0
        %1717 = vperm.xlu0 %1716, %v1703
        %v1718 = vpop.permute.xlu0 %1717
        %1721 = vset.pattern.permute.xlu0 0
        %1722 = vperm.xlu0 %1721, %v1704
        %v1723 = vpop.permute.xlu0 %1722
        %vm1725 = vcmask 523264
        %v1727 = vsel %vm1725, %v1697, 0
        %v1730 = vsel %vm1725, %v1698, 0
        %v1733 = vsel %vm1725, %v1699, 0
        %v1736 = vsel %vm1725, %v1700, 0
        %1738 = vmatpush.msra.mxu0 0.0
        %1739 = vmatpush.msra.mxu0 0.0
        %1740 = vmatpush.msra.mxu0 0.0
        %1741 = vmatpush.msra.mxu0 0.0
        %1742 = vmatpush.msra.mxu0 0.0
        %1743 = vmatpush.msra.mxu0 0.0
        %1744 = vmatpush.msra.mxu0 0.0
        %1745 = vmatpush.msra.mxu0 0.0
        %1746 = vmatpush.msra.mxu0 %v1695
        %1747 = vmatpush.msra.mxu0 %v1693
        %1748 = vmatpush.msra.mxu0 %v1691
        %1749 = vmatpush.msra.mxu0 %v1689
        %1750 = vmatpush.msra.mxu0 %v1687
        %1751 = vmatpush.msra.mxu0 %v1685
        %1752 = vmatpush.msra.mxu0 %v1683
        %1753 = vmatpush.msra.mxu0 %v1681
        %1754 = vmatmul.f32.gmra.mxu0 %v1727
        %v1755 = vpop.f32.mrf.mxu0
        %v1756 = vadd.f32 %v1708, %v1755
        %1757 = vmatmul.f32.gmra.mxu0 %v1730
        %v1758 = vpop.f32.mrf.mxu0
        %v1759 = vadd.f32 %v1713, %v1758
        %1760 = vmatmul.f32.gmra.mxu0 %v1733
        %v1761 = vpop.f32.mrf.mxu0
        %v1762 = vadd.f32 %v1718, %v1761
        %1763 = vmatmul.f32.gmra.mxu0 %v1736
        %v1764 = vpop.f32.mrf.mxu0
        %v1765 = vadd.f32 %v1723, %v1764
        %1766 = vdwg.mxu0
        %1767 = vmatpush.msra.mxu0 0.0
        %1768 = vmatpush.msra.mxu0 0.0
        %1769 = vmatpush.msra.mxu0 0.0
        %1770 = vmatpush.msra.mxu0 0.0
        %1771 = vmatpush.msra.mxu0 0.0
        %1772 = vmatpush.msra.mxu0 0.0
        %1773 = vmatpush.msra.mxu0 0.0
        %1774 = vmatpush.msra.mxu0 0.0
        %1775 = vmatpush.msra.mxu0 %v1696
        %1776 = vmatpush.msra.mxu0 %v1694
        %1777 = vmatpush.msra.mxu0 %v1692
        %1778 = vmatpush.msra.mxu0 %v1690
        %1779 = vmatpush.msra.mxu0 %v1688
        %1780 = vmatpush.msra.mxu0 %v1686
        %1781 = vmatpush.msra.mxu0 %v1684
        %1782 = vmatpush.msra.mxu0 %v1682
        %1783 = vmatmul.f32.gmra.mxu0 %v1727
        %v1784 = vpop.f32.mrf.mxu0
        %v1785 = vadd.f32 %v1708, %v1784
        %1786 = vmatmul.f32.gmra.mxu0 %v1730
        %v1787 = vpop.f32.mrf.mxu0
        %v1788 = vadd.f32 %v1713, %v1787
        %1789 = vmatmul.f32.gmra.mxu0 %v1733
        %v1790 = vpop.f32.mrf.mxu0
        %v1791 = vadd.f32 %v1718, %v1790
        %1792 = vmatmul.f32.gmra.mxu0 %v1736
        %v1793 = vpop.f32.mrf.mxu0
        %v1794 = vadd.f32 %v1723, %v1793
        %1795 = vdwg.mxu0
        %v1796 = vmax.f32 %v1756, 0.0
        %v1797 = vmax.f32 %v1785, 0.0
        %v1798 = vmax.f32 %v1759, 0.0
        %v1799 = vmax.f32 %v1788, 0.0
        %v1800 = vmax.f32 %v1762, 0.0
        %v1801 = vmax.f32 %v1791, 0.0
        %v1802 = vmax.f32 %v1765, 0.0
        %v1803 = vmax.f32 %v1794, 0.0
        %1804 = vst [vmem:[%s288] sm:$0xff] %v1796
        %1805 = vst [vmem:[%s288 + $0x8] sm:$0xff] %v1797
        %1806 = vst [vmem:[%s288 + $0x10] sm:$0xff] %v1798
        %1807 = vst [vmem:[%s288 + $0x18] sm:$0xff] %v1799
        %1808 = vst [vmem:[%s288 + $0x20] sm:$0xff] %v1800
        %1809 = vst [vmem:[%s288 + $0x28] sm:$0xff] %v1801
        %1810 = vst [vmem:[%s288 + $0x30] sm:$0xff] %v1802
        %1811 = vst [vmem:[%s288 + $0x38] sm:$0xff] %v1803
        %s1812 = sand.u32 %s182, 1
        %s1813 = scalar_lea.sflag [#allocation6], %s1812
        %s1814 = sand.u32 %s182, 1
        %s1815 = smul.addr %s1814, 64
        %s1816 = scalar_lea.vmem [#allocation7], %s1815
        // Predicated region
        $region53: #{tpu_custom_call.1} parent=47 // pred_check
          %p1817 = pneg %p192
        $region54: #{tpu_custom_call.1} parent=47 // pred_check_branch
          %1819 = sbr.rel (%p1817) target = $region56
        $region55: #{tpu_custom_call.1} parent=47 // pred_region
          %1821 = vsyncadd %s1813, 0
          %s1822 = smul.addr %s22, 8
          %s1823 = smul.addr %s1822, 8
          %s1824 = scalar_lea.hbm %s7, %s1823
          %s1825 = sshll.u32 %s1816, 4
          %s1826 = int_to_ptr.vmem [resolvable:$true] %s1825
          %s1827 = sshll.u32 %s1824, 4
          %s1828 = int_to_ptr.hbm [resolvable:$true] %s1827
          %1833 = dma.vmem_to_hbm [thread:$0]  %s1826, 1024, %s1828, %s1813, 256, 256, 16
        $region56: #{tpu_custom_call.1} parent=47 // pred_fallthru
          _
      $region48: #{tpu_custom_call.1} parent=5 // pred_fallthru
        _
      %p1834 = scmp.le.s32.totalorder 2, %s17
      // Predicated region
      $region57: #{tpu_custom_call.1} parent=5 // pred_check
        %p1835 = pneg %p1834
      $region58: #{tpu_custom_call.1} parent=5 // pred_check_branch
        %1837 = sbr.rel (%p1835) target = $region60
      $region59: #{tpu_custom_call.1} parent=5 // pred_region
        %s1838 = ssub.s32 %s17, 2
        // Predicated region
        $region61: #{tpu_custom_call.1} parent=59 // pred_check
          %p1839 = pneg %p198
        $region62: #{tpu_custom_call.1} parent=59 // pred_check_branch
          %1841 = sbr.rel (%p1839) target = $region64
        $region63: #{tpu_custom_call.1} parent=59 // pred_region
          %s1842 = sand.u32 %s183, 1
          %s1843 = scalar_lea.sflag [#allocation6], %s1842
          %s1844 = sand.u32 %s183, 1
          %s1845 = smul.addr %s1844, 64
          %s1846 = scalar_lea.vmem [#allocation7], %s1845
          %1848 = dma.done %s1843, 1024
        $region64: #{tpu_custom_call.1} parent=59 // pred_fallthru
          _
      $region60: #{tpu_custom_call.1} parent=5 // pred_fallthru
        _
    $region6: #{tpu_custom_call.1} parent=1 // loop_footer
      %s21 = sadd.s32 1, %s17
    $region7: #{tpu_custom_call.1} parent=1 // loop_footer_branch
      %16 = sbr.rel target = $region3
    $region8: #{tpu_custom_call.1} parent=1 // loop_exit
      _
    %1849 = vsyncpa [#allocation5], 1
    %s1850 = scalar_lea.sflag [#allocation5], 1
    %1851 = vsyncpa %s1850, 1
    %1852 = vsyncpa [#allocation6], 1
    %s1853 = scalar_lea.sflag [#allocation6], 1
    %1854 = vsyncpa %s1853, 1

</llo_original>
